<compile_context>
chip_gen: v5e
topology: v5e:2x2
jax: 0.10.0
libtpu: 0.0.40
codegen_flags: <defaults>
</compile_context>

<pallas_src>
import functools

import jax
import jax.numpy as jnp
from jax.experimental import pallas as pl
from jax.experimental.pallas import tpu as pltpu

# ---- problem sizes (fixed by the module's view(-1, 145, 4, 9)) ----
C, H_, W_ = 145, 4, 9          # obs channels / spatial
F = C * H_ * W_                # 5220 flattened features
F_PAD = 42 * 128               # 5376: lane-aligned, splits into 3 K tiles
TK = 14 * 128                  # 1792: K tile for the large-batch pipeline
NK = F_PAD // TK               # 3 grid steps (per-step overhead ~0.35 us)
HID = 256                      # hidden width of the synthetic MLP "network"
A = 128                        # number of discrete actions (synthetic)
BP_ALIGN = 32                  # batch pad: full packed int8 sublane groups
SMALL_BATCH_MAX = 32           # <= this -> single-step kernel


def _round_up(x, m):
    return (x + m - 1) // m * m


_I8_MXU = None


def _int8_mxu_supported():
    """True if the local TPU generation has a native int8 MXU path."""
    global _I8_MXU
    if _I8_MXU is None:
        try:
            kind = jax.devices()[0].device_kind.lower()
        except Exception:
            kind = ""
        # v5e / v5p / v6e have int8 MXU paths; v7x dropped the int path.
        _I8_MXU = ("v5" in kind) or ("v6" in kind)
    return _I8_MXU


# ----------------------------- kernel bodies --------------------------------
def _first_matmul(x_i8, w1_i8, use_i8_mxu):
    """x:(bp,K) int8 (values 0/1), w1:(K,HID) int8 -> exact f32 integer sums."""
    if use_i8_mxu:
        # native i8 x i8 -> i32 MXU path (v5e/v6e); sums < 2^24 so exact in f32
        return jnp.dot(x_i8, w1_i8,
                       preferred_element_type=jnp.int32).astype(jnp.float32)
    # no int MXU path (e.g. v7x): widen the int8 tile in VMEM.  The HBM stream
    # (the bottleneck) stays int8; ints <= 127 are exact in bf16.
    return jnp.dot(x_i8.astype(jnp.bfloat16), w1_i8.astype(jnp.bfloat16),
                   preferred_element_type=jnp.float32)


def _epilogue(n_valid, logits, mask, out_ref):
    """Global min/max over VALID rows only (torch .min()/.max()), then shift."""
    bp = logits.shape[0]
    if n_valid < bp:  # static Python branch (trace-time ints)
        row = jax.lax.broadcasted_iota(jnp.int32, logits.shape, 0)
        valid = row < n_valid
        lmin = jnp.min(jnp.where(valid, logits, jnp.inf))
        lmax = jnp.max(jnp.where(valid, logits, -jnp.inf))
    else:
        lmin = jnp.min(logits)
        lmax = jnp.max(logits)
    out_ref[...] = logits + (lmin - lmax - 20.0) * mask


def _fwd_single_kernel(n_valid, use_i8_mxu,
                       x_ref, w1_ref, s1_ref, b1_ref, w2_ref, b2_ref, mask_ref,
                       out_ref):
    """Single-step kernel for the small-batch / inference path."""
    acc = _first_matmul(x_ref[...], w1_ref[...], use_i8_mxu)        # (bp, HID) f32
    h = jnp.maximum(acc * s1_ref[...] + b1_ref[...], 0.0)
    logits = jnp.dot(h.astype(jnp.bfloat16), w2_ref[...],
                     preferred_element_type=jnp.float32) + b2_ref[...]
    _epilogue(n_valid, logits, mask_ref[...], out_ref)


def _fwd_ktiled_kernel(n_valid, use_i8_mxu,
                       x_ref, w1_ref, s1_ref, b1_ref, w2_ref, b2_ref, mask_ref,
                       out_ref, acc_ref):
    """K-tiled pipeline for the update() path: streamed W1/x, f32 accumulator,
    epilogue on the last grid step (output block resident in VMEM)."""
    k = pl.program_id(0)

    @pl.when(k == 0)
    def _():
        acc_ref[...] = jnp.zeros_like(acc_ref)

    acc_ref[...] += _first_matmul(x_ref[...], w1_ref[...], use_i8_mxu)

    @pl.when(k == pl.num_programs(0) - 1)
    def _():
        h = jnp.maximum(acc_ref[...] * s1_ref[...] + b1_ref[...], 0.0)
        logits = jnp.dot(h.astype(jnp.bfloat16), w2_ref[...],
                         preferred_element_type=jnp.float32) + b2_ref[...]
        _epilogue(n_valid, logits, mask_ref[...], out_ref)


# ------------------------------- wrapper -------------------------------------
def policy_forward(obs_nchw, mask, params):
    """obs_nchw: (b,145,4,9) bool / 0-1 float; mask: (b,A) float (1.0 = illegal)."""
    w1q, s1, b1, w2b, b2 = params
    b = obs_nchw.shape[0]
    if b == 0:  # guard: empty batch would make the masked min/max +/-inf
        return jnp.zeros((0, A), jnp.float32)
    bp = _round_up(b, BP_ALIGN)

    # obs values are exactly {0,1} -> int8 cast is exact (and 4x smaller than f32).
    # TODO(synk): for very large update() batches, have the producer hand over
    # the already-flattened int8 obs to avoid this extra HBM round trip.
    x = obs_nchw.reshape(b, F).astype(jnp.int8)
    x = jnp.pad(x, ((0, bp - b), (0, F_PAD - F)))
    mask_p = jnp.pad(mask.astype(jnp.float32), ((0, bp - b), (0, 0)))

    use_i8 = _int8_mxu_supported()

    flops = 2 * bp * F_PAD * HID + 2 * bp * HID * A
    bytes_accessed = (x.size + w1q.size + w2b.size * 2 +
                      (s1.size + b1.size + b2.size) * 4 +
                      mask_p.size * 4 + bp * A * 4)
    cost = pl.CostEstimate(flops=flops, transcendentals=0,
                           bytes_accessed=bytes_accessed)
    cparams = pltpu.CompilerParams(dimension_semantics=("arbitrary",),
                                   vmem_limit_bytes=16 << 20)

    def full(shape):
        n = len(shape)
        return pl.BlockSpec(shape, lambda k: (0,) * n)

    if b <= SMALL_BATCH_MAX:
        # Single monolithic step: the whole (now int8) W1 stream, one MXU pass.
        out = pl.pallas_call(
            functools.partial(_fwd_single_kernel, b, use_i8),
            out_shape=jax.ShapeDtypeStruct((bp, A), jnp.float32),
            grid=(1,),
            in_specs=[
                full((bp, F_PAD)),      # x     (int8)
                full((F_PAD, HID)),     # w1    (int8)
                full((1, HID)),         # s1    (f32 per-column scale)
                full((1, HID)),         # b1    (f32)
                full((HID, A)),         # w2    (bf16)
                full((1, A)),           # b2    (f32)
                full((bp, A)),          # mask  (f32)
            ],
            out_specs=full((bp, A)),
            compiler_params=cparams,
            cost_estimate=cost,
        )(x, w1q, s1, b1, w2b, b2, mask_p)
    else:
        # K-tiled pipeline: W1/x streamed in NK chunks so DMA overlaps the MXU.
        # TODO(synk): add a batch-tile grid axis (+ running min/max in SMEM)
        # for minibatches >~1024 rows to bound the x/out VMEM footprint.
        out = pl.pallas_call(
            functools.partial(_fwd_ktiled_kernel, b, use_i8),
            out_shape=jax.ShapeDtypeStruct((bp, A), jnp.float32),
            grid=(NK,),
            in_specs=[
                pl.BlockSpec((bp, TK), lambda k: (0, k)),    # x     (int8)
                pl.BlockSpec((TK, HID), lambda k: (k, 0)),   # w1    (int8)
                full((1, HID)),                              # s1
                full((1, HID)),                              # b1
                full((HID, A)),                              # w2    (bf16)
                full((1, A)),                                # b2
                full((bp, A)),                               # mask
            ],
            out_specs=full((bp, A)),
            scratch_shapes=[pltpu.VMEM((bp, HID), jnp.float32)],
            compiler_params=cparams,
            cost_estimate=cost,
        )(x, w1q, s1, b1, w2b, b2, mask_p)

    return out[:b]


# ------------------------------ params / ref ----------------------------------
def init_params(key):
    """Init matching the module: orthogonal Linear weights, zero bias.
       W1 is pre-transposed to (in, out), zero-padded on the contraction dim and
       int8-quantized per hidden column (done once, outside the hot path).
       W2 is kept bf16 (it is tiny)."""
    k1, k2 = jax.random.split(key)
    ortho = jax.nn.initializers.orthogonal()
    w1_pt = ortho(k1, (HID, F), jnp.float32)      # PyTorch layout (out, in)
    w2_pt = ortho(k2, (A, HID), jnp.float32)
    w1 = jnp.pad(jnp.transpose(w1_pt), ((0, F_PAD - F), (0, 0)))   # (F_PAD, HID)
    s1 = jnp.maximum(jnp.max(jnp.abs(w1), axis=0, keepdims=True), 1e-8) / 127.0
    w1q = jnp.clip(jnp.round(w1 / s1), -127.0, 127.0).astype(jnp.int8)
    w2b = jnp.transpose(w2_pt).astype(jnp.bfloat16)                # (HID, A)
    b1 = jnp.zeros((1, HID), jnp.float32)
    b2 = jnp.zeros((1, A), jnp.float32)
    return w1q, s1, b1, w2b, b2


def reference_forward(obs_nchw, mask, params):
    """Plain-JAX reference using the same (dequantized) weights."""
    w1q, s1, b1, w2b, b2 = params
    b = obs_nchw.shape[0]
    x = jnp.pad(obs_nchw.reshape(b, F).astype(jnp.float32),
                ((0, 0), (0, F_PAD - F)))
    w1 = w1q.astype(jnp.float32) * s1                              # dequantized
    h = jnp.maximum(jnp.dot(x, w1, precision=jax.lax.Precision.HIGHEST) + b1, 0.0)
    logits = jnp.dot(h.astype(jnp.bfloat16).astype(jnp.float32),
                     w2b.astype(jnp.float32),
                     precision=jax.lax.Precision.HIGHEST) + b2
    return logits + (jnp.min(logits) - jnp.max(logits) - 20.0) * mask.astype(jnp.float32)


if __name__ == "__main__":
    key = jax.random.PRNGKey(0)
    k_obs, k_mask, k_obs2, k_mask2, k_params = jax.random.split(key, 5)
    params = init_params(k_params)

    # --- inference-style call (B=2): single-step kernel ------------------
    B1 = 2
    obs = jax.random.bernoulli(k_obs, p=0.3, shape=(B1, C, H_, W_)).astype(jnp.float32)
    mask = jax.random.bernoulli(k_mask, p=0.5, shape=(B1, A)).astype(jnp.float32)
    out = jax.block_until_ready(policy_forward(obs, mask, params))
    ref = reference_forward(obs, mask, params)
    assert out.shape == (B1, A)
    assert jnp.allclose(out, ref, atol=2e-2, rtol=2e-2), "small-batch mismatch vs reference"

    # --- update()-style call (B=128): K-tiled pipelined kernel -----------
    B2 = 128
    obs2 = jax.random.bernoulli(k_obs2, p=0.3, shape=(B2, C, H_, W_)).astype(jnp.float32)
    mask2 = jax.random.bernoulli(k_mask2, p=0.5, shape=(B2, A)).astype(jnp.float32)
    out2 = jax.block_until_ready(policy_forward(obs2, mask2, params))
    ref2 = reference_forward(obs2, mask2, params)
    assert out2.shape == (B2, A)
    assert jnp.allclose(out2, ref2, atol=2e-2, rtol=2e-2), "large-batch mismatch vs reference"

    # TODO(synk): training-time paths (CrossEntropyLoss, Adam step with weight
    # decay groups, replay-buffer sampling in update()) and the `mask is None`
    # passthrough branch are host-side logic and intentionally not kernelized.
    # TODO(synk): cross-pallas_call W1 prefetch (P10) could hide the weight
    # stream behind preceding host/XLA work for the tiny-batch inference path.
    print("KERNEL_OK")
</pallas_src>

<mosaic_0001>
module attributes {stable_mosaic.version = 11 : i64} {
  func.func @_fwd_single_kernel(%arg0: i32, %arg1: memref<32x5376xi8, #tpu.memory_space<vmem>>, %arg2: memref<5376x256xi8, #tpu.memory_space<vmem>>, %arg3: memref<1x256xf32, #tpu.memory_space<vmem>>, %arg4: memref<1x256xf32, #tpu.memory_space<vmem>>, %arg5: memref<256x128xbf16, #tpu.memory_space<vmem>>, %arg6: memref<1x128xf32, #tpu.memory_space<vmem>>, %arg7: memref<32x128xf32, #tpu.memory_space<vmem>>, %arg8: memref<32x128xf32, #tpu.memory_space<vmem>>) attributes {dimension_semantics = [#tpu.dimension_semantics<arbitrary>], iteration_bounds = array<i64: 1>, scalar_prefetch = 0 : i64, scratch_operands = 0 : i64, tpu.core_type = #tpu.core_type<tc>, window_params = [{pipeline_mode = #tpu.pipeline_mode<synchronous>, transform_indices = @transform_0, window_bounds = array<i64: 32, 5376>}, {pipeline_mode = #tpu.pipeline_mode<synchronous>, transform_indices = @transform_1, window_bounds = array<i64: 5376, 256>}, {pipeline_mode = #tpu.pipeline_mode<synchronous>, transform_indices = @transform_2, window_bounds = array<i64: 1, 256>}, {pipeline_mode = #tpu.pipeline_mode<synchronous>, transform_indices = @transform_3, window_bounds = array<i64: 1, 256>}, {pipeline_mode = #tpu.pipeline_mode<synchronous>, transform_indices = @transform_4, window_bounds = array<i64: 256, 128>}, {pipeline_mode = #tpu.pipeline_mode<synchronous>, transform_indices = @transform_5, window_bounds = array<i64: 1, 128>}, {pipeline_mode = #tpu.pipeline_mode<synchronous>, transform_indices = @transform_6, window_bounds = array<i64: 32, 128>}, {pipeline_mode = #tpu.pipeline_mode<synchronous>, transform_indices = @transform_7, window_bounds = array<i64: 32, 128>}]} {
    %c0 = arith.constant 0 : index
    %c0_0 = arith.constant 0 : index
    %0 = vector.load %arg1[%c0, %c0_0] : memref<32x5376xi8, #tpu.memory_space<vmem>>, vector<32x5376xi8>
    %c0_1 = arith.constant 0 : index
    %c0_2 = arith.constant 0 : index
    %1 = vector.load %arg2[%c0_1, %c0_2] : memref<5376x256xi8, #tpu.memory_space<vmem>>, vector<5376x256xi8>
    %2 = arith.sitofp %0 : vector<32x5376xi8> to vector<32x5376xbf16>
    %3 = arith.sitofp %1 : vector<5376x256xi8> to vector<5376x256xbf16>
    %cst = arith.constant dense<0.000000e+00> : vector<32x256xf32>
    %4 = tpu.matmul %2, %3, %cst {dimension_numbers = #tpu.dot_dimension_numbers<[1], [0], [0], [1], [0, 0, 1, 1], [], []>} : vector<32x5376xbf16>, vector<5376x256xbf16>, vector<32x256xf32> -> vector<32x256xf32>
    %c0_3 = arith.constant 0 : index
    %c0_4 = arith.constant 0 : index
    %5 = vector.load %arg3[%c0_3, %c0_4] : memref<1x256xf32, #tpu.memory_space<vmem>>, vector<1x256xf32>
    %6 = vector.broadcast %5 : vector<1x256xf32> to vector<32x256xf32>
    %7 = arith.mulf %4, %6 : vector<32x256xf32>
    %c0_5 = arith.constant 0 : index
    %c0_6 = arith.constant 0 : index
    %8 = vector.load %arg4[%c0_5, %c0_6] : memref<1x256xf32, #tpu.memory_space<vmem>>, vector<1x256xf32>
    %9 = vector.broadcast %8 : vector<1x256xf32> to vector<32x256xf32>
    %10 = arith.addf %7, %9 : vector<32x256xf32>
    %cst_7 = arith.constant 0.000000e+00 : f32
    %11 = vector.broadcast %cst_7 : f32 to vector<32x256xf32>
    %12 = arith.maximumf %10, %11 : vector<32x256xf32>
    %13 = arith.truncf %12 : vector<32x256xf32> to vector<32x256xbf16>
    %c0_8 = arith.constant 0 : index
    %c0_9 = arith.constant 0 : index
    %14 = vector.load %arg5[%c0_8, %c0_9] : memref<256x128xbf16, #tpu.memory_space<vmem>>, vector<256x128xbf16>
    %cst_10 = arith.constant dense<0.000000e+00> : vector<32x128xf32>
    %15 = tpu.matmul %13, %14, %cst_10 {dimension_numbers = #tpu.dot_dimension_numbers<[1], [0], [0], [1], [0, 0, 1, 1], [], []>} : vector<32x256xbf16>, vector<256x128xbf16>, vector<32x128xf32> -> vector<32x128xf32>
    %c0_11 = arith.constant 0 : index
    %c0_12 = arith.constant 0 : index
    %16 = vector.load %arg6[%c0_11, %c0_12] : memref<1x128xf32, #tpu.memory_space<vmem>>, vector<1x128xf32>
    %17 = vector.broadcast %16 : vector<1x128xf32> to vector<32x128xf32>
    %18 = arith.addf %15, %17 : vector<32x128xf32>
    %c0_13 = arith.constant 0 : index
    %c0_14 = arith.constant 0 : index
    %19 = vector.load %arg7[%c0_13, %c0_14] : memref<32x128xf32, #tpu.memory_space<vmem>>, vector<32x128xf32>
    %20 = tpu.iota {dimensions = array<i32: 0>} : vector<32x128xi32>
    %c2_i32 = arith.constant 2 : i32
    %21 = vector.broadcast %c2_i32 : i32 to vector<32x128xi32>
    %22 = arith.cmpi slt, %20, %21 : vector<32x128xi32>
    %cst_15 = arith.constant 0x7F800000 : f32
    %23 = vector.broadcast %cst_15 : f32 to vector<32x128xf32>
    %24 = arith.select %22, %18, %23 : vector<32x128xi1>, vector<32x128xf32>
    %25 = vector.shape_cast %24 : vector<32x128xf32> to vector<1x32x128xf32>
    %cst_16 = arith.constant dense<0x7F800000> : vector<1xf32>
    %26 = vector.multi_reduction <minimumf>, %25, %cst_16 [1, 2] : vector<1x32x128xf32> to vector<1xf32>
    %27 = vector.shape_cast %26 : vector<1xf32> to vector<1x1x1xf32>
    %28 = vector.extract %27[0, 0, 0] : f32 from vector<1x1x1xf32>
    %cst_17 = arith.constant 0xFF800000 : f32
    %29 = vector.broadcast %cst_17 : f32 to vector<32x128xf32>
    %30 = arith.select %22, %18, %29 : vector<32x128xi1>, vector<32x128xf32>
    %31 = vector.shape_cast %30 : vector<32x128xf32> to vector<1x32x128xf32>
    %cst_18 = arith.constant dense<0xFF800000> : vector<1xf32>
    %32 = vector.multi_reduction <maximumf>, %31, %cst_18 [1, 2] : vector<1x32x128xf32> to vector<1xf32>
    %33 = vector.shape_cast %32 : vector<1xf32> to vector<1x1x1xf32>
    %34 = vector.extract %33[0, 0, 0] : f32 from vector<1x1x1xf32>
    %35 = arith.subf %28, %34 : f32
    %cst_19 = arith.constant 2.000000e+01 : f32
    %36 = arith.subf %35, %cst_19 : f32
    %37 = vector.broadcast %36 : f32 to vector<32x128xf32>
    %38 = arith.mulf %37, %19 : vector<32x128xf32>
    %39 = arith.addf %18, %38 : vector<32x128xf32>
    %c0_20 = arith.constant 0 : index
    %c0_21 = arith.constant 0 : index
    %40 = vector.load %arg8[%c0_20, %c0_21] : memref<32x128xf32, #tpu.memory_space<vmem>>, vector<32x128xf32>
    tpu.vector_store %arg8[%c0_20, %c0_21], %39 {strides = array<i32>} : memref<32x128xf32, #tpu.memory_space<vmem>>, vector<32x128xf32>,
    return
  }
  func.func @transform_0(%arg0: i32) -> (i32, i32) {
    %c0_i32 = arith.constant 0 : i32
    %c0_i32_0 = arith.constant 0 : i32
    %c0_i32_1 = arith.constant 0 : i32
    return %c0_i32, %c0_i32_0 : i32, i32
  }
  func.func @transform_1(%arg0: i32) -> (i32, i32) {
    %c0_i32 = arith.constant 0 : i32
    %c0_i32_0 = arith.constant 0 : i32
    %c0_i32_1 = arith.constant 0 : i32
    return %c0_i32, %c0_i32_0 : i32, i32
  }
  func.func @transform_2(%arg0: i32) -> (i32, i32) {
    %c0_i32 = arith.constant 0 : i32
    %c0_i32_0 = arith.constant 0 : i32
    %c0_i32_1 = arith.constant 0 : i32
    return %c0_i32, %c0_i32_0 : i32, i32
  }
  func.func @transform_3(%arg0: i32) -> (i32, i32) {
    %c0_i32 = arith.constant 0 : i32
    %c0_i32_0 = arith.constant 0 : i32
    %c0_i32_1 = arith.constant 0 : i32
    return %c0_i32, %c0_i32_0 : i32, i32
  }
  func.func @transform_4(%arg0: i32) -> (i32, i32) {
    %c0_i32 = arith.constant 0 : i32
    %c0_i32_0 = arith.constant 0 : i32
    %c0_i32_1 = arith.constant 0 : i32
    return %c0_i32, %c0_i32_0 : i32, i32
  }
  func.func @transform_5(%arg0: i32) -> (i32, i32) {
    %c0_i32 = arith.constant 0 : i32
    %c0_i32_0 = arith.constant 0 : i32
    %c0_i32_1 = arith.constant 0 : i32
    return %c0_i32, %c0_i32_0 : i32, i32
  }
  func.func @transform_6(%arg0: i32) -> (i32, i32) {
    %c0_i32 = arith.constant 0 : i32
    %c0_i32_0 = arith.constant 0 : i32
    %c0_i32_1 = arith.constant 0 : i32
    return %c0_i32, %c0_i32_0 : i32, i32
  }
  func.func @transform_7(%arg0: i32) -> (i32, i32) {
    %c0_i32 = arith.constant 0 : i32
    %c0_i32_0 = arith.constant 0 : i32
    %c0_i32_1 = arith.constant 0 : i32
    return %c0_i32, %c0_i32_0 : i32, i32
  }
}

</mosaic_0001>

<llo_original>
// kernel: tpu_custom_call.1
$region0: #{tpu_custom_call.1}
  #allocation0 [shape = 'u32[]', space=smem, size = 0x4, offset = 0x4, fixed_abs, tag = 'smem constant byte address 0x4 - core index']
  #allocation1 [shape = 'u32[72,128]{1,0:T(1,128)}', space=vmem, size = 0x9000, scoped, tag = 'internal scratch']
  %s0 = inlined_call_operand.hbm [shape: s8[32,5376], index: 0, kind: input, shape index: {}]
  %s1 = inlined_call_operand.hbm [shape: s8[5376,256], index: 1, kind: input, shape index: {}]
  %s2 = inlined_call_operand.hbm [shape: f32[1,256], index: 2, kind: input, shape index: {}]
  %s3 = inlined_call_operand.hbm [shape: f32[1,256], index: 3, kind: input, shape index: {}]
  %s4 = inlined_call_operand.hbm [shape: bf16[256,128], index: 4, kind: input, shape index: {}]
  %s5 = inlined_call_operand.hbm [shape: f32[1,128], index: 5, kind: input, shape index: {}]
  %s6 = inlined_call_operand.hbm [shape: f32[32,128], index: 6, kind: input, shape index: {}]
  %s7 = inlined_call_operand.hbm [shape: f32[32,128], index: 7, kind: output, shape index: {}]
  %s8 = sld [smem:[#allocation0]]
  $region66: #{tpu_custom_call.1} parent=0
    _
  %s10 = ssub.s32 1, %s8
  %s11 = scalar_select 0, %s10, %s8
  $region1: #{tpu_custom_call.1} parent=0
    #allocation2 [shape = 'u8[172032]{0}', space=vmem, size = 0x2a000, scoped, tag = 'input window, operand 0, single buffered']
    #allocation3 [shape = 's32[1]{0}', space=sflag, size = 0x4, scoped, tag = 'scoped memory for tpu_custom_call.1']
    #allocation4 [shape = 's32[1]{0}', space=sflag, size = 0x4, scoped, tag = 'scoped memory for tpu_custom_call.1']
    #allocation5 [shape = 'u8[1376256]{0}', space=vmem, size = 0x150000, scoped, tag = 'input window, operand 1, single buffered']
    #allocation6 [shape = 's32[1]{0}', space=sflag, size = 0x4, scoped, tag = 'scoped memory for tpu_custom_call.1']
    #allocation7 [shape = 'u8[1024]{0}', space=vmem, size = 0x400, scoped, tag = 'input window, operand 2, single buffered']
    #allocation8 [shape = 'u8[1024]{0}', space=vmem, size = 0x400, scoped, tag = 'input window, operand 3, single buffered']
    #allocation9 [shape = 's32[1]{0}', space=sflag, size = 0x4, scoped, tag = 'scoped memory for tpu_custom_call.1']
    #allocation10 [shape = 'u8[65536]{0}', space=vmem, size = 0x10000, scoped, tag = 'input window, operand 4, single buffered']
    #allocation11 [shape = 'u8[512]{0}', space=vmem, size = 0x400, scoped, tag = 'input window, operand 5, single buffered']
    #allocation12 [shape = 's32[1]{0}', space=sflag, size = 0x4, scoped, tag = 'scoped memory for tpu_custom_call.1']
    #allocation13 [shape = 'u8[16384]{0}', space=vmem, size = 0x4000, scoped, tag = 'input window, operand 6, single buffered']
    #allocation14 [shape = 'u8[16384]{0}', space=vmem, size = 0x4000, scoped, tag = 'output window, operand 0, single buffered']
    %12 = vsyncpa [#allocation3], 0
    %13 = vsyncpa [#allocation6], 0
    %14 = vsyncpa [#allocation9], 0
    %15 = vsyncpa [#allocation12], 0
    %16 = vsyncpa [#allocation4], 0
    // Predicated region
    $region2: #{tpu_custom_call.1} parent=1 // pred_check
      _
    $region3: #{tpu_custom_call.1} parent=1 // pred_check_branch
      %18 = sbr.rel (0) target = $region5
    $region4: #{tpu_custom_call.1} parent=1 // pred_region
      %20 = vsyncadd [#allocation3], 0
      %s22 = sshll.u32 %s0, 4
      %s23 = int_to_ptr.hbm [resolvable:$true] %s22
      %s24 = sshll.u32 [#allocation2], 4
      %s25 = int_to_ptr.vmem [resolvable:$true] %s24
      %27 = dma.hbm_to_vmem [thread:$0]  %s23, 5376, %s25, [#allocation3]
    $region5: #{tpu_custom_call.1} parent=1 // pred_fallthru
      _
    // Predicated region
    $region6: #{tpu_custom_call.1} parent=1 // pred_check
      _
    $region7: #{tpu_custom_call.1} parent=1 // pred_check_branch
      %29 = sbr.rel (0) target = $region9
    $region8: #{tpu_custom_call.1} parent=1 // pred_region
      %31 = vsyncadd [#allocation6], 0
      %s32 = sshll.u32 %s1, 4
      %s33 = int_to_ptr.hbm [resolvable:$true] %s32
      %s34 = sshll.u32 [#allocation5], 4
      %s35 = int_to_ptr.vmem [resolvable:$true] %s34
      %40 = dma.hbm_to_vmem [thread:$0]  %s33, 43008, %s35, [#allocation6], 256, 256, 16
    $region9: #{tpu_custom_call.1} parent=1 // pred_fallthru
      _
    // Predicated region
    $region10: #{tpu_custom_call.1} parent=1 // pred_check
      _
    $region11: #{tpu_custom_call.1} parent=1 // pred_check_branch
      %42 = sbr.rel (0) target = $region13
    $region12: #{tpu_custom_call.1} parent=1 // pred_region
      %44 = vsyncadd [#allocation6], 0
      %s46 = sshll.u32 %s2, 4
      %s47 = int_to_ptr.hbm [resolvable:$true] %s46
      %s48 = sshll.u32 [#allocation7], 4
      %s49 = int_to_ptr.vmem [resolvable:$true] %s48
      %51 = dma.hbm_to_vmem [thread:$0]  %s47, 32, %s49, [#allocation6]
    $region13: #{tpu_custom_call.1} parent=1 // pred_fallthru
      _
    // Predicated region
    $region14: #{tpu_custom_call.1} parent=1 // pred_check
      _
    $region15: #{tpu_custom_call.1} parent=1 // pred_check_branch
      %53 = sbr.rel (0) target = $region17
    $region16: #{tpu_custom_call.1} parent=1 // pred_region
      %55 = vsyncadd [#allocation9], 0
      %s57 = sshll.u32 %s3, 4
      %s58 = int_to_ptr.hbm [resolvable:$true] %s57
      %s59 = sshll.u32 [#allocation8], 4
      %s60 = int_to_ptr.vmem [resolvable:$true] %s59
      %62 = dma.hbm_to_vmem [thread:$0]  %s58, 32, %s60, [#allocation9]
    $region17: #{tpu_custom_call.1} parent=1 // pred_fallthru
      _
    // Predicated region
    $region18: #{tpu_custom_call.1} parent=1 // pred_check
      _
    $region19: #{tpu_custom_call.1} parent=1 // pred_check_branch
      %64 = sbr.rel (0) target = $region21
    $region20: #{tpu_custom_call.1} parent=1 // pred_region
      %66 = vsyncadd [#allocation9], 0
      %s67 = sshll.u32 %s4, 4
      %s68 = int_to_ptr.hbm [resolvable:$true] %s67
      %s69 = sshll.u32 [#allocation10], 4
      %s70 = int_to_ptr.vmem [resolvable:$true] %s69
      %75 = dma.hbm_to_vmem [thread:$0]  %s68, 2048, %s70, [#allocation9], 64, 64, 4
    $region21: #{tpu_custom_call.1} parent=1 // pred_fallthru
      _
    // Predicated region
    $region22: #{tpu_custom_call.1} parent=1 // pred_check
      _
    $region23: #{tpu_custom_call.1} parent=1 // pred_check_branch
      %77 = sbr.rel (0) target = $region25
    $region24: #{tpu_custom_call.1} parent=1 // pred_region
      %79 = vsyncadd [#allocation12], 0
      %s81 = sshll.u32 %s5, 4
      %s82 = int_to_ptr.hbm [resolvable:$true] %s81
      %s83 = sshll.u32 [#allocation11], 4
      %s84 = int_to_ptr.vmem [resolvable:$true] %s83
      %86 = dma.hbm_to_vmem [thread:$0]  %s82, 16, %s84, [#allocation12]
    $region25: #{tpu_custom_call.1} parent=1 // pred_fallthru
      _
    // Predicated region
    $region26: #{tpu_custom_call.1} parent=1 // pred_check
      _
    $region27: #{tpu_custom_call.1} parent=1 // pred_check_branch
      %88 = sbr.rel (0) target = $region29
    $region28: #{tpu_custom_call.1} parent=1 // pred_region
      %90 = vsyncadd [#allocation12], 0
      %s91 = sshll.u32 %s6, 4
      %s92 = int_to_ptr.hbm [resolvable:$true] %s91
      %s93 = sshll.u32 [#allocation13], 4
      %s94 = int_to_ptr.vmem [resolvable:$true] %s93
      %99 = dma.hbm_to_vmem [thread:$0]  %s92, 512, %s94, [#allocation12], 128, 128, 8
    $region29: #{tpu_custom_call.1} parent=1 // pred_fallthru
      _
    // Predicated region
    $region30: #{tpu_custom_call.1} parent=1 // pred_check
      _
    $region31: #{tpu_custom_call.1} parent=1 // pred_check_branch
      %101 = sbr.rel (0) target = $region33
    $region32: #{tpu_custom_call.1} parent=1 // pred_region
      %103 = dma.done [#allocation3], 5376
    $region33: #{tpu_custom_call.1} parent=1 // pred_fallthru
      _
    // Predicated region
    $region34: #{tpu_custom_call.1} parent=1 // pred_check
      _
    $region35: #{tpu_custom_call.1} parent=1 // pred_check_branch
      %105 = sbr.rel (0) target = $region37
    $region36: #{tpu_custom_call.1} parent=1 // pred_region
      %107 = dma.done [#allocation6], 43008
    $region37: #{tpu_custom_call.1} parent=1 // pred_fallthru
      _
    // Predicated region
    $region38: #{tpu_custom_call.1} parent=1 // pred_check
      _
    $region39: #{tpu_custom_call.1} parent=1 // pred_check_branch
      %109 = sbr.rel (0) target = $region41
    $region40: #{tpu_custom_call.1} parent=1 // pred_region
      %111 = dma.done [#allocation6], 32
    $region41: #{tpu_custom_call.1} parent=1 // pred_fallthru
      _
    // Predicated region
    $region42: #{tpu_custom_call.1} parent=1 // pred_check
      _
    $region43: #{tpu_custom_call.1} parent=1 // pred_check_branch
      %113 = sbr.rel (0) target = $region45
    $region44: #{tpu_custom_call.1} parent=1 // pred_region
      %115 = dma.done [#allocation9], 32
    $region45: #{tpu_custom_call.1} parent=1 // pred_fallthru
      _
    // Predicated region
    $region46: #{tpu_custom_call.1} parent=1 // pred_check
      _
    $region47: #{tpu_custom_call.1} parent=1 // pred_check_branch
      %117 = sbr.rel (0) target = $region49
    $region48: #{tpu_custom_call.1} parent=1 // pred_region
      %119 = dma.done [#allocation9], 2048
    $region49: #{tpu_custom_call.1} parent=1 // pred_fallthru
      _
    // Predicated region
    $region50: #{tpu_custom_call.1} parent=1 // pred_check
      _
    $region51: #{tpu_custom_call.1} parent=1 // pred_check_branch
      %121 = sbr.rel (0) target = $region53
    $region52: #{tpu_custom_call.1} parent=1 // pred_region
      %123 = dma.done [#allocation12], 16
    $region53: #{tpu_custom_call.1} parent=1 // pred_fallthru
      _
    // Predicated region
    $region54: #{tpu_custom_call.1} parent=1 // pred_check
      _
    $region55: #{tpu_custom_call.1} parent=1 // pred_check_branch
      %125 = sbr.rel (0) target = $region57
    $region56: #{tpu_custom_call.1} parent=1 // pred_region
      %127 = dma.done [#allocation12], 512
    $region57: #{tpu_custom_call.1} parent=1 // pred_fallthru
      _
    %v128 = vld [vmem:[#allocation2] sm:$0xff]
    %v129 = vld [vmem:[#allocation2 + $0x8] sm:$0xff]
    %v130 = vld [vmem:[#allocation2 + $0x10] sm:$0xff]
    %v131 = vld [vmem:[#allocation2 + $0x18] sm:$0xff]
    %v132 = vld [vmem:[#allocation2 + $0x20] sm:$0xff]
    %v133 = vld [vmem:[#allocation2 + $0x28] sm:$0xff]
    %v134 = vld [vmem:[#allocation2 + $0x30] sm:$0xff]
    %v135 = vld [vmem:[#allocation2 + $0x38] sm:$0xff]
    %v136 = vld [vmem:[#allocation2 + $0x40] sm:$0xff]
    %v137 = vld [vmem:[#allocation2 + $0x48] sm:$0xff]
    %v138 = vld [vmem:[#allocation2 + $0x50] sm:$0xff]
    %v139 = vld [vmem:[#allocation2 + $0x58] sm:$0xff]
    %v140 = vld [vmem:[#allocation2 + $0x60] sm:$0xff]
    %v141 = vld [vmem:[#allocation2 + $0x68] sm:$0xff]
    %v142 = vld [vmem:[#allocation2 + $0x70] sm:$0xff]
    %v143 = vld [vmem:[#allocation2 + $0x78] sm:$0xff]
    %v144 = vld [vmem:[#allocation2 + $0x80] sm:$0xff]
    %v145 = vld [vmem:[#allocation2 + $0x88] sm:$0xff]
    %v146 = vld [vmem:[#allocation2 + $0x90] sm:$0xff]
    %v147 = vld [vmem:[#allocation2 + $0x98] sm:$0xff]
    %v148 = vld [vmem:[#allocation2 + $0xa0] sm:$0xff]
    %v149 = vld [vmem:[#allocation2 + $0xa8] sm:$0xff]
    %v150 = vld [vmem:[#allocation2 + $0xb0] sm:$0xff]
    %v151 = vld [vmem:[#allocation2 + $0xb8] sm:$0xff]
    %v152 = vld [vmem:[#allocation2 + $0xc0] sm:$0xff]
    %v153 = vld [vmem:[#allocation2 + $0xc8] sm:$0xff]
    %v154 = vld [vmem:[#allocation2 + $0xd0] sm:$0xff]
    %v155 = vld [vmem:[#allocation2 + $0xd8] sm:$0xff]
    %v156 = vld [vmem:[#allocation2 + $0xe0] sm:$0xff]
    %v157 = vld [vmem:[#allocation2 + $0xe8] sm:$0xff]
    %v158 = vld [vmem:[#allocation2 + $0xf0] sm:$0xff]
    %v159 = vld [vmem:[#allocation2 + $0xf8] sm:$0xff]
    %v160 = vld [vmem:[#allocation2 + $0x100] sm:$0xff]
    %v161 = vld [vmem:[#allocation2 + $0x108] sm:$0xff]
    %v162 = vld [vmem:[#allocation2 + $0x110] sm:$0xff]
    %v163 = vld [vmem:[#allocation2 + $0x118] sm:$0xff]
    %v164 = vld [vmem:[#allocation2 + $0x120] sm:$0xff]
    %v165 = vld [vmem:[#allocation2 + $0x128] sm:$0xff]
    %v166 = vld [vmem:[#allocation2 + $0x130] sm:$0xff]
    %v167 = vld [vmem:[#allocation2 + $0x138] sm:$0xff]
    %v168 = vld [vmem:[#allocation2 + $0x140] sm:$0xff]
    %v169 = vld [vmem:[#allocation2 + $0x148] sm:$0xff]
    %v170 = vld [vmem:[#allocation5] sm:$0xff]
    %v171 = vld [vmem:[#allocation5 + $0x8] sm:$0xff]
    %v172 = vld [vmem:[#allocation5 + $0x10] sm:$0xff]
    %v173 = vld [vmem:[#allocation5 + $0x18] sm:$0xff]
    %v174 = vld [vmem:[#allocation5 + $0x20] sm:$0xff]
    %v175 = vld [vmem:[#allocation5 + $0x28] sm:$0xff]
    %v176 = vld [vmem:[#allocation5 + $0x30] sm:$0xff]
    %v177 = vld [vmem:[#allocation5 + $0x38] sm:$0xff]
    %v178 = vld [vmem:[#allocation5 + $0x40] sm:$0xff]
    %v179 = vld [vmem:[#allocation5 + $0x48] sm:$0xff]
    %v180 = vld [vmem:[#allocation5 + $0x50] sm:$0xff]
    %v181 = vld [vmem:[#allocation5 + $0x58] sm:$0xff]
    %v182 = vld [vmem:[#allocation5 + $0x60] sm:$0xff]
    %v183 = vld [vmem:[#allocation5 + $0x68] sm:$0xff]
    %v184 = vld [vmem:[#allocation5 + $0x70] sm:$0xff]
    %v185 = vld [vmem:[#allocation5 + $0x78] sm:$0xff]
    %v186 = vld [vmem:[#allocation5 + $0x80] sm:$0xff]
    %v187 = vld [vmem:[#allocation5 + $0x88] sm:$0xff]
    %v188 = vld [vmem:[#allocation5 + $0x90] sm:$0xff]
    %v189 = vld [vmem:[#allocation5 + $0x98] sm:$0xff]
    %v190 = vld [vmem:[#allocation5 + $0xa0] sm:$0xff]
    %v191 = vld [vmem:[#allocation5 + $0xa8] sm:$0xff]
    %v192 = vld [vmem:[#allocation5 + $0xb0] sm:$0xff]
    %v193 = vld [vmem:[#allocation5 + $0xb8] sm:$0xff]
    %v194 = vld [vmem:[#allocation5 + $0xc0] sm:$0xff]
    %v195 = vld [vmem:[#allocation5 + $0xc8] sm:$0xff]
    %v196 = vld [vmem:[#allocation5 + $0xd0] sm:$0xff]
    %v197 = vld [vmem:[#allocation5 + $0xd8] sm:$0xff]
    %v198 = vld [vmem:[#allocation5 + $0xe0] sm:$0xff]
    %v199 = vld [vmem:[#allocation5 + $0xe8] sm:$0xff]
    %v200 = vld [vmem:[#allocation5 + $0xf0] sm:$0xff]
    %v201 = vld [vmem:[#allocation5 + $0xf8] sm:$0xff]
    %v202 = vld [vmem:[#allocation5 + $0x100] sm:$0xff]
    %v203 = vld [vmem:[#allocation5 + $0x108] sm:$0xff]
    %v204 = vld [vmem:[#allocation5 + $0x110] sm:$0xff]
    %v205 = vld [vmem:[#allocation5 + $0x118] sm:$0xff]
    %v206 = vld [vmem:[#allocation5 + $0x120] sm:$0xff]
    %v207 = vld [vmem:[#allocation5 + $0x128] sm:$0xff]
    %v208 = vld [vmem:[#allocation5 + $0x130] sm:$0xff]
    %v209 = vld [vmem:[#allocation5 + $0x138] sm:$0xff]
    %v210 = vld [vmem:[#allocation5 + $0x140] sm:$0xff]
    %v211 = vld [vmem:[#allocation5 + $0x148] sm:$0xff]
    %v212 = vld [vmem:[#allocation5 + $0x150] sm:$0xff]
    %v213 = vld [vmem:[#allocation5 + $0x158] sm:$0xff]
    %v214 = vld [vmem:[#allocation5 + $0x160] sm:$0xff]
    %v215 = vld [vmem:[#allocation5 + $0x168] sm:$0xff]
    %v216 = vld [vmem:[#allocation5 + $0x170] sm:$0xff]
    %v217 = vld [vmem:[#allocation5 + $0x178] sm:$0xff]
    %v218 = vld [vmem:[#allocation5 + $0x180] sm:$0xff]
    %v219 = vld [vmem:[#allocation5 + $0x188] sm:$0xff]
    %v220 = vld [vmem:[#allocation5 + $0x190] sm:$0xff]
    %v221 = vld [vmem:[#allocation5 + $0x198] sm:$0xff]
    %v222 = vld [vmem:[#allocation5 + $0x1a0] sm:$0xff]
    %v223 = vld [vmem:[#allocation5 + $0x1a8] sm:$0xff]
    %v224 = vld [vmem:[#allocation5 + $0x1b0] sm:$0xff]
    %v225 = vld [vmem:[#allocation5 + $0x1b8] sm:$0xff]
    %v226 = vld [vmem:[#allocation5 + $0x1c0] sm:$0xff]
    %v227 = vld [vmem:[#allocation5 + $0x1c8] sm:$0xff]
    %v228 = vld [vmem:[#allocation5 + $0x1d0] sm:$0xff]
    %v229 = vld [vmem:[#allocation5 + $0x1d8] sm:$0xff]
    %v230 = vld [vmem:[#allocation5 + $0x1e0] sm:$0xff]
    %v231 = vld [vmem:[#allocation5 + $0x1e8] sm:$0xff]
    %v232 = vld [vmem:[#allocation5 + $0x1f0] sm:$0xff]
    %v233 = vld [vmem:[#allocation5 + $0x1f8] sm:$0xff]
    %v234 = vld [vmem:[#allocation5 + $0x200] sm:$0xff]
    %v235 = vld [vmem:[#allocation5 + $0x208] sm:$0xff]
    %v236 = vld [vmem:[#allocation5 + $0x210] sm:$0xff]
    %v237 = vld [vmem:[#allocation5 + $0x218] sm:$0xff]
    %v238 = vld [vmem:[#allocation5 + $0x220] sm:$0xff]
    %v239 = vld [vmem:[#allocation5 + $0x228] sm:$0xff]
    %v240 = vld [vmem:[#allocation5 + $0x230] sm:$0xff]
    %v241 = vld [vmem:[#allocation5 + $0x238] sm:$0xff]
    %v242 = vld [vmem:[#allocation5 + $0x240] sm:$0xff]
    %v243 = vld [vmem:[#allocation5 + $0x248] sm:$0xff]
    %v244 = vld [vmem:[#allocation5 + $0x250] sm:$0xff]
    %v245 = vld [vmem:[#allocation5 + $0x258] sm:$0xff]
    %v246 = vld [vmem:[#allocation5 + $0x260] sm:$0xff]
    %v247 = vld [vmem:[#allocation5 + $0x268] sm:$0xff]
    %v248 = vld [vmem:[#allocation5 + $0x270] sm:$0xff]
    %v249 = vld [vmem:[#allocation5 + $0x278] sm:$0xff]
    %v250 = vld [vmem:[#allocation5 + $0x280] sm:$0xff]
    %v251 = vld [vmem:[#allocation5 + $0x288] sm:$0xff]
    %v252 = vld [vmem:[#allocation5 + $0x290] sm:$0xff]
    %v253 = vld [vmem:[#allocation5 + $0x298] sm:$0xff]
    %v254 = vld [vmem:[#allocation5 + $0x2a0] sm:$0xff]
    %v255 = vld [vmem:[#allocation5 + $0x2a8] sm:$0xff]
    %v256 = vld [vmem:[#allocation5 + $0x2b0] sm:$0xff]
    %v257 = vld [vmem:[#allocation5 + $0x2b8] sm:$0xff]
    %v258 = vld [vmem:[#allocation5 + $0x2c0] sm:$0xff]
    %v259 = vld [vmem:[#allocation5 + $0x2c8] sm:$0xff]
    %v260 = vld [vmem:[#allocation5 + $0x2d0] sm:$0xff]
    %v261 = vld [vmem:[#allocation5 + $0x2d8] sm:$0xff]
    %v262 = vld [vmem:[#allocation5 + $0x2e0] sm:$0xff]
    %v263 = vld [vmem:[#allocation5 + $0x2e8] sm:$0xff]
    %v264 = vld [vmem:[#allocation5 + $0x2f0] sm:$0xff]
    %v265 = vld [vmem:[#allocation5 + $0x2f8] sm:$0xff]
    %v266 = vld [vmem:[#allocation5 + $0x300] sm:$0xff]
    %v267 = vld [vmem:[#allocation5 + $0x308] sm:$0xff]
    %v268 = vld [vmem:[#allocation5 + $0x310] sm:$0xff]
    %v269 = vld [vmem:[#allocation5 + $0x318] sm:$0xff]
    %v270 = vld [vmem:[#allocation5 + $0x320] sm:$0xff]
    %v271 = vld [vmem:[#allocation5 + $0x328] sm:$0xff]
    %v272 = vld [vmem:[#allocation5 + $0x330] sm:$0xff]
    %v273 = vld [vmem:[#allocation5 + $0x338] sm:$0xff]
    %v274 = vld [vmem:[#allocation5 + $0x340] sm:$0xff]
    %v275 = vld [vmem:[#allocation5 + $0x348] sm:$0xff]
    %v276 = vld [vmem:[#allocation5 + $0x350] sm:$0xff]
    %v277 = vld [vmem:[#allocation5 + $0x358] sm:$0xff]
    %v278 = vld [vmem:[#allocation5 + $0x360] sm:$0xff]
    %v279 = vld [vmem:[#allocation5 + $0x368] sm:$0xff]
    %v280 = vld [vmem:[#allocation5 + $0x370] sm:$0xff]
    %v281 = vld [vmem:[#allocation5 + $0x378] sm:$0xff]
    %v282 = vld [vmem:[#allocation5 + $0x380] sm:$0xff]
    %v283 = vld [vmem:[#allocation5 + $0x388] sm:$0xff]
    %v284 = vld [vmem:[#allocation5 + $0x390] sm:$0xff]
    %v285 = vld [vmem:[#allocation5 + $0x398] sm:$0xff]
    %v286 = vld [vmem:[#allocation5 + $0x3a0] sm:$0xff]
    %v287 = vld [vmem:[#allocation5 + $0x3a8] sm:$0xff]
    %v288 = vld [vmem:[#allocation5 + $0x3b0] sm:$0xff]
    %v289 = vld [vmem:[#allocation5 + $0x3b8] sm:$0xff]
    %v290 = vld [vmem:[#allocation5 + $0x3c0] sm:$0xff]
    %v291 = vld [vmem:[#allocation5 + $0x3c8] sm:$0xff]
    %v292 = vld [vmem:[#allocation5 + $0x3d0] sm:$0xff]
    %v293 = vld [vmem:[#allocation5 + $0x3d8] sm:$0xff]
    %v294 = vld [vmem:[#allocation5 + $0x3e0] sm:$0xff]
    %v295 = vld [vmem:[#allocation5 + $0x3e8] sm:$0xff]
    %v296 = vld [vmem:[#allocation5 + $0x3f0] sm:$0xff]
    %v297 = vld [vmem:[#allocation5 + $0x3f8] sm:$0xff]
    %v298 = vld [vmem:[#allocation5 + $0x400] sm:$0xff]
    %v299 = vld [vmem:[#allocation5 + $0x408] sm:$0xff]
    %v300 = vld [vmem:[#allocation5 + $0x410] sm:$0xff]
    %v301 = vld [vmem:[#allocation5 + $0x418] sm:$0xff]
    %v302 = vld [vmem:[#allocation5 + $0x420] sm:$0xff]
    %v303 = vld [vmem:[#allocation5 + $0x428] sm:$0xff]
    %v304 = vld [vmem:[#allocation5 + $0x430] sm:$0xff]
    %v305 = vld [vmem:[#allocation5 + $0x438] sm:$0xff]
    %v306 = vld [vmem:[#allocation5 + $0x440] sm:$0xff]
    %v307 = vld [vmem:[#allocation5 + $0x448] sm:$0xff]
    %v308 = vld [vmem:[#allocation5 + $0x450] sm:$0xff]
    %v309 = vld [vmem:[#allocation5 + $0x458] sm:$0xff]
    %v310 = vld [vmem:[#allocation5 + $0x460] sm:$0xff]
    %v311 = vld [vmem:[#allocation5 + $0x468] sm:$0xff]
    %v312 = vld [vmem:[#allocation5 + $0x470] sm:$0xff]
    %v313 = vld [vmem:[#allocation5 + $0x478] sm:$0xff]
    %v314 = vld [vmem:[#allocation5 + $0x480] sm:$0xff]
    %v315 = vld [vmem:[#allocation5 + $0x488] sm:$0xff]
    %v316 = vld [vmem:[#allocation5 + $0x490] sm:$0xff]
    %v317 = vld [vmem:[#allocation5 + $0x498] sm:$0xff]
    %v318 = vld [vmem:[#allocation5 + $0x4a0] sm:$0xff]
    %v319 = vld [vmem:[#allocation5 + $0x4a8] sm:$0xff]
    %v320 = vld [vmem:[#allocation5 + $0x4b0] sm:$0xff]
    %v321 = vld [vmem:[#allocation5 + $0x4b8] sm:$0xff]
    %v322 = vld [vmem:[#allocation5 + $0x4c0] sm:$0xff]
    %v323 = vld [vmem:[#allocation5 + $0x4c8] sm:$0xff]
    %v324 = vld [vmem:[#allocation5 + $0x4d0] sm:$0xff]
    %v325 = vld [vmem:[#allocation5 + $0x4d8] sm:$0xff]
    %v326 = vld [vmem:[#allocation5 + $0x4e0] sm:$0xff]
    %v327 = vld [vmem:[#allocation5 + $0x4e8] sm:$0xff]
    %v328 = vld [vmem:[#allocation5 + $0x4f0] sm:$0xff]
    %v329 = vld [vmem:[#allocation5 + $0x4f8] sm:$0xff]
    %v330 = vld [vmem:[#allocation5 + $0x500] sm:$0xff]
    %v331 = vld [vmem:[#allocation5 + $0x508] sm:$0xff]
    %v332 = vld [vmem:[#allocation5 + $0x510] sm:$0xff]
    %v333 = vld [vmem:[#allocation5 + $0x518] sm:$0xff]
    %v334 = vld [vmem:[#allocation5 + $0x520] sm:$0xff]
    %v335 = vld [vmem:[#allocation5 + $0x528] sm:$0xff]
    %v336 = vld [vmem:[#allocation5 + $0x530] sm:$0xff]
    %v337 = vld [vmem:[#allocation5 + $0x538] sm:$0xff]
    %v338 = vld [vmem:[#allocation5 + $0x540] sm:$0xff]
    %v339 = vld [vmem:[#allocation5 + $0x548] sm:$0xff]
    %v340 = vld [vmem:[#allocation5 + $0x550] sm:$0xff]
    %v341 = vld [vmem:[#allocation5 + $0x558] sm:$0xff]
    %v342 = vld [vmem:[#allocation5 + $0x560] sm:$0xff]
    %v343 = vld [vmem:[#allocation5 + $0x568] sm:$0xff]
    %v344 = vld [vmem:[#allocation5 + $0x570] sm:$0xff]
    %v345 = vld [vmem:[#allocation5 + $0x578] sm:$0xff]
    %v346 = vld [vmem:[#allocation5 + $0x580] sm:$0xff]
    %v347 = vld [vmem:[#allocation5 + $0x588] sm:$0xff]
    %v348 = vld [vmem:[#allocation5 + $0x590] sm:$0xff]
    %v349 = vld [vmem:[#allocation5 + $0x598] sm:$0xff]
    %v350 = vld [vmem:[#allocation5 + $0x5a0] sm:$0xff]
    %v351 = vld [vmem:[#allocation5 + $0x5a8] sm:$0xff]
    %v352 = vld [vmem:[#allocation5 + $0x5b0] sm:$0xff]
    %v353 = vld [vmem:[#allocation5 + $0x5b8] sm:$0xff]
    %v354 = vld [vmem:[#allocation5 + $0x5c0] sm:$0xff]
    %v355 = vld [vmem:[#allocation5 + $0x5c8] sm:$0xff]
    %v356 = vld [vmem:[#allocation5 + $0x5d0] sm:$0xff]
    %v357 = vld [vmem:[#allocation5 + $0x5d8] sm:$0xff]
    %v358 = vld [vmem:[#allocation5 + $0x5e0] sm:$0xff]
    %v359 = vld [vmem:[#allocation5 + $0x5e8] sm:$0xff]
    %v360 = vld [vmem:[#allocation5 + $0x5f0] sm:$0xff]
    %v361 = vld [vmem:[#allocation5 + $0x5f8] sm:$0xff]
    %v362 = vld [vmem:[#allocation5 + $0x600] sm:$0xff]
    %v363 = vld [vmem:[#allocation5 + $0x608] sm:$0xff]
    %v364 = vld [vmem:[#allocation5 + $0x610] sm:$0xff]
    %v365 = vld [vmem:[#allocation5 + $0x618] sm:$0xff]
    %v366 = vld [vmem:[#allocation5 + $0x620] sm:$0xff]
    %v367 = vld [vmem:[#allocation5 + $0x628] sm:$0xff]
    %v368 = vld [vmem:[#allocation5 + $0x630] sm:$0xff]
    %v369 = vld [vmem:[#allocation5 + $0x638] sm:$0xff]
    %v370 = vld [vmem:[#allocation5 + $0x640] sm:$0xff]
    %v371 = vld [vmem:[#allocation5 + $0x648] sm:$0xff]
    %v372 = vld [vmem:[#allocation5 + $0x650] sm:$0xff]
    %v373 = vld [vmem:[#allocation5 + $0x658] sm:$0xff]
    %v374 = vld [vmem:[#allocation5 + $0x660] sm:$0xff]
    %v375 = vld [vmem:[#allocation5 + $0x668] sm:$0xff]
    %v376 = vld [vmem:[#allocation5 + $0x670] sm:$0xff]
    %v377 = vld [vmem:[#allocation5 + $0x678] sm:$0xff]
    %v378 = vld [vmem:[#allocation5 + $0x680] sm:$0xff]
    %v379 = vld [vmem:[#allocation5 + $0x688] sm:$0xff]
    %v380 = vld [vmem:[#allocation5 + $0x690] sm:$0xff]
    %v381 = vld [vmem:[#allocation5 + $0x698] sm:$0xff]
    %v382 = vld [vmem:[#allocation5 + $0x6a0] sm:$0xff]
    %v383 = vld [vmem:[#allocation5 + $0x6a8] sm:$0xff]
    %v384 = vld [vmem:[#allocation5 + $0x6b0] sm:$0xff]
    %v385 = vld [vmem:[#allocation5 + $0x6b8] sm:$0xff]
    %v386 = vld [vmem:[#allocation5 + $0x6c0] sm:$0xff]
    %v387 = vld [vmem:[#allocation5 + $0x6c8] sm:$0xff]
    %v388 = vld [vmem:[#allocation5 + $0x6d0] sm:$0xff]
    %v389 = vld [vmem:[#allocation5 + $0x6d8] sm:$0xff]
    %v390 = vld [vmem:[#allocation5 + $0x6e0] sm:$0xff]
    %v391 = vld [vmem:[#allocation5 + $0x6e8] sm:$0xff]
    %v392 = vld [vmem:[#allocation5 + $0x6f0] sm:$0xff]
    %v393 = vld [vmem:[#allocation5 + $0x6f8] sm:$0xff]
    %v394 = vld [vmem:[#allocation5 + $0x700] sm:$0xff]
    %v395 = vld [vmem:[#allocation5 + $0x708] sm:$0xff]
    %v396 = vld [vmem:[#allocation5 + $0x710] sm:$0xff]
    %v397 = vld [vmem:[#allocation5 + $0x718] sm:$0xff]
    %v398 = vld [vmem:[#allocation5 + $0x720] sm:$0xff]
    %v399 = vld [vmem:[#allocation5 + $0x728] sm:$0xff]
    %v400 = vld [vmem:[#allocation5 + $0x730] sm:$0xff]
    %v401 = vld [vmem:[#allocation5 + $0x738] sm:$0xff]
    %v402 = vld [vmem:[#allocation5 + $0x740] sm:$0xff]
    %v403 = vld [vmem:[#allocation5 + $0x748] sm:$0xff]
    %v404 = vld [vmem:[#allocation5 + $0x750] sm:$0xff]
    %v405 = vld [vmem:[#allocation5 + $0x758] sm:$0xff]
    %v406 = vld [vmem:[#allocation5 + $0x760] sm:$0xff]
    %v407 = vld [vmem:[#allocation5 + $0x768] sm:$0xff]
    %v408 = vld [vmem:[#allocation5 + $0x770] sm:$0xff]
    %v409 = vld [vmem:[#allocation5 + $0x778] sm:$0xff]
    %v410 = vld [vmem:[#allocation5 + $0x780] sm:$0xff]
    %v411 = vld [vmem:[#allocation5 + $0x788] sm:$0xff]
    %v412 = vld [vmem:[#allocation5 + $0x790] sm:$0xff]
    %v413 = vld [vmem:[#allocation5 + $0x798] sm:$0xff]
    %v414 = vld [vmem:[#allocation5 + $0x7a0] sm:$0xff]
    %v415 = vld [vmem:[#allocation5 + $0x7a8] sm:$0xff]
    %v416 = vld [vmem:[#allocation5 + $0x7b0] sm:$0xff]
    %v417 = vld [vmem:[#allocation5 + $0x7b8] sm:$0xff]
    %v418 = vld [vmem:[#allocation5 + $0x7c0] sm:$0xff]
    %v419 = vld [vmem:[#allocation5 + $0x7c8] sm:$0xff]
    %v420 = vld [vmem:[#allocation5 + $0x7d0] sm:$0xff]
    %v421 = vld [vmem:[#allocation5 + $0x7d8] sm:$0xff]
    %v422 = vld [vmem:[#allocation5 + $0x7e0] sm:$0xff]
    %v423 = vld [vmem:[#allocation5 + $0x7e8] sm:$0xff]
    %v424 = vld [vmem:[#allocation5 + $0x7f0] sm:$0xff]
    %v425 = vld [vmem:[#allocation5 + $0x7f8] sm:$0xff]
    %v426 = vld [vmem:[#allocation5 + $0x800] sm:$0xff]
    %v427 = vld [vmem:[#allocation5 + $0x808] sm:$0xff]
    %v428 = vld [vmem:[#allocation5 + $0x810] sm:$0xff]
    %v429 = vld [vmem:[#allocation5 + $0x818] sm:$0xff]
    %v430 = vld [vmem:[#allocation5 + $0x820] sm:$0xff]
    %v431 = vld [vmem:[#allocation5 + $0x828] sm:$0xff]
    %v432 = vld [vmem:[#allocation5 + $0x830] sm:$0xff]
    %v433 = vld [vmem:[#allocation5 + $0x838] sm:$0xff]
    %v434 = vld [vmem:[#allocation5 + $0x840] sm:$0xff]
    %v435 = vld [vmem:[#allocation5 + $0x848] sm:$0xff]
    %v436 = vld [vmem:[#allocation5 + $0x850] sm:$0xff]
    %v437 = vld [vmem:[#allocation5 + $0x858] sm:$0xff]
    %v438 = vld [vmem:[#allocation5 + $0x860] sm:$0xff]
    %v439 = vld [vmem:[#allocation5 + $0x868] sm:$0xff]
    %v440 = vld [vmem:[#allocation5 + $0x870] sm:$0xff]
    %v441 = vld [vmem:[#allocation5 + $0x878] sm:$0xff]
    %v442 = vld [vmem:[#allocation5 + $0x880] sm:$0xff]
    %v443 = vld [vmem:[#allocation5 + $0x888] sm:$0xff]
    %v444 = vld [vmem:[#allocation5 + $0x890] sm:$0xff]
    %v445 = vld [vmem:[#allocation5 + $0x898] sm:$0xff]
    %v446 = vld [vmem:[#allocation5 + $0x8a0] sm:$0xff]
    %v447 = vld [vmem:[#allocation5 + $0x8a8] sm:$0xff]
    %v448 = vld [vmem:[#allocation5 + $0x8b0] sm:$0xff]
    %v449 = vld [vmem:[#allocation5 + $0x8b8] sm:$0xff]
    %v450 = vld [vmem:[#allocation5 + $0x8c0] sm:$0xff]
    %v451 = vld [vmem:[#allocation5 + $0x8c8] sm:$0xff]
    %v452 = vld [vmem:[#allocation5 + $0x8d0] sm:$0xff]
    %v453 = vld [vmem:[#allocation5 + $0x8d8] sm:$0xff]
    %v454 = vld [vmem:[#allocation5 + $0x8e0] sm:$0xff]
    %v455 = vld [vmem:[#allocation5 + $0x8e8] sm:$0xff]
    %v456 = vld [vmem:[#allocation5 + $0x8f0] sm:$0xff]
    %v457 = vld [vmem:[#allocation5 + $0x8f8] sm:$0xff]
    %v458 = vld [vmem:[#allocation5 + $0x900] sm:$0xff]
    %v459 = vld [vmem:[#allocation5 + $0x908] sm:$0xff]
    %v460 = vld [vmem:[#allocation5 + $0x910] sm:$0xff]
    %v461 = vld [vmem:[#allocation5 + $0x918] sm:$0xff]
    %v462 = vld [vmem:[#allocation5 + $0x920] sm:$0xff]
    %v463 = vld [vmem:[#allocation5 + $0x928] sm:$0xff]
    %v464 = vld [vmem:[#allocation5 + $0x930] sm:$0xff]
    %v465 = vld [vmem:[#allocation5 + $0x938] sm:$0xff]
    %v466 = vld [vmem:[#allocation5 + $0x940] sm:$0xff]
    %v467 = vld [vmem:[#allocation5 + $0x948] sm:$0xff]
    %v468 = vld [vmem:[#allocation5 + $0x950] sm:$0xff]
    %v469 = vld [vmem:[#allocation5 + $0x958] sm:$0xff]
    %v470 = vld [vmem:[#allocation5 + $0x960] sm:$0xff]
    %v471 = vld [vmem:[#allocation5 + $0x968] sm:$0xff]
    %v472 = vld [vmem:[#allocation5 + $0x970] sm:$0xff]
    %v473 = vld [vmem:[#allocation5 + $0x978] sm:$0xff]
    %v474 = vld [vmem:[#allocation5 + $0x980] sm:$0xff]
    %v475 = vld [vmem:[#allocation5 + $0x988] sm:$0xff]
    %v476 = vld [vmem:[#allocation5 + $0x990] sm:$0xff]
    %v477 = vld [vmem:[#allocation5 + $0x998] sm:$0xff]
    %v478 = vld [vmem:[#allocation5 + $0x9a0] sm:$0xff]
    %v479 = vld [vmem:[#allocation5 + $0x9a8] sm:$0xff]
    %v480 = vld [vmem:[#allocation5 + $0x9b0] sm:$0xff]
    %v481 = vld [vmem:[#allocation5 + $0x9b8] sm:$0xff]
    %v482 = vld [vmem:[#allocation5 + $0x9c0] sm:$0xff]
    %v483 = vld [vmem:[#allocation5 + $0x9c8] sm:$0xff]
    %v484 = vld [vmem:[#allocation5 + $0x9d0] sm:$0xff]
    %v485 = vld [vmem:[#allocation5 + $0x9d8] sm:$0xff]
    %v486 = vld [vmem:[#allocation5 + $0x9e0] sm:$0xff]
    %v487 = vld [vmem:[#allocation5 + $0x9e8] sm:$0xff]
    %v488 = vld [vmem:[#allocation5 + $0x9f0] sm:$0xff]
    %v489 = vld [vmem:[#allocation5 + $0x9f8] sm:$0xff]
    %v490 = vld [vmem:[#allocation5 + $0xa00] sm:$0xff]
    %v491 = vld [vmem:[#allocation5 + $0xa08] sm:$0xff]
    %v492 = vld [vmem:[#allocation5 + $0xa10] sm:$0xff]
    %v493 = vld [vmem:[#allocation5 + $0xa18] sm:$0xff]
    %v494 = vld [vmem:[#allocation5 + $0xa20] sm:$0xff]
    %v495 = vld [vmem:[#allocation5 + $0xa28] sm:$0xff]
    %v496 = vld [vmem:[#allocation5 + $0xa30] sm:$0xff]
    %v497 = vld [vmem:[#allocation5 + $0xa38] sm:$0xff]
    %v498 = vld [vmem:[#allocation5 + $0xa40] sm:$0xff]
    %v499 = vld [vmem:[#allocation5 + $0xa48] sm:$0xff]
    %v500 = vld [vmem:[#allocation5 + $0xa50] sm:$0xff]
    %v501 = vld [vmem:[#allocation5 + $0xa58] sm:$0xff]
    %v502 = vld [vmem:[#allocation5 + $0xa60] sm:$0xff]
    %v503 = vld [vmem:[#allocation5 + $0xa68] sm:$0xff]
    %v504 = vld [vmem:[#allocation5 + $0xa70] sm:$0xff]
    %v505 = vld [vmem:[#allocation5 + $0xa78] sm:$0xff]
    %v506 = vunpack.c.0.s8 %v128
    %v507 = vunpack.c.0.s8 %v129
    %v508 = vunpack.c.0.s8 %v130
    %v509 = vunpack.c.0.s8 %v131
    %v510 = vunpack.c.0.s8 %v132
    %v511 = vunpack.c.0.s8 %v133
    %v512 = vunpack.c.0.s8 %v134
    %v513 = vunpack.c.0.s8 %v135
    %v514 = vunpack.c.0.s8 %v136
    %v515 = vunpack.c.0.s8 %v137
    %v516 = vunpack.c.0.s8 %v138
    %v517 = vunpack.c.0.s8 %v139
    %v518 = vunpack.c.0.s8 %v140
    %v519 = vunpack.c.0.s8 %v141
    %v520 = vunpack.c.0.s8 %v142
    %v521 = vunpack.c.0.s8 %v143
    %v522 = vunpack.c.0.s8 %v144
    %v523 = vunpack.c.0.s8 %v145
    %v524 = vunpack.c.0.s8 %v146
    %v525 = vunpack.c.0.s8 %v147
    %v526 = vunpack.c.0.s8 %v148
    %v527 = vunpack.c.0.s8 %v149
    %v528 = vunpack.c.0.s8 %v150
    %v529 = vunpack.c.0.s8 %v151
    %v530 = vunpack.c.0.s8 %v152
    %v531 = vunpack.c.0.s8 %v153
    %v532 = vunpack.c.0.s8 %v154
    %v533 = vunpack.c.0.s8 %v155
    %v534 = vunpack.c.0.s8 %v156
    %v535 = vunpack.c.0.s8 %v157
    %v536 = vunpack.c.0.s8 %v158
    %v537 = vunpack.c.0.s8 %v159
    %v538 = vunpack.c.0.s8 %v160
    %v539 = vunpack.c.0.s8 %v161
    %v540 = vunpack.c.0.s8 %v162
    %v541 = vunpack.c.0.s8 %v163
    %v542 = vunpack.c.0.s8 %v164
    %v543 = vunpack.c.0.s8 %v165
    %v544 = vunpack.c.0.s8 %v166
    %v545 = vunpack.c.0.s8 %v167
    %v546 = vunpack.c.0.s8 %v168
    %v547 = vunpack.c.0.s8 %v169
    %v548 = vunpack.c.1.s8 %v128
    %v549 = vunpack.c.1.s8 %v129
    %v550 = vunpack.c.1.s8 %v130
    %v551 = vunpack.c.1.s8 %v131
    %v552 = vunpack.c.1.s8 %v132
    %v553 = vunpack.c.1.s8 %v133
    %v554 = vunpack.c.1.s8 %v134
    %v555 = vunpack.c.1.s8 %v135
    %v556 = vunpack.c.1.s8 %v136
    %v557 = vunpack.c.1.s8 %v137
    %v558 = vunpack.c.1.s8 %v138
    %v559 = vunpack.c.1.s8 %v139
    %v560 = vunpack.c.1.s8 %v140
    %v561 = vunpack.c.1.s8 %v141
    %v562 = vunpack.c.1.s8 %v142
    %v563 = vunpack.c.1.s8 %v143
    %v564 = vunpack.c.1.s8 %v144
    %v565 = vunpack.c.1.s8 %v145
    %v566 = vunpack.c.1.s8 %v146
    %v567 = vunpack.c.1.s8 %v147
    %v568 = vunpack.c.1.s8 %v148
    %v569 = vunpack.c.1.s8 %v149
    %v570 = vunpack.c.1.s8 %v150
    %v571 = vunpack.c.1.s8 %v151
    %v572 = vunpack.c.1.s8 %v152
    %v573 = vunpack.c.1.s8 %v153
    %v574 = vunpack.c.1.s8 %v154
    %v575 = vunpack.c.1.s8 %v155
    %v576 = vunpack.c.1.s8 %v156
    %v577 = vunpack.c.1.s8 %v157
    %v578 = vunpack.c.1.s8 %v158
    %v579 = vunpack.c.1.s8 %v159
    %v580 = vunpack.c.1.s8 %v160
    %v581 = vunpack.c.1.s8 %v161
    %v582 = vunpack.c.1.s8 %v162
    %v583 = vunpack.c.1.s8 %v163
    %v584 = vunpack.c.1.s8 %v164
    %v585 = vunpack.c.1.s8 %v165
    %v586 = vunpack.c.1.s8 %v166
    %v587 = vunpack.c.1.s8 %v167
    %v588 = vunpack.c.1.s8 %v168
    %v589 = vunpack.c.1.s8 %v169
    %v590 = vunpack.c.2.s8 %v128
    %v591 = vunpack.c.2.s8 %v129
    %v592 = vunpack.c.2.s8 %v130
    %v593 = vunpack.c.2.s8 %v131
    %v594 = vunpack.c.2.s8 %v132
    %v595 = vunpack.c.2.s8 %v133
    %v596 = vunpack.c.2.s8 %v134
    %v597 = vunpack.c.2.s8 %v135
    %v598 = vunpack.c.2.s8 %v136
    %v599 = vunpack.c.2.s8 %v137
    %v600 = vunpack.c.2.s8 %v138
    %v601 = vunpack.c.2.s8 %v139
    %v602 = vunpack.c.2.s8 %v140
    %v603 = vunpack.c.2.s8 %v141
    %v604 = vunpack.c.2.s8 %v142
    %v605 = vunpack.c.2.s8 %v143
    %v606 = vunpack.c.2.s8 %v144
    %v607 = vunpack.c.2.s8 %v145
    %v608 = vunpack.c.2.s8 %v146
    %v609 = vunpack.c.2.s8 %v147
    %v610 = vunpack.c.2.s8 %v148
    %v611 = vunpack.c.2.s8 %v149
    %v612 = vunpack.c.2.s8 %v150
    %v613 = vunpack.c.2.s8 %v151
    %v614 = vunpack.c.2.s8 %v152
    %v615 = vunpack.c.2.s8 %v153
    %v616 = vunpack.c.2.s8 %v154
    %v617 = vunpack.c.2.s8 %v155
    %v618 = vunpack.c.2.s8 %v156
    %v619 = vunpack.c.2.s8 %v157
    %v620 = vunpack.c.2.s8 %v158
    %v621 = vunpack.c.2.s8 %v159
    %v622 = vunpack.c.2.s8 %v160
    %v623 = vunpack.c.2.s8 %v161
    %v624 = vunpack.c.2.s8 %v162
    %v625 = vunpack.c.2.s8 %v163
    %v626 = vunpack.c.2.s8 %v164
    %v627 = vunpack.c.2.s8 %v165
    %v628 = vunpack.c.2.s8 %v166
    %v629 = vunpack.c.2.s8 %v167
    %v630 = vunpack.c.2.s8 %v168
    %v631 = vunpack.c.2.s8 %v169
    %v632 = vunpack.c.3.s8 %v128
    %v633 = vunpack.c.3.s8 %v129
    %v634 = vunpack.c.3.s8 %v130
    %v635 = vunpack.c.3.s8 %v131
    %v636 = vunpack.c.3.s8 %v132
    %v637 = vunpack.c.3.s8 %v133
    %v638 = vunpack.c.3.s8 %v134
    %v639 = vunpack.c.3.s8 %v135
    %v640 = vunpack.c.3.s8 %v136
    %v641 = vunpack.c.3.s8 %v137
    %v642 = vunpack.c.3.s8 %v138
    %v643 = vunpack.c.3.s8 %v139
    %v644 = vunpack.c.3.s8 %v140
    %v645 = vunpack.c.3.s8 %v141
    %v646 = vunpack.c.3.s8 %v142
    %v647 = vunpack.c.3.s8 %v143
    %v648 = vunpack.c.3.s8 %v144
    %v649 = vunpack.c.3.s8 %v145
    %v650 = vunpack.c.3.s8 %v146
    %v651 = vunpack.c.3.s8 %v147
    %v652 = vunpack.c.3.s8 %v148
    %v653 = vunpack.c.3.s8 %v149
    %v654 = vunpack.c.3.s8 %v150
    %v655 = vunpack.c.3.s8 %v151
    %v656 = vunpack.c.3.s8 %v152
    %v657 = vunpack.c.3.s8 %v153
    %v658 = vunpack.c.3.s8 %v154
    %v659 = vunpack.c.3.s8 %v155
    %v660 = vunpack.c.3.s8 %v156
    %v661 = vunpack.c.3.s8 %v157
    %v662 = vunpack.c.3.s8 %v158
    %v663 = vunpack.c.3.s8 %v159
    %v664 = vunpack.c.3.s8 %v160
    %v665 = vunpack.c.3.s8 %v161
    %v666 = vunpack.c.3.s8 %v162
    %v667 = vunpack.c.3.s8 %v163
    %v668 = vunpack.c.3.s8 %v164
    %v669 = vunpack.c.3.s8 %v165
    %v670 = vunpack.c.3.s8 %v166
    %v671 = vunpack.c.3.s8 %v167
    %v672 = vunpack.c.3.s8 %v168
    %v673 = vunpack.c.3.s8 %v169
    %v674 = vcvt.s32.f32 %v506
    %v675 = vcvt.s32.f32 %v507
    %v676 = vcvt.s32.f32 %v508
    %v677 = vcvt.s32.f32 %v509
    %v678 = vcvt.s32.f32 %v510
    %v679 = vcvt.s32.f32 %v511
    %v680 = vcvt.s32.f32 %v512
    %v681 = vcvt.s32.f32 %v513
    %v682 = vcvt.s32.f32 %v514
    %v683 = vcvt.s32.f32 %v515
    %v684 = vcvt.s32.f32 %v516
    %v685 = vcvt.s32.f32 %v517
    %v686 = vcvt.s32.f32 %v518
    %v687 = vcvt.s32.f32 %v519
    %v688 = vcvt.s32.f32 %v520
    %v689 = vcvt.s32.f32 %v521
    %v690 = vcvt.s32.f32 %v522
    %v691 = vcvt.s32.f32 %v523
    %v692 = vcvt.s32.f32 %v524
    %v693 = vcvt.s32.f32 %v525
    %v694 = vcvt.s32.f32 %v526
    %v695 = vcvt.s32.f32 %v527
    %v696 = vcvt.s32.f32 %v528
    %v697 = vcvt.s32.f32 %v529
    %v698 = vcvt.s32.f32 %v530
    %v699 = vcvt.s32.f32 %v531
    %v700 = vcvt.s32.f32 %v532
    %v701 = vcvt.s32.f32 %v533
    %v702 = vcvt.s32.f32 %v534
    %v703 = vcvt.s32.f32 %v535
    %v704 = vcvt.s32.f32 %v536
    %v705 = vcvt.s32.f32 %v537
    %v706 = vcvt.s32.f32 %v538
    %v707 = vcvt.s32.f32 %v539
    %v708 = vcvt.s32.f32 %v540
    %v709 = vcvt.s32.f32 %v541
    %v710 = vcvt.s32.f32 %v542
    %v711 = vcvt.s32.f32 %v543
    %v712 = vcvt.s32.f32 %v544
    %v713 = vcvt.s32.f32 %v545
    %v714 = vcvt.s32.f32 %v546
    %v715 = vcvt.s32.f32 %v547
    %v716 = vcvt.s32.f32 %v548
    %v717 = vcvt.s32.f32 %v549
    %v718 = vcvt.s32.f32 %v550
    %v719 = vcvt.s32.f32 %v551
    %v720 = vcvt.s32.f32 %v552
    %v721 = vcvt.s32.f32 %v553
    %v722 = vcvt.s32.f32 %v554
    %v723 = vcvt.s32.f32 %v555
    %v724 = vcvt.s32.f32 %v556
    %v725 = vcvt.s32.f32 %v557
    %v726 = vcvt.s32.f32 %v558
    %v727 = vcvt.s32.f32 %v559
    %v728 = vcvt.s32.f32 %v560
    %v729 = vcvt.s32.f32 %v561
    %v730 = vcvt.s32.f32 %v562
    %v731 = vcvt.s32.f32 %v563
    %v732 = vcvt.s32.f32 %v564
    %v733 = vcvt.s32.f32 %v565
    %v734 = vcvt.s32.f32 %v566
    %v735 = vcvt.s32.f32 %v567
    %v736 = vcvt.s32.f32 %v568
    %v737 = vcvt.s32.f32 %v569
    %v738 = vcvt.s32.f32 %v570
    %v739 = vcvt.s32.f32 %v571
    %v740 = vcvt.s32.f32 %v572
    %v741 = vcvt.s32.f32 %v573
    %v742 = vcvt.s32.f32 %v574
    %v743 = vcvt.s32.f32 %v575
    %v744 = vcvt.s32.f32 %v576
    %v745 = vcvt.s32.f32 %v577
    %v746 = vcvt.s32.f32 %v578
    %v747 = vcvt.s32.f32 %v579
    %v748 = vcvt.s32.f32 %v580
    %v749 = vcvt.s32.f32 %v581
    %v750 = vcvt.s32.f32 %v582
    %v751 = vcvt.s32.f32 %v583
    %v752 = vcvt.s32.f32 %v584
    %v753 = vcvt.s32.f32 %v585
    %v754 = vcvt.s32.f32 %v586
    %v755 = vcvt.s32.f32 %v587
    %v756 = vcvt.s32.f32 %v588
    %v757 = vcvt.s32.f32 %v589
    %v758 = vcvt.s32.f32 %v590
    %v759 = vcvt.s32.f32 %v591
    %v760 = vcvt.s32.f32 %v592
    %v761 = vcvt.s32.f32 %v593
    %v762 = vcvt.s32.f32 %v594
    %v763 = vcvt.s32.f32 %v595
    %v764 = vcvt.s32.f32 %v596
    %v765 = vcvt.s32.f32 %v597
    %v766 = vcvt.s32.f32 %v598
    %v767 = vcvt.s32.f32 %v599
    %v768 = vcvt.s32.f32 %v600
    %v769 = vcvt.s32.f32 %v601
    %v770 = vcvt.s32.f32 %v602
    %v771 = vcvt.s32.f32 %v603
    %v772 = vcvt.s32.f32 %v604
    %v773 = vcvt.s32.f32 %v605
    %v774 = vcvt.s32.f32 %v606
    %v775 = vcvt.s32.f32 %v607
    %v776 = vcvt.s32.f32 %v608
    %v777 = vcvt.s32.f32 %v609
    %v778 = vcvt.s32.f32 %v610
    %v779 = vcvt.s32.f32 %v611
    %v780 = vcvt.s32.f32 %v612
    %v781 = vcvt.s32.f32 %v613
    %v782 = vcvt.s32.f32 %v614
    %v783 = vcvt.s32.f32 %v615
    %v784 = vcvt.s32.f32 %v616
    %v785 = vcvt.s32.f32 %v617
    %v786 = vcvt.s32.f32 %v618
    %v787 = vcvt.s32.f32 %v619
    %v788 = vcvt.s32.f32 %v620
    %v789 = vcvt.s32.f32 %v621
    %v790 = vcvt.s32.f32 %v622
    %v791 = vcvt.s32.f32 %v623
    %v792 = vcvt.s32.f32 %v624
    %v793 = vcvt.s32.f32 %v625
    %v794 = vcvt.s32.f32 %v626
    %v795 = vcvt.s32.f32 %v627
    %v796 = vcvt.s32.f32 %v628
    %v797 = vcvt.s32.f32 %v629
    %v798 = vcvt.s32.f32 %v630
    %v799 = vcvt.s32.f32 %v631
    %v800 = vcvt.s32.f32 %v632
    %v801 = vcvt.s32.f32 %v633
    %v802 = vcvt.s32.f32 %v634
    %v803 = vcvt.s32.f32 %v635
    %v804 = vcvt.s32.f32 %v636
    %v805 = vcvt.s32.f32 %v637
    %v806 = vcvt.s32.f32 %v638
    %v807 = vcvt.s32.f32 %v639
    %v808 = vcvt.s32.f32 %v640
    %v809 = vcvt.s32.f32 %v641
    %v810 = vcvt.s32.f32 %v642
    %v811 = vcvt.s32.f32 %v643
    %v812 = vcvt.s32.f32 %v644
    %v813 = vcvt.s32.f32 %v645
    %v814 = vcvt.s32.f32 %v646
    %v815 = vcvt.s32.f32 %v647
    %v816 = vcvt.s32.f32 %v648
    %v817 = vcvt.s32.f32 %v649
    %v818 = vcvt.s32.f32 %v650
    %v819 = vcvt.s32.f32 %v651
    %v820 = vcvt.s32.f32 %v652
    %v821 = vcvt.s32.f32 %v653
    %v822 = vcvt.s32.f32 %v654
    %v823 = vcvt.s32.f32 %v655
    %v824 = vcvt.s32.f32 %v656
    %v825 = vcvt.s32.f32 %v657
    %v826 = vcvt.s32.f32 %v658
    %v827 = vcvt.s32.f32 %v659
    %v828 = vcvt.s32.f32 %v660
    %v829 = vcvt.s32.f32 %v661
    %v830 = vcvt.s32.f32 %v662
    %v831 = vcvt.s32.f32 %v663
    %v832 = vcvt.s32.f32 %v664
    %v833 = vcvt.s32.f32 %v665
    %v834 = vcvt.s32.f32 %v666
    %v835 = vcvt.s32.f32 %v667
    %v836 = vcvt.s32.f32 %v668
    %v837 = vcvt.s32.f32 %v669
    %v838 = vcvt.s32.f32 %v670
    %v839 = vcvt.s32.f32 %v671
    %v840 = vcvt.s32.f32 %v672
    %v841 = vcvt.s32.f32 %v673
    %v842 = vpack.c.bf16 %v716, %v674
    %v843 = vpack.c.bf16 %v717, %v675
    %v844 = vpack.c.bf16 %v718, %v676
    %v845 = vpack.c.bf16 %v719, %v677
    %v846 = vpack.c.bf16 %v720, %v678
    %v847 = vpack.c.bf16 %v721, %v679
    %v848 = vpack.c.bf16 %v722, %v680
    %v849 = vpack.c.bf16 %v723, %v681
    %v850 = vpack.c.bf16 %v724, %v682
    %v851 = vpack.c.bf16 %v725, %v683
    %v852 = vpack.c.bf16 %v726, %v684
    %v853 = vpack.c.bf16 %v727, %v685
    %v854 = vpack.c.bf16 %v728, %v686
    %v855 = vpack.c.bf16 %v729, %v687
    %v856 = vpack.c.bf16 %v730, %v688
    %v857 = vpack.c.bf16 %v731, %v689
    %v858 = vpack.c.bf16 %v732, %v690
    %v859 = vpack.c.bf16 %v733, %v691
    %v860 = vpack.c.bf16 %v734, %v692
    %v861 = vpack.c.bf16 %v735, %v693
    %v862 = vpack.c.bf16 %v736, %v694
    %v863 = vpack.c.bf16 %v737, %v695
    %v864 = vpack.c.bf16 %v738, %v696
    %v865 = vpack.c.bf16 %v739, %v697
    %v866 = vpack.c.bf16 %v740, %v698
    %v867 = vpack.c.bf16 %v741, %v699
    %v868 = vpack.c.bf16 %v742, %v700
    %v869 = vpack.c.bf16 %v743, %v701
    %v870 = vpack.c.bf16 %v744, %v702
    %v871 = vpack.c.bf16 %v745, %v703
    %v872 = vpack.c.bf16 %v746, %v704
    %v873 = vpack.c.bf16 %v747, %v705
    %v874 = vpack.c.bf16 %v748, %v706
    %v875 = vpack.c.bf16 %v749, %v707
    %v876 = vpack.c.bf16 %v750, %v708
    %v877 = vpack.c.bf16 %v751, %v709
    %v878 = vpack.c.bf16 %v752, %v710
    %v879 = vpack.c.bf16 %v753, %v711
    %v880 = vpack.c.bf16 %v754, %v712
    %v881 = vpack.c.bf16 %v755, %v713
    %v882 = vpack.c.bf16 %v756, %v714
    %v883 = vpack.c.bf16 %v757, %v715
    %v884 = vpack.c.bf16 %v800, %v758
    %v885 = vpack.c.bf16 %v801, %v759
    %v886 = vpack.c.bf16 %v802, %v760
    %v887 = vpack.c.bf16 %v803, %v761
    %v888 = vpack.c.bf16 %v804, %v762
    %v889 = vpack.c.bf16 %v805, %v763
    %v890 = vpack.c.bf16 %v806, %v764
    %v891 = vpack.c.bf16 %v807, %v765
    %v892 = vpack.c.bf16 %v808, %v766
    %v893 = vpack.c.bf16 %v809, %v767
    %v894 = vpack.c.bf16 %v810, %v768
    %v895 = vpack.c.bf16 %v811, %v769
    %v896 = vpack.c.bf16 %v812, %v770
    %v897 = vpack.c.bf16 %v813, %v771
    %v898 = vpack.c.bf16 %v814, %v772
    %v899 = vpack.c.bf16 %v815, %v773
    %v900 = vpack.c.bf16 %v816, %v774
    %v901 = vpack.c.bf16 %v817, %v775
    %v902 = vpack.c.bf16 %v818, %v776
    %v903 = vpack.c.bf16 %v819, %v777
    %v904 = vpack.c.bf16 %v820, %v778
    %v905 = vpack.c.bf16 %v821, %v779
    %v906 = vpack.c.bf16 %v822, %v780
    %v907 = vpack.c.bf16 %v823, %v781
    %v908 = vpack.c.bf16 %v824, %v782
    %v909 = vpack.c.bf16 %v825, %v783
    %v910 = vpack.c.bf16 %v826, %v784
    %v911 = vpack.c.bf16 %v827, %v785
    %v912 = vpack.c.bf16 %v828, %v786
    %v913 = vpack.c.bf16 %v829, %v787
    %v914 = vpack.c.bf16 %v830, %v788
    %v915 = vpack.c.bf16 %v831, %v789
    %v916 = vpack.c.bf16 %v832, %v790
    %v917 = vpack.c.bf16 %v833, %v791
    %v918 = vpack.c.bf16 %v834, %v792
    %v919 = vpack.c.bf16 %v835, %v793
    %v920 = vpack.c.bf16 %v836, %v794
    %v921 = vpack.c.bf16 %v837, %v795
    %v922 = vpack.c.bf16 %v838, %v796
    %v923 = vpack.c.bf16 %v839, %v797
    %v924 = vpack.c.bf16 %v840, %v798
    %v925 = vpack.c.bf16 %v841, %v799
    %v926 = vunpack.c.0.s8 %v170
    %v927 = vunpack.c.0.s8 %v171
    %v928 = vunpack.c.1.s8 %v170
    %v929 = vunpack.c.1.s8 %v171
    %v930 = vunpack.c.2.s8 %v170
    %v931 = vunpack.c.2.s8 %v171
    %v932 = vunpack.c.3.s8 %v170
    %v933 = vunpack.c.3.s8 %v171
    %v934 = vunpack.c.0.s8 %v172
    %v935 = vunpack.c.0.s8 %v173
    %v936 = vunpack.c.1.s8 %v172
    %v937 = vunpack.c.1.s8 %v173
    %v938 = vunpack.c.2.s8 %v172
    %v939 = vunpack.c.2.s8 %v173
    %v940 = vunpack.c.3.s8 %v172
    %v941 = vunpack.c.3.s8 %v173
    %v942 = vunpack.c.0.s8 %v174
    %v943 = vunpack.c.0.s8 %v175
    %v944 = vunpack.c.1.s8 %v174
    %v945 = vunpack.c.1.s8 %v175
    %v946 = vunpack.c.2.s8 %v174
    %v947 = vunpack.c.2.s8 %v175
    %v948 = vunpack.c.3.s8 %v174
    %v949 = vunpack.c.3.s8 %v175
    %v950 = vunpack.c.0.s8 %v176
    %v951 = vunpack.c.0.s8 %v177
    %v952 = vunpack.c.1.s8 %v176
    %v953 = vunpack.c.1.s8 %v177
    %v954 = vunpack.c.2.s8 %v176
    %v955 = vunpack.c.2.s8 %v177
    %v956 = vunpack.c.3.s8 %v176
    %v957 = vunpack.c.3.s8 %v177
    %v958 = vunpack.c.0.s8 %v178
    %v959 = vunpack.c.0.s8 %v179
    %v960 = vunpack.c.1.s8 %v178
    %v961 = vunpack.c.1.s8 %v179
    %v962 = vunpack.c.2.s8 %v178
    %v963 = vunpack.c.2.s8 %v179
    %v964 = vunpack.c.3.s8 %v178
    %v965 = vunpack.c.3.s8 %v179
    %v966 = vunpack.c.0.s8 %v180
    %v967 = vunpack.c.0.s8 %v181
    %v968 = vunpack.c.1.s8 %v180
    %v969 = vunpack.c.1.s8 %v181
    %v970 = vunpack.c.2.s8 %v180
    %v971 = vunpack.c.2.s8 %v181
    %v972 = vunpack.c.3.s8 %v180
    %v973 = vunpack.c.3.s8 %v181
    %v974 = vunpack.c.0.s8 %v182
    %v975 = vunpack.c.0.s8 %v183
    %v976 = vunpack.c.1.s8 %v182
    %v977 = vunpack.c.1.s8 %v183
    %v978 = vunpack.c.2.s8 %v182
    %v979 = vunpack.c.2.s8 %v183
    %v980 = vunpack.c.3.s8 %v182
    %v981 = vunpack.c.3.s8 %v183
    %v982 = vunpack.c.0.s8 %v184
    %v983 = vunpack.c.0.s8 %v185
    %v984 = vunpack.c.1.s8 %v184
    %v985 = vunpack.c.1.s8 %v185
    %v986 = vunpack.c.2.s8 %v184
    %v987 = vunpack.c.2.s8 %v185
    %v988 = vunpack.c.3.s8 %v184
    %v989 = vunpack.c.3.s8 %v185
    %v990 = vunpack.c.0.s8 %v186
    %v991 = vunpack.c.0.s8 %v187
    %v992 = vunpack.c.1.s8 %v186
    %v993 = vunpack.c.1.s8 %v187
    %v994 = vunpack.c.2.s8 %v186
    %v995 = vunpack.c.2.s8 %v187
    %v996 = vunpack.c.3.s8 %v186
    %v997 = vunpack.c.3.s8 %v187
    %v998 = vunpack.c.0.s8 %v188
    %v999 = vunpack.c.0.s8 %v189
    %v1000 = vunpack.c.1.s8 %v188
    %v1001 = vunpack.c.1.s8 %v189
    %v1002 = vunpack.c.2.s8 %v188
    %v1003 = vunpack.c.2.s8 %v189
    %v1004 = vunpack.c.3.s8 %v188
    %v1005 = vunpack.c.3.s8 %v189
    %v1006 = vunpack.c.0.s8 %v190
    %v1007 = vunpack.c.0.s8 %v191
    %v1008 = vunpack.c.1.s8 %v190
    %v1009 = vunpack.c.1.s8 %v191
    %v1010 = vunpack.c.2.s8 %v190
    %v1011 = vunpack.c.2.s8 %v191
    %v1012 = vunpack.c.3.s8 %v190
    %v1013 = vunpack.c.3.s8 %v191
    %v1014 = vunpack.c.0.s8 %v192
    %v1015 = vunpack.c.0.s8 %v193
    %v1016 = vunpack.c.1.s8 %v192
    %v1017 = vunpack.c.1.s8 %v193
    %v1018 = vunpack.c.2.s8 %v192
    %v1019 = vunpack.c.2.s8 %v193
    %v1020 = vunpack.c.3.s8 %v192
    %v1021 = vunpack.c.3.s8 %v193
    %v1022 = vunpack.c.0.s8 %v194
    %v1023 = vunpack.c.0.s8 %v195
    %v1024 = vunpack.c.1.s8 %v194
    %v1025 = vunpack.c.1.s8 %v195
    %v1026 = vunpack.c.2.s8 %v194
    %v1027 = vunpack.c.2.s8 %v195
    %v1028 = vunpack.c.3.s8 %v194
    %v1029 = vunpack.c.3.s8 %v195
    %v1030 = vunpack.c.0.s8 %v196
    %v1031 = vunpack.c.0.s8 %v197
    %v1032 = vunpack.c.1.s8 %v196
    %v1033 = vunpack.c.1.s8 %v197
    %v1034 = vunpack.c.2.s8 %v196
    %v1035 = vunpack.c.2.s8 %v197
    %v1036 = vunpack.c.3.s8 %v196
    %v1037 = vunpack.c.3.s8 %v197
    %v1038 = vunpack.c.0.s8 %v198
    %v1039 = vunpack.c.0.s8 %v199
    %v1040 = vunpack.c.1.s8 %v198
    %v1041 = vunpack.c.1.s8 %v199
    %v1042 = vunpack.c.2.s8 %v198
    %v1043 = vunpack.c.2.s8 %v199
    %v1044 = vunpack.c.3.s8 %v198
    %v1045 = vunpack.c.3.s8 %v199
    %v1046 = vunpack.c.0.s8 %v200
    %v1047 = vunpack.c.0.s8 %v201
    %v1048 = vunpack.c.1.s8 %v200
    %v1049 = vunpack.c.1.s8 %v201
    %v1050 = vunpack.c.2.s8 %v200
    %v1051 = vunpack.c.2.s8 %v201
    %v1052 = vunpack.c.3.s8 %v200
    %v1053 = vunpack.c.3.s8 %v201
    %v1054 = vunpack.c.0.s8 %v202
    %v1055 = vunpack.c.0.s8 %v203
    %v1056 = vunpack.c.1.s8 %v202
    %v1057 = vunpack.c.1.s8 %v203
    %v1058 = vunpack.c.2.s8 %v202
    %v1059 = vunpack.c.2.s8 %v203
    %v1060 = vunpack.c.3.s8 %v202
    %v1061 = vunpack.c.3.s8 %v203
    %v1062 = vunpack.c.0.s8 %v204
    %v1063 = vunpack.c.0.s8 %v205
    %v1064 = vunpack.c.1.s8 %v204
    %v1065 = vunpack.c.1.s8 %v205
    %v1066 = vunpack.c.2.s8 %v204
    %v1067 = vunpack.c.2.s8 %v205
    %v1068 = vunpack.c.3.s8 %v204
    %v1069 = vunpack.c.3.s8 %v205
    %v1070 = vunpack.c.0.s8 %v206
    %v1071 = vunpack.c.0.s8 %v207
    %v1072 = vunpack.c.1.s8 %v206
    %v1073 = vunpack.c.1.s8 %v207
    %v1074 = vunpack.c.2.s8 %v206
    %v1075 = vunpack.c.2.s8 %v207
    %v1076 = vunpack.c.3.s8 %v206
    %v1077 = vunpack.c.3.s8 %v207
    %v1078 = vunpack.c.0.s8 %v208
    %v1079 = vunpack.c.0.s8 %v209
    %v1080 = vunpack.c.1.s8 %v208
    %v1081 = vunpack.c.1.s8 %v209
    %v1082 = vunpack.c.2.s8 %v208
    %v1083 = vunpack.c.2.s8 %v209
    %v1084 = vunpack.c.3.s8 %v208
    %v1085 = vunpack.c.3.s8 %v209
    %v1086 = vunpack.c.0.s8 %v210
    %v1087 = vunpack.c.0.s8 %v211
    %v1088 = vunpack.c.1.s8 %v210
    %v1089 = vunpack.c.1.s8 %v211
    %v1090 = vunpack.c.2.s8 %v210
    %v1091 = vunpack.c.2.s8 %v211
    %v1092 = vunpack.c.3.s8 %v210
    %v1093 = vunpack.c.3.s8 %v211
    %v1094 = vunpack.c.0.s8 %v212
    %v1095 = vunpack.c.0.s8 %v213
    %v1096 = vunpack.c.1.s8 %v212
    %v1097 = vunpack.c.1.s8 %v213
    %v1098 = vunpack.c.2.s8 %v212
    %v1099 = vunpack.c.2.s8 %v213
    %v1100 = vunpack.c.3.s8 %v212
    %v1101 = vunpack.c.3.s8 %v213
    %v1102 = vunpack.c.0.s8 %v214
    %v1103 = vunpack.c.0.s8 %v215
    %v1104 = vunpack.c.1.s8 %v214
    %v1105 = vunpack.c.1.s8 %v215
    %v1106 = vunpack.c.2.s8 %v214
    %v1107 = vunpack.c.2.s8 %v215
    %v1108 = vunpack.c.3.s8 %v214
    %v1109 = vunpack.c.3.s8 %v215
    %v1110 = vunpack.c.0.s8 %v216
    %v1111 = vunpack.c.0.s8 %v217
    %v1112 = vunpack.c.1.s8 %v216
    %v1113 = vunpack.c.1.s8 %v217
    %v1114 = vunpack.c.2.s8 %v216
    %v1115 = vunpack.c.2.s8 %v217
    %v1116 = vunpack.c.3.s8 %v216
    %v1117 = vunpack.c.3.s8 %v217
    %v1118 = vunpack.c.0.s8 %v218
    %v1119 = vunpack.c.0.s8 %v219
    %v1120 = vunpack.c.1.s8 %v218
    %v1121 = vunpack.c.1.s8 %v219
    %v1122 = vunpack.c.2.s8 %v218
    %v1123 = vunpack.c.2.s8 %v219
    %v1124 = vunpack.c.3.s8 %v218
    %v1125 = vunpack.c.3.s8 %v219
    %v1126 = vunpack.c.0.s8 %v220
    %v1127 = vunpack.c.0.s8 %v221
    %v1128 = vunpack.c.1.s8 %v220
    %v1129 = vunpack.c.1.s8 %v221
    %v1130 = vunpack.c.2.s8 %v220
    %v1131 = vunpack.c.2.s8 %v221
    %v1132 = vunpack.c.3.s8 %v220
    %v1133 = vunpack.c.3.s8 %v221
    %v1134 = vunpack.c.0.s8 %v222
    %v1135 = vunpack.c.0.s8 %v223
    %v1136 = vunpack.c.1.s8 %v222
    %v1137 = vunpack.c.1.s8 %v223
    %v1138 = vunpack.c.2.s8 %v222
    %v1139 = vunpack.c.2.s8 %v223
    %v1140 = vunpack.c.3.s8 %v222
    %v1141 = vunpack.c.3.s8 %v223
    %v1142 = vunpack.c.0.s8 %v224
    %v1143 = vunpack.c.0.s8 %v225
    %v1144 = vunpack.c.1.s8 %v224
    %v1145 = vunpack.c.1.s8 %v225
    %v1146 = vunpack.c.2.s8 %v224
    %v1147 = vunpack.c.2.s8 %v225
    %v1148 = vunpack.c.3.s8 %v224
    %v1149 = vunpack.c.3.s8 %v225
    %v1150 = vunpack.c.0.s8 %v226
    %v1151 = vunpack.c.0.s8 %v227
    %v1152 = vunpack.c.1.s8 %v226
    %v1153 = vunpack.c.1.s8 %v227
    %v1154 = vunpack.c.2.s8 %v226
    %v1155 = vunpack.c.2.s8 %v227
    %v1156 = vunpack.c.3.s8 %v226
    %v1157 = vunpack.c.3.s8 %v227
    %v1158 = vunpack.c.0.s8 %v228
    %v1159 = vunpack.c.0.s8 %v229
    %v1160 = vunpack.c.1.s8 %v228
    %v1161 = vunpack.c.1.s8 %v229
    %v1162 = vunpack.c.2.s8 %v228
    %v1163 = vunpack.c.2.s8 %v229
    %v1164 = vunpack.c.3.s8 %v228
    %v1165 = vunpack.c.3.s8 %v229
    %v1166 = vunpack.c.0.s8 %v230
    %v1167 = vunpack.c.0.s8 %v231
    %v1168 = vunpack.c.1.s8 %v230
    %v1169 = vunpack.c.1.s8 %v231
    %v1170 = vunpack.c.2.s8 %v230
    %v1171 = vunpack.c.2.s8 %v231
    %v1172 = vunpack.c.3.s8 %v230
    %v1173 = vunpack.c.3.s8 %v231
    %v1174 = vunpack.c.0.s8 %v232
    %v1175 = vunpack.c.0.s8 %v233
    %v1176 = vunpack.c.1.s8 %v232
    %v1177 = vunpack.c.1.s8 %v233
    %v1178 = vunpack.c.2.s8 %v232
    %v1179 = vunpack.c.2.s8 %v233
    %v1180 = vunpack.c.3.s8 %v232
    %v1181 = vunpack.c.3.s8 %v233
    %v1182 = vunpack.c.0.s8 %v234
    %v1183 = vunpack.c.0.s8 %v235
    %v1184 = vunpack.c.1.s8 %v234
    %v1185 = vunpack.c.1.s8 %v235
    %v1186 = vunpack.c.2.s8 %v234
    %v1187 = vunpack.c.2.s8 %v235
    %v1188 = vunpack.c.3.s8 %v234
    %v1189 = vunpack.c.3.s8 %v235
    %v1190 = vunpack.c.0.s8 %v236
    %v1191 = vunpack.c.0.s8 %v237
    %v1192 = vunpack.c.1.s8 %v236
    %v1193 = vunpack.c.1.s8 %v237
    %v1194 = vunpack.c.2.s8 %v236
    %v1195 = vunpack.c.2.s8 %v237
    %v1196 = vunpack.c.3.s8 %v236
    %v1197 = vunpack.c.3.s8 %v237
    %v1198 = vunpack.c.0.s8 %v238
    %v1199 = vunpack.c.0.s8 %v239
    %v1200 = vunpack.c.1.s8 %v238
    %v1201 = vunpack.c.1.s8 %v239
    %v1202 = vunpack.c.2.s8 %v238
    %v1203 = vunpack.c.2.s8 %v239
    %v1204 = vunpack.c.3.s8 %v238
    %v1205 = vunpack.c.3.s8 %v239
    %v1206 = vunpack.c.0.s8 %v240
    %v1207 = vunpack.c.0.s8 %v241
    %v1208 = vunpack.c.1.s8 %v240
    %v1209 = vunpack.c.1.s8 %v241
    %v1210 = vunpack.c.2.s8 %v240
    %v1211 = vunpack.c.2.s8 %v241
    %v1212 = vunpack.c.3.s8 %v240
    %v1213 = vunpack.c.3.s8 %v241
    %v1214 = vunpack.c.0.s8 %v242
    %v1215 = vunpack.c.0.s8 %v243
    %v1216 = vunpack.c.1.s8 %v242
    %v1217 = vunpack.c.1.s8 %v243
    %v1218 = vunpack.c.2.s8 %v242
    %v1219 = vunpack.c.2.s8 %v243
    %v1220 = vunpack.c.3.s8 %v242
    %v1221 = vunpack.c.3.s8 %v243
    %v1222 = vunpack.c.0.s8 %v244
    %v1223 = vunpack.c.0.s8 %v245
    %v1224 = vunpack.c.1.s8 %v244
    %v1225 = vunpack.c.1.s8 %v245
    %v1226 = vunpack.c.2.s8 %v244
    %v1227 = vunpack.c.2.s8 %v245
    %v1228 = vunpack.c.3.s8 %v244
    %v1229 = vunpack.c.3.s8 %v245
    %v1230 = vunpack.c.0.s8 %v246
    %v1231 = vunpack.c.0.s8 %v247
    %v1232 = vunpack.c.1.s8 %v246
    %v1233 = vunpack.c.1.s8 %v247
    %v1234 = vunpack.c.2.s8 %v246
    %v1235 = vunpack.c.2.s8 %v247
    %v1236 = vunpack.c.3.s8 %v246
    %v1237 = vunpack.c.3.s8 %v247
    %v1238 = vunpack.c.0.s8 %v248
    %v1239 = vunpack.c.0.s8 %v249
    %v1240 = vunpack.c.1.s8 %v248
    %v1241 = vunpack.c.1.s8 %v249
    %v1242 = vunpack.c.2.s8 %v248
    %v1243 = vunpack.c.2.s8 %v249
    %v1244 = vunpack.c.3.s8 %v248
    %v1245 = vunpack.c.3.s8 %v249
    %v1246 = vunpack.c.0.s8 %v250
    %v1247 = vunpack.c.0.s8 %v251
    %v1248 = vunpack.c.1.s8 %v250
    %v1249 = vunpack.c.1.s8 %v251
    %v1250 = vunpack.c.2.s8 %v250
    %v1251 = vunpack.c.2.s8 %v251
    %v1252 = vunpack.c.3.s8 %v250
    %v1253 = vunpack.c.3.s8 %v251
    %v1254 = vunpack.c.0.s8 %v252
    %v1255 = vunpack.c.0.s8 %v253
    %v1256 = vunpack.c.1.s8 %v252
    %v1257 = vunpack.c.1.s8 %v253
    %v1258 = vunpack.c.2.s8 %v252
    %v1259 = vunpack.c.2.s8 %v253
    %v1260 = vunpack.c.3.s8 %v252
    %v1261 = vunpack.c.3.s8 %v253
    %v1262 = vunpack.c.0.s8 %v254
    %v1263 = vunpack.c.0.s8 %v255
    %v1264 = vunpack.c.1.s8 %v254
    %v1265 = vunpack.c.1.s8 %v255
    %v1266 = vunpack.c.2.s8 %v254
    %v1267 = vunpack.c.2.s8 %v255
    %v1268 = vunpack.c.3.s8 %v254
    %v1269 = vunpack.c.3.s8 %v255
    %v1270 = vunpack.c.0.s8 %v256
    %v1271 = vunpack.c.0.s8 %v257
    %v1272 = vunpack.c.1.s8 %v256
    %v1273 = vunpack.c.1.s8 %v257
    %v1274 = vunpack.c.2.s8 %v256
    %v1275 = vunpack.c.2.s8 %v257
    %v1276 = vunpack.c.3.s8 %v256
    %v1277 = vunpack.c.3.s8 %v257
    %v1278 = vunpack.c.0.s8 %v258
    %v1279 = vunpack.c.0.s8 %v259
    %v1280 = vunpack.c.1.s8 %v258
    %v1281 = vunpack.c.1.s8 %v259
    %v1282 = vunpack.c.2.s8 %v258
    %v1283 = vunpack.c.2.s8 %v259
    %v1284 = vunpack.c.3.s8 %v258
    %v1285 = vunpack.c.3.s8 %v259
    %v1286 = vunpack.c.0.s8 %v260
    %v1287 = vunpack.c.0.s8 %v261
    %v1288 = vunpack.c.1.s8 %v260
    %v1289 = vunpack.c.1.s8 %v261
    %v1290 = vunpack.c.2.s8 %v260
    %v1291 = vunpack.c.2.s8 %v261
    %v1292 = vunpack.c.3.s8 %v260
    %v1293 = vunpack.c.3.s8 %v261
    %v1294 = vunpack.c.0.s8 %v262
    %v1295 = vunpack.c.0.s8 %v263
    %v1296 = vunpack.c.1.s8 %v262
    %v1297 = vunpack.c.1.s8 %v263
    %v1298 = vunpack.c.2.s8 %v262
    %v1299 = vunpack.c.2.s8 %v263
    %v1300 = vunpack.c.3.s8 %v262
    %v1301 = vunpack.c.3.s8 %v263
    %v1302 = vunpack.c.0.s8 %v264
    %v1303 = vunpack.c.0.s8 %v265
    %v1304 = vunpack.c.1.s8 %v264
    %v1305 = vunpack.c.1.s8 %v265
    %v1306 = vunpack.c.2.s8 %v264
    %v1307 = vunpack.c.2.s8 %v265
    %v1308 = vunpack.c.3.s8 %v264
    %v1309 = vunpack.c.3.s8 %v265
    %v1310 = vunpack.c.0.s8 %v266
    %v1311 = vunpack.c.0.s8 %v267
    %v1312 = vunpack.c.1.s8 %v266
    %v1313 = vunpack.c.1.s8 %v267
    %v1314 = vunpack.c.2.s8 %v266
    %v1315 = vunpack.c.2.s8 %v267
    %v1316 = vunpack.c.3.s8 %v266
    %v1317 = vunpack.c.3.s8 %v267
    %v1318 = vunpack.c.0.s8 %v268
    %v1319 = vunpack.c.0.s8 %v269
    %v1320 = vunpack.c.1.s8 %v268
    %v1321 = vunpack.c.1.s8 %v269
    %v1322 = vunpack.c.2.s8 %v268
    %v1323 = vunpack.c.2.s8 %v269
    %v1324 = vunpack.c.3.s8 %v268
    %v1325 = vunpack.c.3.s8 %v269
    %v1326 = vunpack.c.0.s8 %v270
    %v1327 = vunpack.c.0.s8 %v271
    %v1328 = vunpack.c.1.s8 %v270
    %v1329 = vunpack.c.1.s8 %v271
    %v1330 = vunpack.c.2.s8 %v270
    %v1331 = vunpack.c.2.s8 %v271
    %v1332 = vunpack.c.3.s8 %v270
    %v1333 = vunpack.c.3.s8 %v271
    %v1334 = vunpack.c.0.s8 %v272
    %v1335 = vunpack.c.0.s8 %v273
    %v1336 = vunpack.c.1.s8 %v272
    %v1337 = vunpack.c.1.s8 %v273
    %v1338 = vunpack.c.2.s8 %v272
    %v1339 = vunpack.c.2.s8 %v273
    %v1340 = vunpack.c.3.s8 %v272
    %v1341 = vunpack.c.3.s8 %v273
    %v1342 = vunpack.c.0.s8 %v274
    %v1343 = vunpack.c.0.s8 %v275
    %v1344 = vunpack.c.1.s8 %v274
    %v1345 = vunpack.c.1.s8 %v275
    %v1346 = vunpack.c.2.s8 %v274
    %v1347 = vunpack.c.2.s8 %v275
    %v1348 = vunpack.c.3.s8 %v274
    %v1349 = vunpack.c.3.s8 %v275
    %v1350 = vunpack.c.0.s8 %v276
    %v1351 = vunpack.c.0.s8 %v277
    %v1352 = vunpack.c.1.s8 %v276
    %v1353 = vunpack.c.1.s8 %v277
    %v1354 = vunpack.c.2.s8 %v276
    %v1355 = vunpack.c.2.s8 %v277
    %v1356 = vunpack.c.3.s8 %v276
    %v1357 = vunpack.c.3.s8 %v277
    %v1358 = vunpack.c.0.s8 %v278
    %v1359 = vunpack.c.0.s8 %v279
    %v1360 = vunpack.c.1.s8 %v278
    %v1361 = vunpack.c.1.s8 %v279
    %v1362 = vunpack.c.2.s8 %v278
    %v1363 = vunpack.c.2.s8 %v279
    %v1364 = vunpack.c.3.s8 %v278
    %v1365 = vunpack.c.3.s8 %v279
    %v1366 = vunpack.c.0.s8 %v280
    %v1367 = vunpack.c.0.s8 %v281
    %v1368 = vunpack.c.1.s8 %v280
    %v1369 = vunpack.c.1.s8 %v281
    %v1370 = vunpack.c.2.s8 %v280
    %v1371 = vunpack.c.2.s8 %v281
    %v1372 = vunpack.c.3.s8 %v280
    %v1373 = vunpack.c.3.s8 %v281
    %v1374 = vunpack.c.0.s8 %v282
    %v1375 = vunpack.c.0.s8 %v283
    %v1376 = vunpack.c.1.s8 %v282
    %v1377 = vunpack.c.1.s8 %v283
    %v1378 = vunpack.c.2.s8 %v282
    %v1379 = vunpack.c.2.s8 %v283
    %v1380 = vunpack.c.3.s8 %v282
    %v1381 = vunpack.c.3.s8 %v283
    %v1382 = vunpack.c.0.s8 %v284
    %v1383 = vunpack.c.0.s8 %v285
    %v1384 = vunpack.c.1.s8 %v284
    %v1385 = vunpack.c.1.s8 %v285
    %v1386 = vunpack.c.2.s8 %v284
    %v1387 = vunpack.c.2.s8 %v285
    %v1388 = vunpack.c.3.s8 %v284
    %v1389 = vunpack.c.3.s8 %v285
    %v1390 = vunpack.c.0.s8 %v286
    %v1391 = vunpack.c.0.s8 %v287
    %v1392 = vunpack.c.1.s8 %v286
    %v1393 = vunpack.c.1.s8 %v287
    %v1394 = vunpack.c.2.s8 %v286
    %v1395 = vunpack.c.2.s8 %v287
    %v1396 = vunpack.c.3.s8 %v286
    %v1397 = vunpack.c.3.s8 %v287
    %v1398 = vunpack.c.0.s8 %v288
    %v1399 = vunpack.c.0.s8 %v289
    %v1400 = vunpack.c.1.s8 %v288
    %v1401 = vunpack.c.1.s8 %v289
    %v1402 = vunpack.c.2.s8 %v288
    %v1403 = vunpack.c.2.s8 %v289
    %v1404 = vunpack.c.3.s8 %v288
    %v1405 = vunpack.c.3.s8 %v289
    %v1406 = vunpack.c.0.s8 %v290
    %v1407 = vunpack.c.0.s8 %v291
    %v1408 = vunpack.c.1.s8 %v290
    %v1409 = vunpack.c.1.s8 %v291
    %v1410 = vunpack.c.2.s8 %v290
    %v1411 = vunpack.c.2.s8 %v291
    %v1412 = vunpack.c.3.s8 %v290
    %v1413 = vunpack.c.3.s8 %v291
    %v1414 = vunpack.c.0.s8 %v292
    %v1415 = vunpack.c.0.s8 %v293
    %v1416 = vunpack.c.1.s8 %v292
    %v1417 = vunpack.c.1.s8 %v293
    %v1418 = vunpack.c.2.s8 %v292
    %v1419 = vunpack.c.2.s8 %v293
    %v1420 = vunpack.c.3.s8 %v292
    %v1421 = vunpack.c.3.s8 %v293
    %v1422 = vunpack.c.0.s8 %v294
    %v1423 = vunpack.c.0.s8 %v295
    %v1424 = vunpack.c.1.s8 %v294
    %v1425 = vunpack.c.1.s8 %v295
    %v1426 = vunpack.c.2.s8 %v294
    %v1427 = vunpack.c.2.s8 %v295
    %v1428 = vunpack.c.3.s8 %v294
    %v1429 = vunpack.c.3.s8 %v295
    %v1430 = vunpack.c.0.s8 %v296
    %v1431 = vunpack.c.0.s8 %v297
    %v1432 = vunpack.c.1.s8 %v296
    %v1433 = vunpack.c.1.s8 %v297
    %v1434 = vunpack.c.2.s8 %v296
    %v1435 = vunpack.c.2.s8 %v297
    %v1436 = vunpack.c.3.s8 %v296
    %v1437 = vunpack.c.3.s8 %v297
    %v1438 = vunpack.c.0.s8 %v298
    %v1439 = vunpack.c.0.s8 %v299
    %v1440 = vunpack.c.1.s8 %v298
    %v1441 = vunpack.c.1.s8 %v299
    %v1442 = vunpack.c.2.s8 %v298
    %v1443 = vunpack.c.2.s8 %v299
    %v1444 = vunpack.c.3.s8 %v298
    %v1445 = vunpack.c.3.s8 %v299
    %v1446 = vunpack.c.0.s8 %v300
    %v1447 = vunpack.c.0.s8 %v301
    %v1448 = vunpack.c.1.s8 %v300
    %v1449 = vunpack.c.1.s8 %v301
    %v1450 = vunpack.c.2.s8 %v300
    %v1451 = vunpack.c.2.s8 %v301
    %v1452 = vunpack.c.3.s8 %v300
    %v1453 = vunpack.c.3.s8 %v301
    %v1454 = vunpack.c.0.s8 %v302
    %v1455 = vunpack.c.0.s8 %v303
    %v1456 = vunpack.c.1.s8 %v302
    %v1457 = vunpack.c.1.s8 %v303
    %v1458 = vunpack.c.2.s8 %v302
    %v1459 = vunpack.c.2.s8 %v303
    %v1460 = vunpack.c.3.s8 %v302
    %v1461 = vunpack.c.3.s8 %v303
    %v1462 = vunpack.c.0.s8 %v304
    %v1463 = vunpack.c.0.s8 %v305
    %v1464 = vunpack.c.1.s8 %v304
    %v1465 = vunpack.c.1.s8 %v305
    %v1466 = vunpack.c.2.s8 %v304
    %v1467 = vunpack.c.2.s8 %v305
    %v1468 = vunpack.c.3.s8 %v304
    %v1469 = vunpack.c.3.s8 %v305
    %v1470 = vunpack.c.0.s8 %v306
    %v1471 = vunpack.c.0.s8 %v307
    %v1472 = vunpack.c.1.s8 %v306
    %v1473 = vunpack.c.1.s8 %v307
    %v1474 = vunpack.c.2.s8 %v306
    %v1475 = vunpack.c.2.s8 %v307
    %v1476 = vunpack.c.3.s8 %v306
    %v1477 = vunpack.c.3.s8 %v307
    %v1478 = vunpack.c.0.s8 %v308
    %v1479 = vunpack.c.0.s8 %v309
    %v1480 = vunpack.c.1.s8 %v308
    %v1481 = vunpack.c.1.s8 %v309
    %v1482 = vunpack.c.2.s8 %v308
    %v1483 = vunpack.c.2.s8 %v309
    %v1484 = vunpack.c.3.s8 %v308
    %v1485 = vunpack.c.3.s8 %v309
    %v1486 = vunpack.c.0.s8 %v310
    %v1487 = vunpack.c.0.s8 %v311
    %v1488 = vunpack.c.1.s8 %v310
    %v1489 = vunpack.c.1.s8 %v311
    %v1490 = vunpack.c.2.s8 %v310
    %v1491 = vunpack.c.2.s8 %v311
    %v1492 = vunpack.c.3.s8 %v310
    %v1493 = vunpack.c.3.s8 %v311
    %v1494 = vunpack.c.0.s8 %v312
    %v1495 = vunpack.c.0.s8 %v313
    %v1496 = vunpack.c.1.s8 %v312
    %v1497 = vunpack.c.1.s8 %v313
    %v1498 = vunpack.c.2.s8 %v312
    %v1499 = vunpack.c.2.s8 %v313
    %v1500 = vunpack.c.3.s8 %v312
    %v1501 = vunpack.c.3.s8 %v313
    %v1502 = vunpack.c.0.s8 %v314
    %v1503 = vunpack.c.0.s8 %v315
    %v1504 = vunpack.c.1.s8 %v314
    %v1505 = vunpack.c.1.s8 %v315
    %v1506 = vunpack.c.2.s8 %v314
    %v1507 = vunpack.c.2.s8 %v315
    %v1508 = vunpack.c.3.s8 %v314
    %v1509 = vunpack.c.3.s8 %v315
    %v1510 = vunpack.c.0.s8 %v316
    %v1511 = vunpack.c.0.s8 %v317
    %v1512 = vunpack.c.1.s8 %v316
    %v1513 = vunpack.c.1.s8 %v317
    %v1514 = vunpack.c.2.s8 %v316
    %v1515 = vunpack.c.2.s8 %v317
    %v1516 = vunpack.c.3.s8 %v316
    %v1517 = vunpack.c.3.s8 %v317
    %v1518 = vunpack.c.0.s8 %v318
    %v1519 = vunpack.c.0.s8 %v319
    %v1520 = vunpack.c.1.s8 %v318
    %v1521 = vunpack.c.1.s8 %v319
    %v1522 = vunpack.c.2.s8 %v318
    %v1523 = vunpack.c.2.s8 %v319
    %v1524 = vunpack.c.3.s8 %v318
    %v1525 = vunpack.c.3.s8 %v319
    %v1526 = vunpack.c.0.s8 %v320
    %v1527 = vunpack.c.0.s8 %v321
    %v1528 = vunpack.c.1.s8 %v320
    %v1529 = vunpack.c.1.s8 %v321
    %v1530 = vunpack.c.2.s8 %v320
    %v1531 = vunpack.c.2.s8 %v321
    %v1532 = vunpack.c.3.s8 %v320
    %v1533 = vunpack.c.3.s8 %v321
    %v1534 = vunpack.c.0.s8 %v322
    %v1535 = vunpack.c.0.s8 %v323
    %v1536 = vunpack.c.1.s8 %v322
    %v1537 = vunpack.c.1.s8 %v323
    %v1538 = vunpack.c.2.s8 %v322
    %v1539 = vunpack.c.2.s8 %v323
    %v1540 = vunpack.c.3.s8 %v322
    %v1541 = vunpack.c.3.s8 %v323
    %v1542 = vunpack.c.0.s8 %v324
    %v1543 = vunpack.c.0.s8 %v325
    %v1544 = vunpack.c.1.s8 %v324
    %v1545 = vunpack.c.1.s8 %v325
    %v1546 = vunpack.c.2.s8 %v324
    %v1547 = vunpack.c.2.s8 %v325
    %v1548 = vunpack.c.3.s8 %v324
    %v1549 = vunpack.c.3.s8 %v325
    %v1550 = vunpack.c.0.s8 %v326
    %v1551 = vunpack.c.0.s8 %v327
    %v1552 = vunpack.c.1.s8 %v326
    %v1553 = vunpack.c.1.s8 %v327
    %v1554 = vunpack.c.2.s8 %v326
    %v1555 = vunpack.c.2.s8 %v327
    %v1556 = vunpack.c.3.s8 %v326
    %v1557 = vunpack.c.3.s8 %v327
    %v1558 = vunpack.c.0.s8 %v328
    %v1559 = vunpack.c.0.s8 %v329
    %v1560 = vunpack.c.1.s8 %v328
    %v1561 = vunpack.c.1.s8 %v329
    %v1562 = vunpack.c.2.s8 %v328
    %v1563 = vunpack.c.2.s8 %v329
    %v1564 = vunpack.c.3.s8 %v328
    %v1565 = vunpack.c.3.s8 %v329
    %v1566 = vunpack.c.0.s8 %v330
    %v1567 = vunpack.c.0.s8 %v331
    %v1568 = vunpack.c.1.s8 %v330
    %v1569 = vunpack.c.1.s8 %v331
    %v1570 = vunpack.c.2.s8 %v330
    %v1571 = vunpack.c.2.s8 %v331
    %v1572 = vunpack.c.3.s8 %v330
    %v1573 = vunpack.c.3.s8 %v331
    %v1574 = vunpack.c.0.s8 %v332
    %v1575 = vunpack.c.0.s8 %v333
    %v1576 = vunpack.c.1.s8 %v332
    %v1577 = vunpack.c.1.s8 %v333
    %v1578 = vunpack.c.2.s8 %v332
    %v1579 = vunpack.c.2.s8 %v333
    %v1580 = vunpack.c.3.s8 %v332
    %v1581 = vunpack.c.3.s8 %v333
    %v1582 = vunpack.c.0.s8 %v334
    %v1583 = vunpack.c.0.s8 %v335
    %v1584 = vunpack.c.1.s8 %v334
    %v1585 = vunpack.c.1.s8 %v335
    %v1586 = vunpack.c.2.s8 %v334
    %v1587 = vunpack.c.2.s8 %v335
    %v1588 = vunpack.c.3.s8 %v334
    %v1589 = vunpack.c.3.s8 %v335
    %v1590 = vunpack.c.0.s8 %v336
    %v1591 = vunpack.c.0.s8 %v337
    %v1592 = vunpack.c.1.s8 %v336
    %v1593 = vunpack.c.1.s8 %v337
    %v1594 = vunpack.c.2.s8 %v336
    %v1595 = vunpack.c.2.s8 %v337
    %v1596 = vunpack.c.3.s8 %v336
    %v1597 = vunpack.c.3.s8 %v337
    %v1598 = vunpack.c.0.s8 %v338
    %v1599 = vunpack.c.0.s8 %v339
    %v1600 = vunpack.c.1.s8 %v338
    %v1601 = vunpack.c.1.s8 %v339
    %v1602 = vunpack.c.2.s8 %v338
    %v1603 = vunpack.c.2.s8 %v339
    %v1604 = vunpack.c.3.s8 %v338
    %v1605 = vunpack.c.3.s8 %v339
    %v1606 = vunpack.c.0.s8 %v340
    %v1607 = vunpack.c.0.s8 %v341
    %v1608 = vunpack.c.1.s8 %v340
    %v1609 = vunpack.c.1.s8 %v341
    %v1610 = vunpack.c.2.s8 %v340
    %v1611 = vunpack.c.2.s8 %v341
    %v1612 = vunpack.c.3.s8 %v340
    %v1613 = vunpack.c.3.s8 %v341
    %v1614 = vunpack.c.0.s8 %v342
    %v1615 = vunpack.c.0.s8 %v343
    %v1616 = vunpack.c.1.s8 %v342
    %v1617 = vunpack.c.1.s8 %v343
    %v1618 = vunpack.c.2.s8 %v342
    %v1619 = vunpack.c.2.s8 %v343
    %v1620 = vunpack.c.3.s8 %v342
    %v1621 = vunpack.c.3.s8 %v343
    %v1622 = vunpack.c.0.s8 %v344
    %v1623 = vunpack.c.0.s8 %v345
    %v1624 = vunpack.c.1.s8 %v344
    %v1625 = vunpack.c.1.s8 %v345
    %v1626 = vunpack.c.2.s8 %v344
    %v1627 = vunpack.c.2.s8 %v345
    %v1628 = vunpack.c.3.s8 %v344
    %v1629 = vunpack.c.3.s8 %v345
    %v1630 = vunpack.c.0.s8 %v346
    %v1631 = vunpack.c.0.s8 %v347
    %v1632 = vunpack.c.1.s8 %v346
    %v1633 = vunpack.c.1.s8 %v347
    %v1634 = vunpack.c.2.s8 %v346
    %v1635 = vunpack.c.2.s8 %v347
    %v1636 = vunpack.c.3.s8 %v346
    %v1637 = vunpack.c.3.s8 %v347
    %v1638 = vunpack.c.0.s8 %v348
    %v1639 = vunpack.c.0.s8 %v349
    %v1640 = vunpack.c.1.s8 %v348
    %v1641 = vunpack.c.1.s8 %v349
    %v1642 = vunpack.c.2.s8 %v348
    %v1643 = vunpack.c.2.s8 %v349
    %v1644 = vunpack.c.3.s8 %v348
    %v1645 = vunpack.c.3.s8 %v349
    %v1646 = vunpack.c.0.s8 %v350
    %v1647 = vunpack.c.0.s8 %v351
    %v1648 = vunpack.c.1.s8 %v350
    %v1649 = vunpack.c.1.s8 %v351
    %v1650 = vunpack.c.2.s8 %v350
    %v1651 = vunpack.c.2.s8 %v351
    %v1652 = vunpack.c.3.s8 %v350
    %v1653 = vunpack.c.3.s8 %v351
    %v1654 = vunpack.c.0.s8 %v352
    %v1655 = vunpack.c.0.s8 %v353
    %v1656 = vunpack.c.1.s8 %v352
    %v1657 = vunpack.c.1.s8 %v353
    %v1658 = vunpack.c.2.s8 %v352
    %v1659 = vunpack.c.2.s8 %v353
    %v1660 = vunpack.c.3.s8 %v352
    %v1661 = vunpack.c.3.s8 %v353
    %v1662 = vunpack.c.0.s8 %v354
    %v1663 = vunpack.c.0.s8 %v355
    %v1664 = vunpack.c.1.s8 %v354
    %v1665 = vunpack.c.1.s8 %v355
    %v1666 = vunpack.c.2.s8 %v354
    %v1667 = vunpack.c.2.s8 %v355
    %v1668 = vunpack.c.3.s8 %v354
    %v1669 = vunpack.c.3.s8 %v355
    %v1670 = vunpack.c.0.s8 %v356
    %v1671 = vunpack.c.0.s8 %v357
    %v1672 = vunpack.c.1.s8 %v356
    %v1673 = vunpack.c.1.s8 %v357
    %v1674 = vunpack.c.2.s8 %v356
    %v1675 = vunpack.c.2.s8 %v357
    %v1676 = vunpack.c.3.s8 %v356
    %v1677 = vunpack.c.3.s8 %v357
    %v1678 = vunpack.c.0.s8 %v358
    %v1679 = vunpack.c.0.s8 %v359
    %v1680 = vunpack.c.1.s8 %v358
    %v1681 = vunpack.c.1.s8 %v359
    %v1682 = vunpack.c.2.s8 %v358
    %v1683 = vunpack.c.2.s8 %v359
    %v1684 = vunpack.c.3.s8 %v358
    %v1685 = vunpack.c.3.s8 %v359
    %v1686 = vunpack.c.0.s8 %v360
    %v1687 = vunpack.c.0.s8 %v361
    %v1688 = vunpack.c.1.s8 %v360
    %v1689 = vunpack.c.1.s8 %v361
    %v1690 = vunpack.c.2.s8 %v360
    %v1691 = vunpack.c.2.s8 %v361
    %v1692 = vunpack.c.3.s8 %v360
    %v1693 = vunpack.c.3.s8 %v361
    %v1694 = vunpack.c.0.s8 %v362
    %v1695 = vunpack.c.0.s8 %v363
    %v1696 = vunpack.c.1.s8 %v362
    %v1697 = vunpack.c.1.s8 %v363
    %v1698 = vunpack.c.2.s8 %v362
    %v1699 = vunpack.c.2.s8 %v363
    %v1700 = vunpack.c.3.s8 %v362
    %v1701 = vunpack.c.3.s8 %v363
    %v1702 = vunpack.c.0.s8 %v364
    %v1703 = vunpack.c.0.s8 %v365
    %v1704 = vunpack.c.1.s8 %v364
    %v1705 = vunpack.c.1.s8 %v365
    %v1706 = vunpack.c.2.s8 %v364
    %v1707 = vunpack.c.2.s8 %v365
    %v1708 = vunpack.c.3.s8 %v364
    %v1709 = vunpack.c.3.s8 %v365
    %v1710 = vunpack.c.0.s8 %v366
    %v1711 = vunpack.c.0.s8 %v367
    %v1712 = vunpack.c.1.s8 %v366
    %v1713 = vunpack.c.1.s8 %v367
    %v1714 = vunpack.c.2.s8 %v366
    %v1715 = vunpack.c.2.s8 %v367
    %v1716 = vunpack.c.3.s8 %v366
    %v1717 = vunpack.c.3.s8 %v367
    %v1718 = vunpack.c.0.s8 %v368
    %v1719 = vunpack.c.0.s8 %v369
    %v1720 = vunpack.c.1.s8 %v368
    %v1721 = vunpack.c.1.s8 %v369
    %v1722 = vunpack.c.2.s8 %v368
    %v1723 = vunpack.c.2.s8 %v369
    %v1724 = vunpack.c.3.s8 %v368
    %v1725 = vunpack.c.3.s8 %v369
    %v1726 = vunpack.c.0.s8 %v370
    %v1727 = vunpack.c.0.s8 %v371
    %v1728 = vunpack.c.1.s8 %v370
    %v1729 = vunpack.c.1.s8 %v371
    %v1730 = vunpack.c.2.s8 %v370
    %v1731 = vunpack.c.2.s8 %v371
    %v1732 = vunpack.c.3.s8 %v370
    %v1733 = vunpack.c.3.s8 %v371
    %v1734 = vunpack.c.0.s8 %v372
    %v1735 = vunpack.c.0.s8 %v373
    %v1736 = vunpack.c.1.s8 %v372
    %v1737 = vunpack.c.1.s8 %v373
    %v1738 = vunpack.c.2.s8 %v372
    %v1739 = vunpack.c.2.s8 %v373
    %v1740 = vunpack.c.3.s8 %v372
    %v1741 = vunpack.c.3.s8 %v373
    %v1742 = vunpack.c.0.s8 %v374
    %v1743 = vunpack.c.0.s8 %v375
    %v1744 = vunpack.c.1.s8 %v374
    %v1745 = vunpack.c.1.s8 %v375
    %v1746 = vunpack.c.2.s8 %v374
    %v1747 = vunpack.c.2.s8 %v375
    %v1748 = vunpack.c.3.s8 %v374
    %v1749 = vunpack.c.3.s8 %v375
    %v1750 = vunpack.c.0.s8 %v376
    %v1751 = vunpack.c.0.s8 %v377
    %v1752 = vunpack.c.1.s8 %v376
    %v1753 = vunpack.c.1.s8 %v377
    %v1754 = vunpack.c.2.s8 %v376
    %v1755 = vunpack.c.2.s8 %v377
    %v1756 = vunpack.c.3.s8 %v376
    %v1757 = vunpack.c.3.s8 %v377
    %v1758 = vunpack.c.0.s8 %v378
    %v1759 = vunpack.c.0.s8 %v379
    %v1760 = vunpack.c.1.s8 %v378
    %v1761 = vunpack.c.1.s8 %v379
    %v1762 = vunpack.c.2.s8 %v378
    %v1763 = vunpack.c.2.s8 %v379
    %v1764 = vunpack.c.3.s8 %v378
    %v1765 = vunpack.c.3.s8 %v379
    %v1766 = vunpack.c.0.s8 %v380
    %v1767 = vunpack.c.0.s8 %v381
    %v1768 = vunpack.c.1.s8 %v380
    %v1769 = vunpack.c.1.s8 %v381
    %v1770 = vunpack.c.2.s8 %v380
    %v1771 = vunpack.c.2.s8 %v381
    %v1772 = vunpack.c.3.s8 %v380
    %v1773 = vunpack.c.3.s8 %v381
    %v1774 = vunpack.c.0.s8 %v382
    %v1775 = vunpack.c.0.s8 %v383
    %v1776 = vunpack.c.1.s8 %v382
    %v1777 = vunpack.c.1.s8 %v383
    %v1778 = vunpack.c.2.s8 %v382
    %v1779 = vunpack.c.2.s8 %v383
    %v1780 = vunpack.c.3.s8 %v382
    %v1781 = vunpack.c.3.s8 %v383
    %v1782 = vunpack.c.0.s8 %v384
    %v1783 = vunpack.c.0.s8 %v385
    %v1784 = vunpack.c.1.s8 %v384
    %v1785 = vunpack.c.1.s8 %v385
    %v1786 = vunpack.c.2.s8 %v384
    %v1787 = vunpack.c.2.s8 %v385
    %v1788 = vunpack.c.3.s8 %v384
    %v1789 = vunpack.c.3.s8 %v385
    %v1790 = vunpack.c.0.s8 %v386
    %v1791 = vunpack.c.0.s8 %v387
    %v1792 = vunpack.c.1.s8 %v386
    %v1793 = vunpack.c.1.s8 %v387
    %v1794 = vunpack.c.2.s8 %v386
    %v1795 = vunpack.c.2.s8 %v387
    %v1796 = vunpack.c.3.s8 %v386
    %v1797 = vunpack.c.3.s8 %v387
    %v1798 = vunpack.c.0.s8 %v388
    %v1799 = vunpack.c.0.s8 %v389
    %v1800 = vunpack.c.1.s8 %v388
    %v1801 = vunpack.c.1.s8 %v389
    %v1802 = vunpack.c.2.s8 %v388
    %v1803 = vunpack.c.2.s8 %v389
    %v1804 = vunpack.c.3.s8 %v388
    %v1805 = vunpack.c.3.s8 %v389
    %v1806 = vunpack.c.0.s8 %v390
    %v1807 = vunpack.c.0.s8 %v391
    %v1808 = vunpack.c.1.s8 %v390
    %v1809 = vunpack.c.1.s8 %v391
    %v1810 = vunpack.c.2.s8 %v390
    %v1811 = vunpack.c.2.s8 %v391
    %v1812 = vunpack.c.3.s8 %v390
    %v1813 = vunpack.c.3.s8 %v391
    %v1814 = vunpack.c.0.s8 %v392
    %v1815 = vunpack.c.0.s8 %v393
    %v1816 = vunpack.c.1.s8 %v392
    %v1817 = vunpack.c.1.s8 %v393
    %v1818 = vunpack.c.2.s8 %v392
    %v1819 = vunpack.c.2.s8 %v393
    %v1820 = vunpack.c.3.s8 %v392
    %v1821 = vunpack.c.3.s8 %v393
    %v1822 = vunpack.c.0.s8 %v394
    %v1823 = vunpack.c.0.s8 %v395
    %v1824 = vunpack.c.1.s8 %v394
    %v1825 = vunpack.c.1.s8 %v395
    %v1826 = vunpack.c.2.s8 %v394
    %v1827 = vunpack.c.2.s8 %v395
    %v1828 = vunpack.c.3.s8 %v394
    %v1829 = vunpack.c.3.s8 %v395
    %v1830 = vunpack.c.0.s8 %v396
    %v1831 = vunpack.c.0.s8 %v397
    %v1832 = vunpack.c.1.s8 %v396
    %v1833 = vunpack.c.1.s8 %v397
    %v1834 = vunpack.c.2.s8 %v396
    %v1835 = vunpack.c.2.s8 %v397
    %v1836 = vunpack.c.3.s8 %v396
    %v1837 = vunpack.c.3.s8 %v397
    %v1838 = vunpack.c.0.s8 %v398
    %v1839 = vunpack.c.0.s8 %v399
    %v1840 = vunpack.c.1.s8 %v398
    %v1841 = vunpack.c.1.s8 %v399
    %v1842 = vunpack.c.2.s8 %v398
    %v1843 = vunpack.c.2.s8 %v399
    %v1844 = vunpack.c.3.s8 %v398
    %v1845 = vunpack.c.3.s8 %v399
    %v1846 = vunpack.c.0.s8 %v400
    %v1847 = vunpack.c.0.s8 %v401
    %v1848 = vunpack.c.1.s8 %v400
    %v1849 = vunpack.c.1.s8 %v401
    %v1850 = vunpack.c.2.s8 %v400
    %v1851 = vunpack.c.2.s8 %v401
    %v1852 = vunpack.c.3.s8 %v400
    %v1853 = vunpack.c.3.s8 %v401
    %v1854 = vunpack.c.0.s8 %v402
    %v1855 = vunpack.c.0.s8 %v403
    %v1856 = vunpack.c.1.s8 %v402
    %v1857 = vunpack.c.1.s8 %v403
    %v1858 = vunpack.c.2.s8 %v402
    %v1859 = vunpack.c.2.s8 %v403
    %v1860 = vunpack.c.3.s8 %v402
    %v1861 = vunpack.c.3.s8 %v403
    %v1862 = vunpack.c.0.s8 %v404
    %v1863 = vunpack.c.0.s8 %v405
    %v1864 = vunpack.c.1.s8 %v404
    %v1865 = vunpack.c.1.s8 %v405
    %v1866 = vunpack.c.2.s8 %v404
    %v1867 = vunpack.c.2.s8 %v405
    %v1868 = vunpack.c.3.s8 %v404
    %v1869 = vunpack.c.3.s8 %v405
    %v1870 = vunpack.c.0.s8 %v406
    %v1871 = vunpack.c.0.s8 %v407
    %v1872 = vunpack.c.1.s8 %v406
    %v1873 = vunpack.c.1.s8 %v407
    %v1874 = vunpack.c.2.s8 %v406
    %v1875 = vunpack.c.2.s8 %v407
    %v1876 = vunpack.c.3.s8 %v406
    %v1877 = vunpack.c.3.s8 %v407
    %v1878 = vunpack.c.0.s8 %v408
    %v1879 = vunpack.c.0.s8 %v409
    %v1880 = vunpack.c.1.s8 %v408
    %v1881 = vunpack.c.1.s8 %v409
    %v1882 = vunpack.c.2.s8 %v408
    %v1883 = vunpack.c.2.s8 %v409
    %v1884 = vunpack.c.3.s8 %v408
    %v1885 = vunpack.c.3.s8 %v409
    %v1886 = vunpack.c.0.s8 %v410
    %v1887 = vunpack.c.0.s8 %v411
    %v1888 = vunpack.c.1.s8 %v410
    %v1889 = vunpack.c.1.s8 %v411
    %v1890 = vunpack.c.2.s8 %v410
    %v1891 = vunpack.c.2.s8 %v411
    %v1892 = vunpack.c.3.s8 %v410
    %v1893 = vunpack.c.3.s8 %v411
    %v1894 = vunpack.c.0.s8 %v412
    %v1895 = vunpack.c.0.s8 %v413
    %v1896 = vunpack.c.1.s8 %v412
    %v1897 = vunpack.c.1.s8 %v413
    %v1898 = vunpack.c.2.s8 %v412
    %v1899 = vunpack.c.2.s8 %v413
    %v1900 = vunpack.c.3.s8 %v412
    %v1901 = vunpack.c.3.s8 %v413
    %v1902 = vunpack.c.0.s8 %v414
    %v1903 = vunpack.c.0.s8 %v415
    %v1904 = vunpack.c.1.s8 %v414
    %v1905 = vunpack.c.1.s8 %v415
    %v1906 = vunpack.c.2.s8 %v414
    %v1907 = vunpack.c.2.s8 %v415
    %v1908 = vunpack.c.3.s8 %v414
    %v1909 = vunpack.c.3.s8 %v415
    %v1910 = vunpack.c.0.s8 %v416
    %v1911 = vunpack.c.0.s8 %v417
    %v1912 = vunpack.c.1.s8 %v416
    %v1913 = vunpack.c.1.s8 %v417
    %v1914 = vunpack.c.2.s8 %v416
    %v1915 = vunpack.c.2.s8 %v417
    %v1916 = vunpack.c.3.s8 %v416
    %v1917 = vunpack.c.3.s8 %v417
    %v1918 = vunpack.c.0.s8 %v418
    %v1919 = vunpack.c.0.s8 %v419
    %v1920 = vunpack.c.1.s8 %v418
    %v1921 = vunpack.c.1.s8 %v419
    %v1922 = vunpack.c.2.s8 %v418
    %v1923 = vunpack.c.2.s8 %v419
    %v1924 = vunpack.c.3.s8 %v418
    %v1925 = vunpack.c.3.s8 %v419
    %v1926 = vunpack.c.0.s8 %v420
    %v1927 = vunpack.c.0.s8 %v421
    %v1928 = vunpack.c.1.s8 %v420
    %v1929 = vunpack.c.1.s8 %v421
    %v1930 = vunpack.c.2.s8 %v420
    %v1931 = vunpack.c.2.s8 %v421
    %v1932 = vunpack.c.3.s8 %v420
    %v1933 = vunpack.c.3.s8 %v421
    %v1934 = vunpack.c.0.s8 %v422
    %v1935 = vunpack.c.0.s8 %v423
    %v1936 = vunpack.c.1.s8 %v422
    %v1937 = vunpack.c.1.s8 %v423
    %v1938 = vunpack.c.2.s8 %v422
    %v1939 = vunpack.c.2.s8 %v423
    %v1940 = vunpack.c.3.s8 %v422
    %v1941 = vunpack.c.3.s8 %v423
    %v1942 = vunpack.c.0.s8 %v424
    %v1943 = vunpack.c.0.s8 %v425
    %v1944 = vunpack.c.1.s8 %v424
    %v1945 = vunpack.c.1.s8 %v425
    %v1946 = vunpack.c.2.s8 %v424
    %v1947 = vunpack.c.2.s8 %v425
    %v1948 = vunpack.c.3.s8 %v424
    %v1949 = vunpack.c.3.s8 %v425
    %v1950 = vunpack.c.0.s8 %v426
    %v1951 = vunpack.c.0.s8 %v427
    %v1952 = vunpack.c.1.s8 %v426
    %v1953 = vunpack.c.1.s8 %v427
    %v1954 = vunpack.c.2.s8 %v426
    %v1955 = vunpack.c.2.s8 %v427
    %v1956 = vunpack.c.3.s8 %v426
    %v1957 = vunpack.c.3.s8 %v427
    %v1958 = vunpack.c.0.s8 %v428
    %v1959 = vunpack.c.0.s8 %v429
    %v1960 = vunpack.c.1.s8 %v428
    %v1961 = vunpack.c.1.s8 %v429
    %v1962 = vunpack.c.2.s8 %v428
    %v1963 = vunpack.c.2.s8 %v429
    %v1964 = vunpack.c.3.s8 %v428
    %v1965 = vunpack.c.3.s8 %v429
    %v1966 = vunpack.c.0.s8 %v430
    %v1967 = vunpack.c.0.s8 %v431
    %v1968 = vunpack.c.1.s8 %v430
    %v1969 = vunpack.c.1.s8 %v431
    %v1970 = vunpack.c.2.s8 %v430
    %v1971 = vunpack.c.2.s8 %v431
    %v1972 = vunpack.c.3.s8 %v430
    %v1973 = vunpack.c.3.s8 %v431
    %v1974 = vunpack.c.0.s8 %v432
    %v1975 = vunpack.c.0.s8 %v433
    %v1976 = vunpack.c.1.s8 %v432
    %v1977 = vunpack.c.1.s8 %v433
    %v1978 = vunpack.c.2.s8 %v432
    %v1979 = vunpack.c.2.s8 %v433
    %v1980 = vunpack.c.3.s8 %v432
    %v1981 = vunpack.c.3.s8 %v433
    %v1982 = vunpack.c.0.s8 %v434
    %v1983 = vunpack.c.0.s8 %v435
    %v1984 = vunpack.c.1.s8 %v434
    %v1985 = vunpack.c.1.s8 %v435
    %v1986 = vunpack.c.2.s8 %v434
    %v1987 = vunpack.c.2.s8 %v435
    %v1988 = vunpack.c.3.s8 %v434
    %v1989 = vunpack.c.3.s8 %v435
    %v1990 = vunpack.c.0.s8 %v436
    %v1991 = vunpack.c.0.s8 %v437
    %v1992 = vunpack.c.1.s8 %v436
    %v1993 = vunpack.c.1.s8 %v437
    %v1994 = vunpack.c.2.s8 %v436
    %v1995 = vunpack.c.2.s8 %v437
    %v1996 = vunpack.c.3.s8 %v436
    %v1997 = vunpack.c.3.s8 %v437
    %v1998 = vunpack.c.0.s8 %v438
    %v1999 = vunpack.c.0.s8 %v439
    %v2000 = vunpack.c.1.s8 %v438
    %v2001 = vunpack.c.1.s8 %v439
    %v2002 = vunpack.c.2.s8 %v438
    %v2003 = vunpack.c.2.s8 %v439
    %v2004 = vunpack.c.3.s8 %v438
    %v2005 = vunpack.c.3.s8 %v439
    %v2006 = vunpack.c.0.s8 %v440
    %v2007 = vunpack.c.0.s8 %v441
    %v2008 = vunpack.c.1.s8 %v440
    %v2009 = vunpack.c.1.s8 %v441
    %v2010 = vunpack.c.2.s8 %v440
    %v2011 = vunpack.c.2.s8 %v441
    %v2012 = vunpack.c.3.s8 %v440
    %v2013 = vunpack.c.3.s8 %v441
    %v2014 = vunpack.c.0.s8 %v442
    %v2015 = vunpack.c.0.s8 %v443
    %v2016 = vunpack.c.1.s8 %v442
    %v2017 = vunpack.c.1.s8 %v443
    %v2018 = vunpack.c.2.s8 %v442
    %v2019 = vunpack.c.2.s8 %v443
    %v2020 = vunpack.c.3.s8 %v442
    %v2021 = vunpack.c.3.s8 %v443
    %v2022 = vunpack.c.0.s8 %v444
    %v2023 = vunpack.c.0.s8 %v445
    %v2024 = vunpack.c.1.s8 %v444
    %v2025 = vunpack.c.1.s8 %v445
    %v2026 = vunpack.c.2.s8 %v444
    %v2027 = vunpack.c.2.s8 %v445
    %v2028 = vunpack.c.3.s8 %v444
    %v2029 = vunpack.c.3.s8 %v445
    %v2030 = vunpack.c.0.s8 %v446
    %v2031 = vunpack.c.0.s8 %v447
    %v2032 = vunpack.c.1.s8 %v446
    %v2033 = vunpack.c.1.s8 %v447
    %v2034 = vunpack.c.2.s8 %v446
    %v2035 = vunpack.c.2.s8 %v447
    %v2036 = vunpack.c.3.s8 %v446
    %v2037 = vunpack.c.3.s8 %v447
    %v2038 = vunpack.c.0.s8 %v448
    %v2039 = vunpack.c.0.s8 %v449
    %v2040 = vunpack.c.1.s8 %v448
    %v2041 = vunpack.c.1.s8 %v449
    %v2042 = vunpack.c.2.s8 %v448
    %v2043 = vunpack.c.2.s8 %v449
    %v2044 = vunpack.c.3.s8 %v448
    %v2045 = vunpack.c.3.s8 %v449
    %v2046 = vunpack.c.0.s8 %v450
    %v2047 = vunpack.c.0.s8 %v451
    %v2048 = vunpack.c.1.s8 %v450
    %v2049 = vunpack.c.1.s8 %v451
    %v2050 = vunpack.c.2.s8 %v450
    %v2051 = vunpack.c.2.s8 %v451
    %v2052 = vunpack.c.3.s8 %v450
    %v2053 = vunpack.c.3.s8 %v451
    %v2054 = vunpack.c.0.s8 %v452
    %v2055 = vunpack.c.0.s8 %v453
    %v2056 = vunpack.c.1.s8 %v452
    %v2057 = vunpack.c.1.s8 %v453
    %v2058 = vunpack.c.2.s8 %v452
    %v2059 = vunpack.c.2.s8 %v453
    %v2060 = vunpack.c.3.s8 %v452
    %v2061 = vunpack.c.3.s8 %v453
    %v2062 = vunpack.c.0.s8 %v454
    %v2063 = vunpack.c.0.s8 %v455
    %v2064 = vunpack.c.1.s8 %v454
    %v2065 = vunpack.c.1.s8 %v455
    %v2066 = vunpack.c.2.s8 %v454
    %v2067 = vunpack.c.2.s8 %v455
    %v2068 = vunpack.c.3.s8 %v454
    %v2069 = vunpack.c.3.s8 %v455
    %v2070 = vunpack.c.0.s8 %v456
    %v2071 = vunpack.c.0.s8 %v457
    %v2072 = vunpack.c.1.s8 %v456
    %v2073 = vunpack.c.1.s8 %v457
    %v2074 = vunpack.c.2.s8 %v456
    %v2075 = vunpack.c.2.s8 %v457
    %v2076 = vunpack.c.3.s8 %v456
    %v2077 = vunpack.c.3.s8 %v457
    %v2078 = vunpack.c.0.s8 %v458
    %v2079 = vunpack.c.0.s8 %v459
    %v2080 = vunpack.c.1.s8 %v458
    %v2081 = vunpack.c.1.s8 %v459
    %v2082 = vunpack.c.2.s8 %v458
    %v2083 = vunpack.c.2.s8 %v459
    %v2084 = vunpack.c.3.s8 %v458
    %v2085 = vunpack.c.3.s8 %v459
    %v2086 = vunpack.c.0.s8 %v460
    %v2087 = vunpack.c.0.s8 %v461
    %v2088 = vunpack.c.1.s8 %v460
    %v2089 = vunpack.c.1.s8 %v461
    %v2090 = vunpack.c.2.s8 %v460
    %v2091 = vunpack.c.2.s8 %v461
    %v2092 = vunpack.c.3.s8 %v460
    %v2093 = vunpack.c.3.s8 %v461
    %v2094 = vunpack.c.0.s8 %v462
    %v2095 = vunpack.c.0.s8 %v463
    %v2096 = vunpack.c.1.s8 %v462
    %v2097 = vunpack.c.1.s8 %v463
    %v2098 = vunpack.c.2.s8 %v462
    %v2099 = vunpack.c.2.s8 %v463
    %v2100 = vunpack.c.3.s8 %v462
    %v2101 = vunpack.c.3.s8 %v463
    %v2102 = vunpack.c.0.s8 %v464
    %v2103 = vunpack.c.0.s8 %v465
    %v2104 = vunpack.c.1.s8 %v464
    %v2105 = vunpack.c.1.s8 %v465
    %v2106 = vunpack.c.2.s8 %v464
    %v2107 = vunpack.c.2.s8 %v465
    %v2108 = vunpack.c.3.s8 %v464
    %v2109 = vunpack.c.3.s8 %v465
    %v2110 = vunpack.c.0.s8 %v466
    %v2111 = vunpack.c.0.s8 %v467
    %v2112 = vunpack.c.1.s8 %v466
    %v2113 = vunpack.c.1.s8 %v467
    %v2114 = vunpack.c.2.s8 %v466
    %v2115 = vunpack.c.2.s8 %v467
    %v2116 = vunpack.c.3.s8 %v466
    %v2117 = vunpack.c.3.s8 %v467
    %v2118 = vunpack.c.0.s8 %v468
    %v2119 = vunpack.c.0.s8 %v469
    %v2120 = vunpack.c.1.s8 %v468
    %v2121 = vunpack.c.1.s8 %v469
    %v2122 = vunpack.c.2.s8 %v468
    %v2123 = vunpack.c.2.s8 %v469
    %v2124 = vunpack.c.3.s8 %v468
    %v2125 = vunpack.c.3.s8 %v469
    %v2126 = vunpack.c.0.s8 %v470
    %v2127 = vunpack.c.0.s8 %v471
    %v2128 = vunpack.c.1.s8 %v470
    %v2129 = vunpack.c.1.s8 %v471
    %v2130 = vunpack.c.2.s8 %v470
    %v2131 = vunpack.c.2.s8 %v471
    %v2132 = vunpack.c.3.s8 %v470
    %v2133 = vunpack.c.3.s8 %v471
    %v2134 = vunpack.c.0.s8 %v472
    %v2135 = vunpack.c.0.s8 %v473
    %v2136 = vunpack.c.1.s8 %v472
    %v2137 = vunpack.c.1.s8 %v473
    %v2138 = vunpack.c.2.s8 %v472
    %v2139 = vunpack.c.2.s8 %v473
    %v2140 = vunpack.c.3.s8 %v472
    %v2141 = vunpack.c.3.s8 %v473
    %v2142 = vunpack.c.0.s8 %v474
    %v2143 = vunpack.c.0.s8 %v475
    %v2144 = vunpack.c.1.s8 %v474
    %v2145 = vunpack.c.1.s8 %v475
    %v2146 = vunpack.c.2.s8 %v474
    %v2147 = vunpack.c.2.s8 %v475
    %v2148 = vunpack.c.3.s8 %v474
    %v2149 = vunpack.c.3.s8 %v475
    %v2150 = vunpack.c.0.s8 %v476
    %v2151 = vunpack.c.0.s8 %v477
    %v2152 = vunpack.c.1.s8 %v476
    %v2153 = vunpack.c.1.s8 %v477
    %v2154 = vunpack.c.2.s8 %v476
    %v2155 = vunpack.c.2.s8 %v477
    %v2156 = vunpack.c.3.s8 %v476
    %v2157 = vunpack.c.3.s8 %v477
    %v2158 = vunpack.c.0.s8 %v478
    %v2159 = vunpack.c.0.s8 %v479
    %v2160 = vunpack.c.1.s8 %v478
    %v2161 = vunpack.c.1.s8 %v479
    %v2162 = vunpack.c.2.s8 %v478
    %v2163 = vunpack.c.2.s8 %v479
    %v2164 = vunpack.c.3.s8 %v478
    %v2165 = vunpack.c.3.s8 %v479
    %v2166 = vunpack.c.0.s8 %v480
    %v2167 = vunpack.c.0.s8 %v481
    %v2168 = vunpack.c.1.s8 %v480
    %v2169 = vunpack.c.1.s8 %v481
    %v2170 = vunpack.c.2.s8 %v480
    %v2171 = vunpack.c.2.s8 %v481
    %v2172 = vunpack.c.3.s8 %v480
    %v2173 = vunpack.c.3.s8 %v481
    %v2174 = vunpack.c.0.s8 %v482
    %v2175 = vunpack.c.0.s8 %v483
    %v2176 = vunpack.c.1.s8 %v482
    %v2177 = vunpack.c.1.s8 %v483
    %v2178 = vunpack.c.2.s8 %v482
    %v2179 = vunpack.c.2.s8 %v483
    %v2180 = vunpack.c.3.s8 %v482
    %v2181 = vunpack.c.3.s8 %v483
    %v2182 = vunpack.c.0.s8 %v484
    %v2183 = vunpack.c.0.s8 %v485
    %v2184 = vunpack.c.1.s8 %v484
    %v2185 = vunpack.c.1.s8 %v485
    %v2186 = vunpack.c.2.s8 %v484
    %v2187 = vunpack.c.2.s8 %v485
    %v2188 = vunpack.c.3.s8 %v484
    %v2189 = vunpack.c.3.s8 %v485
    %v2190 = vunpack.c.0.s8 %v486
    %v2191 = vunpack.c.0.s8 %v487
    %v2192 = vunpack.c.1.s8 %v486
    %v2193 = vunpack.c.1.s8 %v487
    %v2194 = vunpack.c.2.s8 %v486
    %v2195 = vunpack.c.2.s8 %v487
    %v2196 = vunpack.c.3.s8 %v486
    %v2197 = vunpack.c.3.s8 %v487
    %v2198 = vunpack.c.0.s8 %v488
    %v2199 = vunpack.c.0.s8 %v489
    %v2200 = vunpack.c.1.s8 %v488
    %v2201 = vunpack.c.1.s8 %v489
    %v2202 = vunpack.c.2.s8 %v488
    %v2203 = vunpack.c.2.s8 %v489
    %v2204 = vunpack.c.3.s8 %v488
    %v2205 = vunpack.c.3.s8 %v489
    %v2206 = vunpack.c.0.s8 %v490
    %v2207 = vunpack.c.0.s8 %v491
    %v2208 = vunpack.c.1.s8 %v490
    %v2209 = vunpack.c.1.s8 %v491
    %v2210 = vunpack.c.2.s8 %v490
    %v2211 = vunpack.c.2.s8 %v491
    %v2212 = vunpack.c.3.s8 %v490
    %v2213 = vunpack.c.3.s8 %v491
    %v2214 = vunpack.c.0.s8 %v492
    %v2215 = vunpack.c.0.s8 %v493
    %v2216 = vunpack.c.1.s8 %v492
    %v2217 = vunpack.c.1.s8 %v493
    %v2218 = vunpack.c.2.s8 %v492
    %v2219 = vunpack.c.2.s8 %v493
    %v2220 = vunpack.c.3.s8 %v492
    %v2221 = vunpack.c.3.s8 %v493
    %v2222 = vunpack.c.0.s8 %v494
    %v2223 = vunpack.c.0.s8 %v495
    %v2224 = vunpack.c.1.s8 %v494
    %v2225 = vunpack.c.1.s8 %v495
    %v2226 = vunpack.c.2.s8 %v494
    %v2227 = vunpack.c.2.s8 %v495
    %v2228 = vunpack.c.3.s8 %v494
    %v2229 = vunpack.c.3.s8 %v495
    %v2230 = vunpack.c.0.s8 %v496
    %v2231 = vunpack.c.0.s8 %v497
    %v2232 = vunpack.c.1.s8 %v496
    %v2233 = vunpack.c.1.s8 %v497
    %v2234 = vunpack.c.2.s8 %v496
    %v2235 = vunpack.c.2.s8 %v497
    %v2236 = vunpack.c.3.s8 %v496
    %v2237 = vunpack.c.3.s8 %v497
    %v2238 = vunpack.c.0.s8 %v498
    %v2239 = vunpack.c.0.s8 %v499
    %v2240 = vunpack.c.1.s8 %v498
    %v2241 = vunpack.c.1.s8 %v499
    %v2242 = vunpack.c.2.s8 %v498
    %v2243 = vunpack.c.2.s8 %v499
    %v2244 = vunpack.c.3.s8 %v498
    %v2245 = vunpack.c.3.s8 %v499
    %v2246 = vunpack.c.0.s8 %v500
    %v2247 = vunpack.c.0.s8 %v501
    %v2248 = vunpack.c.1.s8 %v500
    %v2249 = vunpack.c.1.s8 %v501
    %v2250 = vunpack.c.2.s8 %v500
    %v2251 = vunpack.c.2.s8 %v501
    %v2252 = vunpack.c.3.s8 %v500
    %v2253 = vunpack.c.3.s8 %v501
    %v2254 = vunpack.c.0.s8 %v502
    %v2255 = vunpack.c.0.s8 %v503
    %v2256 = vunpack.c.1.s8 %v502
    %v2257 = vunpack.c.1.s8 %v503
    %v2258 = vunpack.c.2.s8 %v502
    %v2259 = vunpack.c.2.s8 %v503
    %v2260 = vunpack.c.3.s8 %v502
    %v2261 = vunpack.c.3.s8 %v503
    %v2262 = vunpack.c.0.s8 %v504
    %v2263 = vunpack.c.0.s8 %v505
    %v2264 = vunpack.c.1.s8 %v504
    %v2265 = vunpack.c.1.s8 %v505
    %v2266 = vunpack.c.2.s8 %v504
    %v2267 = vunpack.c.2.s8 %v505
    %v2268 = vunpack.c.3.s8 %v504
    %v2269 = vunpack.c.3.s8 %v505
    %v2270 = vcvt.s32.f32 %v926
    %v2271 = vcvt.s32.f32 %v927
    %v2272 = vcvt.s32.f32 %v928
    %v2273 = vcvt.s32.f32 %v929
    %v2274 = vcvt.s32.f32 %v930
    %v2275 = vcvt.s32.f32 %v931
    %v2276 = vcvt.s32.f32 %v932
    %v2277 = vcvt.s32.f32 %v933
    %v2278 = vcvt.s32.f32 %v934
    %v2279 = vcvt.s32.f32 %v935
    %v2280 = vcvt.s32.f32 %v936
    %v2281 = vcvt.s32.f32 %v937
    %v2282 = vcvt.s32.f32 %v938
    %v2283 = vcvt.s32.f32 %v939
    %v2284 = vcvt.s32.f32 %v940
    %v2285 = vcvt.s32.f32 %v941
    %v2286 = vcvt.s32.f32 %v942
    %v2287 = vcvt.s32.f32 %v943
    %v2288 = vcvt.s32.f32 %v944
    %v2289 = vcvt.s32.f32 %v945
    %v2290 = vcvt.s32.f32 %v946
    %v2291 = vcvt.s32.f32 %v947
    %v2292 = vcvt.s32.f32 %v948
    %v2293 = vcvt.s32.f32 %v949
    %v2294 = vcvt.s32.f32 %v950
    %v2295 = vcvt.s32.f32 %v951
    %v2296 = vcvt.s32.f32 %v952
    %v2297 = vcvt.s32.f32 %v953
    %v2298 = vcvt.s32.f32 %v954
    %v2299 = vcvt.s32.f32 %v955
    %v2300 = vcvt.s32.f32 %v956
    %v2301 = vcvt.s32.f32 %v957
    %v2302 = vcvt.s32.f32 %v958
    %v2303 = vcvt.s32.f32 %v959
    %v2304 = vcvt.s32.f32 %v960
    %v2305 = vcvt.s32.f32 %v961
    %v2306 = vcvt.s32.f32 %v962
    %v2307 = vcvt.s32.f32 %v963
    %v2308 = vcvt.s32.f32 %v964
    %v2309 = vcvt.s32.f32 %v965
    %v2310 = vcvt.s32.f32 %v966
    %v2311 = vcvt.s32.f32 %v967
    %v2312 = vcvt.s32.f32 %v968
    %v2313 = vcvt.s32.f32 %v969
    %v2314 = vcvt.s32.f32 %v970
    %v2315 = vcvt.s32.f32 %v971
    %v2316 = vcvt.s32.f32 %v972
    %v2317 = vcvt.s32.f32 %v973
    %v2318 = vcvt.s32.f32 %v974
    %v2319 = vcvt.s32.f32 %v975
    %v2320 = vcvt.s32.f32 %v976
    %v2321 = vcvt.s32.f32 %v977
    %v2322 = vcvt.s32.f32 %v978
    %v2323 = vcvt.s32.f32 %v979
    %v2324 = vcvt.s32.f32 %v980
    %v2325 = vcvt.s32.f32 %v981
    %v2326 = vcvt.s32.f32 %v982
    %v2327 = vcvt.s32.f32 %v983
    %v2328 = vcvt.s32.f32 %v984
    %v2329 = vcvt.s32.f32 %v985
    %v2330 = vcvt.s32.f32 %v986
    %v2331 = vcvt.s32.f32 %v987
    %v2332 = vcvt.s32.f32 %v988
    %v2333 = vcvt.s32.f32 %v989
    %v2334 = vcvt.s32.f32 %v990
    %v2335 = vcvt.s32.f32 %v991
    %v2336 = vcvt.s32.f32 %v992
    %v2337 = vcvt.s32.f32 %v993
    %v2338 = vcvt.s32.f32 %v994
    %v2339 = vcvt.s32.f32 %v995
    %v2340 = vcvt.s32.f32 %v996
    %v2341 = vcvt.s32.f32 %v997
    %v2342 = vcvt.s32.f32 %v998
    %v2343 = vcvt.s32.f32 %v999
    %v2344 = vcvt.s32.f32 %v1000
    %v2345 = vcvt.s32.f32 %v1001
    %v2346 = vcvt.s32.f32 %v1002
    %v2347 = vcvt.s32.f32 %v1003
    %v2348 = vcvt.s32.f32 %v1004
    %v2349 = vcvt.s32.f32 %v1005
    %v2350 = vcvt.s32.f32 %v1006
    %v2351 = vcvt.s32.f32 %v1007
    %v2352 = vcvt.s32.f32 %v1008
    %v2353 = vcvt.s32.f32 %v1009
    %v2354 = vcvt.s32.f32 %v1010
    %v2355 = vcvt.s32.f32 %v1011
    %v2356 = vcvt.s32.f32 %v1012
    %v2357 = vcvt.s32.f32 %v1013
    %v2358 = vcvt.s32.f32 %v1014
    %v2359 = vcvt.s32.f32 %v1015
    %v2360 = vcvt.s32.f32 %v1016
    %v2361 = vcvt.s32.f32 %v1017
    %v2362 = vcvt.s32.f32 %v1018
    %v2363 = vcvt.s32.f32 %v1019
    %v2364 = vcvt.s32.f32 %v1020
    %v2365 = vcvt.s32.f32 %v1021
    %v2366 = vcvt.s32.f32 %v1022
    %v2367 = vcvt.s32.f32 %v1023
    %v2368 = vcvt.s32.f32 %v1024
    %v2369 = vcvt.s32.f32 %v1025
    %v2370 = vcvt.s32.f32 %v1026
    %v2371 = vcvt.s32.f32 %v1027
    %v2372 = vcvt.s32.f32 %v1028
    %v2373 = vcvt.s32.f32 %v1029
    %v2374 = vcvt.s32.f32 %v1030
    %v2375 = vcvt.s32.f32 %v1031
    %v2376 = vcvt.s32.f32 %v1032
    %v2377 = vcvt.s32.f32 %v1033
    %v2378 = vcvt.s32.f32 %v1034
    %v2379 = vcvt.s32.f32 %v1035
    %v2380 = vcvt.s32.f32 %v1036
    %v2381 = vcvt.s32.f32 %v1037
    %v2382 = vcvt.s32.f32 %v1038
    %v2383 = vcvt.s32.f32 %v1039
    %v2384 = vcvt.s32.f32 %v1040
    %v2385 = vcvt.s32.f32 %v1041
    %v2386 = vcvt.s32.f32 %v1042
    %v2387 = vcvt.s32.f32 %v1043
    %v2388 = vcvt.s32.f32 %v1044
    %v2389 = vcvt.s32.f32 %v1045
    %v2390 = vcvt.s32.f32 %v1046
    %v2391 = vcvt.s32.f32 %v1047
    %v2392 = vcvt.s32.f32 %v1048
    %v2393 = vcvt.s32.f32 %v1049
    %v2394 = vcvt.s32.f32 %v1050
    %v2395 = vcvt.s32.f32 %v1051
    %v2396 = vcvt.s32.f32 %v1052
    %v2397 = vcvt.s32.f32 %v1053
    %v2398 = vcvt.s32.f32 %v1054
    %v2399 = vcvt.s32.f32 %v1055
    %v2400 = vcvt.s32.f32 %v1056
    %v2401 = vcvt.s32.f32 %v1057
    %v2402 = vcvt.s32.f32 %v1058
    %v2403 = vcvt.s32.f32 %v1059
    %v2404 = vcvt.s32.f32 %v1060
    %v2405 = vcvt.s32.f32 %v1061
    %v2406 = vcvt.s32.f32 %v1062
    %v2407 = vcvt.s32.f32 %v1063
    %v2408 = vcvt.s32.f32 %v1064
    %v2409 = vcvt.s32.f32 %v1065
    %v2410 = vcvt.s32.f32 %v1066
    %v2411 = vcvt.s32.f32 %v1067
    %v2412 = vcvt.s32.f32 %v1068
    %v2413 = vcvt.s32.f32 %v1069
    %v2414 = vcvt.s32.f32 %v1070
    %v2415 = vcvt.s32.f32 %v1071
    %v2416 = vcvt.s32.f32 %v1072
    %v2417 = vcvt.s32.f32 %v1073
    %v2418 = vcvt.s32.f32 %v1074
    %v2419 = vcvt.s32.f32 %v1075
    %v2420 = vcvt.s32.f32 %v1076
    %v2421 = vcvt.s32.f32 %v1077
    %v2422 = vcvt.s32.f32 %v1078
    %v2423 = vcvt.s32.f32 %v1079
    %v2424 = vcvt.s32.f32 %v1080
    %v2425 = vcvt.s32.f32 %v1081
    %v2426 = vcvt.s32.f32 %v1082
    %v2427 = vcvt.s32.f32 %v1083
    %v2428 = vcvt.s32.f32 %v1084
    %v2429 = vcvt.s32.f32 %v1085
    %v2430 = vcvt.s32.f32 %v1086
    %v2431 = vcvt.s32.f32 %v1087
    %v2432 = vcvt.s32.f32 %v1088
    %v2433 = vcvt.s32.f32 %v1089
    %v2434 = vcvt.s32.f32 %v1090
    %v2435 = vcvt.s32.f32 %v1091
    %v2436 = vcvt.s32.f32 %v1092
    %v2437 = vcvt.s32.f32 %v1093
    %v2438 = vcvt.s32.f32 %v1094
    %v2439 = vcvt.s32.f32 %v1095
    %v2440 = vcvt.s32.f32 %v1096
    %v2441 = vcvt.s32.f32 %v1097
    %v2442 = vcvt.s32.f32 %v1098
    %v2443 = vcvt.s32.f32 %v1099
    %v2444 = vcvt.s32.f32 %v1100
    %v2445 = vcvt.s32.f32 %v1101
    %v2446 = vcvt.s32.f32 %v1102
    %v2447 = vcvt.s32.f32 %v1103
    %v2448 = vcvt.s32.f32 %v1104
    %v2449 = vcvt.s32.f32 %v1105
    %v2450 = vcvt.s32.f32 %v1106
    %v2451 = vcvt.s32.f32 %v1107
    %v2452 = vcvt.s32.f32 %v1108
    %v2453 = vcvt.s32.f32 %v1109
    %v2454 = vcvt.s32.f32 %v1110
    %v2455 = vcvt.s32.f32 %v1111
    %v2456 = vcvt.s32.f32 %v1112
    %v2457 = vcvt.s32.f32 %v1113
    %v2458 = vcvt.s32.f32 %v1114
    %v2459 = vcvt.s32.f32 %v1115
    %v2460 = vcvt.s32.f32 %v1116
    %v2461 = vcvt.s32.f32 %v1117
    %v2462 = vcvt.s32.f32 %v1118
    %v2463 = vcvt.s32.f32 %v1119
    %v2464 = vcvt.s32.f32 %v1120
    %v2465 = vcvt.s32.f32 %v1121
    %v2466 = vcvt.s32.f32 %v1122
    %v2467 = vcvt.s32.f32 %v1123
    %v2468 = vcvt.s32.f32 %v1124
    %v2469 = vcvt.s32.f32 %v1125
    %v2470 = vcvt.s32.f32 %v1126
    %v2471 = vcvt.s32.f32 %v1127
    %v2472 = vcvt.s32.f32 %v1128
    %v2473 = vcvt.s32.f32 %v1129
    %v2474 = vcvt.s32.f32 %v1130
    %v2475 = vcvt.s32.f32 %v1131
    %v2476 = vcvt.s32.f32 %v1132
    %v2477 = vcvt.s32.f32 %v1133
    %v2478 = vcvt.s32.f32 %v1134
    %v2479 = vcvt.s32.f32 %v1135
    %v2480 = vcvt.s32.f32 %v1136
    %v2481 = vcvt.s32.f32 %v1137
    %v2482 = vcvt.s32.f32 %v1138
    %v2483 = vcvt.s32.f32 %v1139
    %v2484 = vcvt.s32.f32 %v1140
    %v2485 = vcvt.s32.f32 %v1141
    %v2486 = vcvt.s32.f32 %v1142
    %v2487 = vcvt.s32.f32 %v1143
    %v2488 = vcvt.s32.f32 %v1144
    %v2489 = vcvt.s32.f32 %v1145
    %v2490 = vcvt.s32.f32 %v1146
    %v2491 = vcvt.s32.f32 %v1147
    %v2492 = vcvt.s32.f32 %v1148
    %v2493 = vcvt.s32.f32 %v1149
    %v2494 = vcvt.s32.f32 %v1150
    %v2495 = vcvt.s32.f32 %v1151
    %v2496 = vcvt.s32.f32 %v1152
    %v2497 = vcvt.s32.f32 %v1153
    %v2498 = vcvt.s32.f32 %v1154
    %v2499 = vcvt.s32.f32 %v1155
    %v2500 = vcvt.s32.f32 %v1156
    %v2501 = vcvt.s32.f32 %v1157
    %v2502 = vcvt.s32.f32 %v1158
    %v2503 = vcvt.s32.f32 %v1159
    %v2504 = vcvt.s32.f32 %v1160
    %v2505 = vcvt.s32.f32 %v1161
    %v2506 = vcvt.s32.f32 %v1162
    %v2507 = vcvt.s32.f32 %v1163
    %v2508 = vcvt.s32.f32 %v1164
    %v2509 = vcvt.s32.f32 %v1165
    %v2510 = vcvt.s32.f32 %v1166
    %v2511 = vcvt.s32.f32 %v1167
    %v2512 = vcvt.s32.f32 %v1168
    %v2513 = vcvt.s32.f32 %v1169
    %v2514 = vcvt.s32.f32 %v1170
    %v2515 = vcvt.s32.f32 %v1171
    %v2516 = vcvt.s32.f32 %v1172
    %v2517 = vcvt.s32.f32 %v1173
    %v2518 = vcvt.s32.f32 %v1174
    %v2519 = vcvt.s32.f32 %v1175
    %v2520 = vcvt.s32.f32 %v1176
    %v2521 = vcvt.s32.f32 %v1177
    %v2522 = vcvt.s32.f32 %v1178
    %v2523 = vcvt.s32.f32 %v1179
    %v2524 = vcvt.s32.f32 %v1180
    %v2525 = vcvt.s32.f32 %v1181
    %v2526 = vcvt.s32.f32 %v1182
    %v2527 = vcvt.s32.f32 %v1183
    %v2528 = vcvt.s32.f32 %v1184
    %v2529 = vcvt.s32.f32 %v1185
    %v2530 = vcvt.s32.f32 %v1186
    %v2531 = vcvt.s32.f32 %v1187
    %v2532 = vcvt.s32.f32 %v1188
    %v2533 = vcvt.s32.f32 %v1189
    %v2534 = vcvt.s32.f32 %v1190
    %v2535 = vcvt.s32.f32 %v1191
    %v2536 = vcvt.s32.f32 %v1192
    %v2537 = vcvt.s32.f32 %v1193
    %v2538 = vcvt.s32.f32 %v1194
    %v2539 = vcvt.s32.f32 %v1195
    %v2540 = vcvt.s32.f32 %v1196
    %v2541 = vcvt.s32.f32 %v1197
    %v2542 = vcvt.s32.f32 %v1198
    %v2543 = vcvt.s32.f32 %v1199
    %v2544 = vcvt.s32.f32 %v1200
    %v2545 = vcvt.s32.f32 %v1201
    %v2546 = vcvt.s32.f32 %v1202
    %v2547 = vcvt.s32.f32 %v1203
    %v2548 = vcvt.s32.f32 %v1204
    %v2549 = vcvt.s32.f32 %v1205
    %v2550 = vcvt.s32.f32 %v1206
    %v2551 = vcvt.s32.f32 %v1207
    %v2552 = vcvt.s32.f32 %v1208
    %v2553 = vcvt.s32.f32 %v1209
    %v2554 = vcvt.s32.f32 %v1210
    %v2555 = vcvt.s32.f32 %v1211
    %v2556 = vcvt.s32.f32 %v1212
    %v2557 = vcvt.s32.f32 %v1213
    %v2558 = vcvt.s32.f32 %v1214
    %v2559 = vcvt.s32.f32 %v1215
    %v2560 = vcvt.s32.f32 %v1216
    %v2561 = vcvt.s32.f32 %v1217
    %v2562 = vcvt.s32.f32 %v1218
    %v2563 = vcvt.s32.f32 %v1219
    %v2564 = vcvt.s32.f32 %v1220
    %v2565 = vcvt.s32.f32 %v1221
    %v2566 = vcvt.s32.f32 %v1222
    %v2567 = vcvt.s32.f32 %v1223
    %v2568 = vcvt.s32.f32 %v1224
    %v2569 = vcvt.s32.f32 %v1225
    %v2570 = vcvt.s32.f32 %v1226
    %v2571 = vcvt.s32.f32 %v1227
    %v2572 = vcvt.s32.f32 %v1228
    %v2573 = vcvt.s32.f32 %v1229
    %v2574 = vcvt.s32.f32 %v1230
    %v2575 = vcvt.s32.f32 %v1231
    %v2576 = vcvt.s32.f32 %v1232
    %v2577 = vcvt.s32.f32 %v1233
    %v2578 = vcvt.s32.f32 %v1234
    %v2579 = vcvt.s32.f32 %v1235
    %v2580 = vcvt.s32.f32 %v1236
    %v2581 = vcvt.s32.f32 %v1237
    %v2582 = vcvt.s32.f32 %v1238
    %v2583 = vcvt.s32.f32 %v1239
    %v2584 = vcvt.s32.f32 %v1240
    %v2585 = vcvt.s32.f32 %v1241
    %v2586 = vcvt.s32.f32 %v1242
    %v2587 = vcvt.s32.f32 %v1243
    %v2588 = vcvt.s32.f32 %v1244
    %v2589 = vcvt.s32.f32 %v1245
    %v2590 = vcvt.s32.f32 %v1246
    %v2591 = vcvt.s32.f32 %v1247
    %v2592 = vcvt.s32.f32 %v1248
    %v2593 = vcvt.s32.f32 %v1249
    %v2594 = vcvt.s32.f32 %v1250
    %v2595 = vcvt.s32.f32 %v1251
    %v2596 = vcvt.s32.f32 %v1252
    %v2597 = vcvt.s32.f32 %v1253
    %v2598 = vcvt.s32.f32 %v1254
    %v2599 = vcvt.s32.f32 %v1255
    %v2600 = vcvt.s32.f32 %v1256
    %v2601 = vcvt.s32.f32 %v1257
    %v2602 = vcvt.s32.f32 %v1258
    %v2603 = vcvt.s32.f32 %v1259
    %v2604 = vcvt.s32.f32 %v1260
    %v2605 = vcvt.s32.f32 %v1261
    %v2606 = vcvt.s32.f32 %v1262
    %v2607 = vcvt.s32.f32 %v1263
    %v2608 = vcvt.s32.f32 %v1264
    %v2609 = vcvt.s32.f32 %v1265
    %v2610 = vcvt.s32.f32 %v1266
    %v2611 = vcvt.s32.f32 %v1267
    %v2612 = vcvt.s32.f32 %v1268
    %v2613 = vcvt.s32.f32 %v1269
    %v2614 = vcvt.s32.f32 %v1270
    %v2615 = vcvt.s32.f32 %v1271
    %v2616 = vcvt.s32.f32 %v1272
    %v2617 = vcvt.s32.f32 %v1273
    %v2618 = vcvt.s32.f32 %v1274
    %v2619 = vcvt.s32.f32 %v1275
    %v2620 = vcvt.s32.f32 %v1276
    %v2621 = vcvt.s32.f32 %v1277
    %v2622 = vcvt.s32.f32 %v1278
    %v2623 = vcvt.s32.f32 %v1279
    %v2624 = vcvt.s32.f32 %v1280
    %v2625 = vcvt.s32.f32 %v1281
    %v2626 = vcvt.s32.f32 %v1282
    %v2627 = vcvt.s32.f32 %v1283
    %v2628 = vcvt.s32.f32 %v1284
    %v2629 = vcvt.s32.f32 %v1285
    %v2630 = vcvt.s32.f32 %v1286
    %v2631 = vcvt.s32.f32 %v1287
    %v2632 = vcvt.s32.f32 %v1288
    %v2633 = vcvt.s32.f32 %v1289
    %v2634 = vcvt.s32.f32 %v1290
    %v2635 = vcvt.s32.f32 %v1291
    %v2636 = vcvt.s32.f32 %v1292
    %v2637 = vcvt.s32.f32 %v1293
    %v2638 = vcvt.s32.f32 %v1294
    %v2639 = vcvt.s32.f32 %v1295
    %v2640 = vcvt.s32.f32 %v1296
    %v2641 = vcvt.s32.f32 %v1297
    %v2642 = vcvt.s32.f32 %v1298
    %v2643 = vcvt.s32.f32 %v1299
    %v2644 = vcvt.s32.f32 %v1300
    %v2645 = vcvt.s32.f32 %v1301
    %v2646 = vcvt.s32.f32 %v1302
    %v2647 = vcvt.s32.f32 %v1303
    %v2648 = vcvt.s32.f32 %v1304
    %v2649 = vcvt.s32.f32 %v1305
    %v2650 = vcvt.s32.f32 %v1306
    %v2651 = vcvt.s32.f32 %v1307
    %v2652 = vcvt.s32.f32 %v1308
    %v2653 = vcvt.s32.f32 %v1309
    %v2654 = vcvt.s32.f32 %v1310
    %v2655 = vcvt.s32.f32 %v1311
    %v2656 = vcvt.s32.f32 %v1312
    %v2657 = vcvt.s32.f32 %v1313
    %v2658 = vcvt.s32.f32 %v1314
    %v2659 = vcvt.s32.f32 %v1315
    %v2660 = vcvt.s32.f32 %v1316
    %v2661 = vcvt.s32.f32 %v1317
    %v2662 = vcvt.s32.f32 %v1318
    %v2663 = vcvt.s32.f32 %v1319
    %v2664 = vcvt.s32.f32 %v1320
    %v2665 = vcvt.s32.f32 %v1321
    %v2666 = vcvt.s32.f32 %v1322
    %v2667 = vcvt.s32.f32 %v1323
    %v2668 = vcvt.s32.f32 %v1324
    %v2669 = vcvt.s32.f32 %v1325
    %v2670 = vcvt.s32.f32 %v1326
    %v2671 = vcvt.s32.f32 %v1327
    %v2672 = vcvt.s32.f32 %v1328
    %v2673 = vcvt.s32.f32 %v1329
    %v2674 = vcvt.s32.f32 %v1330
    %v2675 = vcvt.s32.f32 %v1331
    %v2676 = vcvt.s32.f32 %v1332
    %v2677 = vcvt.s32.f32 %v1333
    %v2678 = vcvt.s32.f32 %v1334
    %v2679 = vcvt.s32.f32 %v1335
    %v2680 = vcvt.s32.f32 %v1336
    %v2681 = vcvt.s32.f32 %v1337
    %v2682 = vcvt.s32.f32 %v1338
    %v2683 = vcvt.s32.f32 %v1339
    %v2684 = vcvt.s32.f32 %v1340
    %v2685 = vcvt.s32.f32 %v1341
    %v2686 = vcvt.s32.f32 %v1342
    %v2687 = vcvt.s32.f32 %v1343
    %v2688 = vcvt.s32.f32 %v1344
    %v2689 = vcvt.s32.f32 %v1345
    %v2690 = vcvt.s32.f32 %v1346
    %v2691 = vcvt.s32.f32 %v1347
    %v2692 = vcvt.s32.f32 %v1348
    %v2693 = vcvt.s32.f32 %v1349
    %v2694 = vcvt.s32.f32 %v1350
    %v2695 = vcvt.s32.f32 %v1351
    %v2696 = vcvt.s32.f32 %v1352
    %v2697 = vcvt.s32.f32 %v1353
    %v2698 = vcvt.s32.f32 %v1354
    %v2699 = vcvt.s32.f32 %v1355
    %v2700 = vcvt.s32.f32 %v1356
    %v2701 = vcvt.s32.f32 %v1357
    %v2702 = vcvt.s32.f32 %v1358
    %v2703 = vcvt.s32.f32 %v1359
    %v2704 = vcvt.s32.f32 %v1360
    %v2705 = vcvt.s32.f32 %v1361
    %v2706 = vcvt.s32.f32 %v1362
    %v2707 = vcvt.s32.f32 %v1363
    %v2708 = vcvt.s32.f32 %v1364
    %v2709 = vcvt.s32.f32 %v1365
    %v2710 = vcvt.s32.f32 %v1366
    %v2711 = vcvt.s32.f32 %v1367
    %v2712 = vcvt.s32.f32 %v1368
    %v2713 = vcvt.s32.f32 %v1369
    %v2714 = vcvt.s32.f32 %v1370
    %v2715 = vcvt.s32.f32 %v1371
    %v2716 = vcvt.s32.f32 %v1372
    %v2717 = vcvt.s32.f32 %v1373
    %v2718 = vcvt.s32.f32 %v1374
    %v2719 = vcvt.s32.f32 %v1375
    %v2720 = vcvt.s32.f32 %v1376
    %v2721 = vcvt.s32.f32 %v1377
    %v2722 = vcvt.s32.f32 %v1378
    %v2723 = vcvt.s32.f32 %v1379
    %v2724 = vcvt.s32.f32 %v1380
    %v2725 = vcvt.s32.f32 %v1381
    %v2726 = vcvt.s32.f32 %v1382
    %v2727 = vcvt.s32.f32 %v1383
    %v2728 = vcvt.s32.f32 %v1384
    %v2729 = vcvt.s32.f32 %v1385
    %v2730 = vcvt.s32.f32 %v1386
    %v2731 = vcvt.s32.f32 %v1387
    %v2732 = vcvt.s32.f32 %v1388
    %v2733 = vcvt.s32.f32 %v1389
    %v2734 = vcvt.s32.f32 %v1390
    %v2735 = vcvt.s32.f32 %v1391
    %v2736 = vcvt.s32.f32 %v1392
    %v2737 = vcvt.s32.f32 %v1393
    %v2738 = vcvt.s32.f32 %v1394
    %v2739 = vcvt.s32.f32 %v1395
    %v2740 = vcvt.s32.f32 %v1396
    %v2741 = vcvt.s32.f32 %v1397
    %v2742 = vcvt.s32.f32 %v1398
    %v2743 = vcvt.s32.f32 %v1399
    %v2744 = vcvt.s32.f32 %v1400
    %v2745 = vcvt.s32.f32 %v1401
    %v2746 = vcvt.s32.f32 %v1402
    %v2747 = vcvt.s32.f32 %v1403
    %v2748 = vcvt.s32.f32 %v1404
    %v2749 = vcvt.s32.f32 %v1405
    %v2750 = vcvt.s32.f32 %v1406
    %v2751 = vcvt.s32.f32 %v1407
    %v2752 = vcvt.s32.f32 %v1408
    %v2753 = vcvt.s32.f32 %v1409
    %v2754 = vcvt.s32.f32 %v1410
    %v2755 = vcvt.s32.f32 %v1411
    %v2756 = vcvt.s32.f32 %v1412
    %v2757 = vcvt.s32.f32 %v1413
    %v2758 = vcvt.s32.f32 %v1414
    %v2759 = vcvt.s32.f32 %v1415
    %v2760 = vcvt.s32.f32 %v1416
    %v2761 = vcvt.s32.f32 %v1417
    %v2762 = vcvt.s32.f32 %v1418
    %v2763 = vcvt.s32.f32 %v1419
    %v2764 = vcvt.s32.f32 %v1420
    %v2765 = vcvt.s32.f32 %v1421
    %v2766 = vcvt.s32.f32 %v1422
    %v2767 = vcvt.s32.f32 %v1423
    %v2768 = vcvt.s32.f32 %v1424
    %v2769 = vcvt.s32.f32 %v1425
    %v2770 = vcvt.s32.f32 %v1426
    %v2771 = vcvt.s32.f32 %v1427
    %v2772 = vcvt.s32.f32 %v1428
    %v2773 = vcvt.s32.f32 %v1429
    %v2774 = vcvt.s32.f32 %v1430
    %v2775 = vcvt.s32.f32 %v1431
    %v2776 = vcvt.s32.f32 %v1432
    %v2777 = vcvt.s32.f32 %v1433
    %v2778 = vcvt.s32.f32 %v1434
    %v2779 = vcvt.s32.f32 %v1435
    %v2780 = vcvt.s32.f32 %v1436
    %v2781 = vcvt.s32.f32 %v1437
    %v2782 = vcvt.s32.f32 %v1438
    %v2783 = vcvt.s32.f32 %v1439
    %v2784 = vcvt.s32.f32 %v1440
    %v2785 = vcvt.s32.f32 %v1441
    %v2786 = vcvt.s32.f32 %v1442
    %v2787 = vcvt.s32.f32 %v1443
    %v2788 = vcvt.s32.f32 %v1444
    %v2789 = vcvt.s32.f32 %v1445
    %v2790 = vcvt.s32.f32 %v1446
    %v2791 = vcvt.s32.f32 %v1447
    %v2792 = vcvt.s32.f32 %v1448
    %v2793 = vcvt.s32.f32 %v1449
    %v2794 = vcvt.s32.f32 %v1450
    %v2795 = vcvt.s32.f32 %v1451
    %v2796 = vcvt.s32.f32 %v1452
    %v2797 = vcvt.s32.f32 %v1453
    %v2798 = vcvt.s32.f32 %v1454
    %v2799 = vcvt.s32.f32 %v1455
    %v2800 = vcvt.s32.f32 %v1456
    %v2801 = vcvt.s32.f32 %v1457
    %v2802 = vcvt.s32.f32 %v1458
    %v2803 = vcvt.s32.f32 %v1459
    %v2804 = vcvt.s32.f32 %v1460
    %v2805 = vcvt.s32.f32 %v1461
    %v2806 = vcvt.s32.f32 %v1462
    %v2807 = vcvt.s32.f32 %v1463
    %v2808 = vcvt.s32.f32 %v1464
    %v2809 = vcvt.s32.f32 %v1465
    %v2810 = vcvt.s32.f32 %v1466
    %v2811 = vcvt.s32.f32 %v1467
    %v2812 = vcvt.s32.f32 %v1468
    %v2813 = vcvt.s32.f32 %v1469
    %v2814 = vcvt.s32.f32 %v1470
    %v2815 = vcvt.s32.f32 %v1471
    %v2816 = vcvt.s32.f32 %v1472
    %v2817 = vcvt.s32.f32 %v1473
    %v2818 = vcvt.s32.f32 %v1474
    %v2819 = vcvt.s32.f32 %v1475
    %v2820 = vcvt.s32.f32 %v1476
    %v2821 = vcvt.s32.f32 %v1477
    %v2822 = vcvt.s32.f32 %v1478
    %v2823 = vcvt.s32.f32 %v1479
    %v2824 = vcvt.s32.f32 %v1480
    %v2825 = vcvt.s32.f32 %v1481
    %v2826 = vcvt.s32.f32 %v1482
    %v2827 = vcvt.s32.f32 %v1483
    %v2828 = vcvt.s32.f32 %v1484
    %v2829 = vcvt.s32.f32 %v1485
    %v2830 = vcvt.s32.f32 %v1486
    %v2831 = vcvt.s32.f32 %v1487
    %v2832 = vcvt.s32.f32 %v1488
    %v2833 = vcvt.s32.f32 %v1489
    %v2834 = vcvt.s32.f32 %v1490
    %v2835 = vcvt.s32.f32 %v1491
    %v2836 = vcvt.s32.f32 %v1492
    %v2837 = vcvt.s32.f32 %v1493
    %v2838 = vcvt.s32.f32 %v1494
    %v2839 = vcvt.s32.f32 %v1495
    %v2840 = vcvt.s32.f32 %v1496
    %v2841 = vcvt.s32.f32 %v1497
    %v2842 = vcvt.s32.f32 %v1498
    %v2843 = vcvt.s32.f32 %v1499
    %v2844 = vcvt.s32.f32 %v1500
    %v2845 = vcvt.s32.f32 %v1501
    %v2846 = vcvt.s32.f32 %v1502
    %v2847 = vcvt.s32.f32 %v1503
    %v2848 = vcvt.s32.f32 %v1504
    %v2849 = vcvt.s32.f32 %v1505
    %v2850 = vcvt.s32.f32 %v1506
    %v2851 = vcvt.s32.f32 %v1507
    %v2852 = vcvt.s32.f32 %v1508
    %v2853 = vcvt.s32.f32 %v1509
    %v2854 = vcvt.s32.f32 %v1510
    %v2855 = vcvt.s32.f32 %v1511
    %v2856 = vcvt.s32.f32 %v1512
    %v2857 = vcvt.s32.f32 %v1513
    %v2858 = vcvt.s32.f32 %v1514
    %v2859 = vcvt.s32.f32 %v1515
    %v2860 = vcvt.s32.f32 %v1516
    %v2861 = vcvt.s32.f32 %v1517
    %v2862 = vcvt.s32.f32 %v1518
    %v2863 = vcvt.s32.f32 %v1519
    %v2864 = vcvt.s32.f32 %v1520
    %v2865 = vcvt.s32.f32 %v1521
    %v2866 = vcvt.s32.f32 %v1522
    %v2867 = vcvt.s32.f32 %v1523
    %v2868 = vcvt.s32.f32 %v1524
    %v2869 = vcvt.s32.f32 %v1525
    %v2870 = vcvt.s32.f32 %v1526
    %v2871 = vcvt.s32.f32 %v1527
    %v2872 = vcvt.s32.f32 %v1528
    %v2873 = vcvt.s32.f32 %v1529
    %v2874 = vcvt.s32.f32 %v1530
    %v2875 = vcvt.s32.f32 %v1531
    %v2876 = vcvt.s32.f32 %v1532
    %v2877 = vcvt.s32.f32 %v1533
    %v2878 = vcvt.s32.f32 %v1534
    %v2879 = vcvt.s32.f32 %v1535
    %v2880 = vcvt.s32.f32 %v1536
    %v2881 = vcvt.s32.f32 %v1537
    %v2882 = vcvt.s32.f32 %v1538
    %v2883 = vcvt.s32.f32 %v1539
    %v2884 = vcvt.s32.f32 %v1540
    %v2885 = vcvt.s32.f32 %v1541
    %v2886 = vcvt.s32.f32 %v1542
    %v2887 = vcvt.s32.f32 %v1543
    %v2888 = vcvt.s32.f32 %v1544
    %v2889 = vcvt.s32.f32 %v1545
    %v2890 = vcvt.s32.f32 %v1546
    %v2891 = vcvt.s32.f32 %v1547
    %v2892 = vcvt.s32.f32 %v1548
    %v2893 = vcvt.s32.f32 %v1549
    %v2894 = vcvt.s32.f32 %v1550
    %v2895 = vcvt.s32.f32 %v1551
    %v2896 = vcvt.s32.f32 %v1552
    %v2897 = vcvt.s32.f32 %v1553
    %v2898 = vcvt.s32.f32 %v1554
    %v2899 = vcvt.s32.f32 %v1555
    %v2900 = vcvt.s32.f32 %v1556
    %v2901 = vcvt.s32.f32 %v1557
    %v2902 = vcvt.s32.f32 %v1558
    %v2903 = vcvt.s32.f32 %v1559
    %v2904 = vcvt.s32.f32 %v1560
    %v2905 = vcvt.s32.f32 %v1561
    %v2906 = vcvt.s32.f32 %v1562
    %v2907 = vcvt.s32.f32 %v1563
    %v2908 = vcvt.s32.f32 %v1564
    %v2909 = vcvt.s32.f32 %v1565
    %v2910 = vcvt.s32.f32 %v1566
    %v2911 = vcvt.s32.f32 %v1567
    %v2912 = vcvt.s32.f32 %v1568
    %v2913 = vcvt.s32.f32 %v1569
    %v2914 = vcvt.s32.f32 %v1570
    %v2915 = vcvt.s32.f32 %v1571
    %v2916 = vcvt.s32.f32 %v1572
    %v2917 = vcvt.s32.f32 %v1573
    %v2918 = vcvt.s32.f32 %v1574
    %v2919 = vcvt.s32.f32 %v1575
    %v2920 = vcvt.s32.f32 %v1576
    %v2921 = vcvt.s32.f32 %v1577
    %v2922 = vcvt.s32.f32 %v1578
    %v2923 = vcvt.s32.f32 %v1579
    %v2924 = vcvt.s32.f32 %v1580
    %v2925 = vcvt.s32.f32 %v1581
    %v2926 = vcvt.s32.f32 %v1582
    %v2927 = vcvt.s32.f32 %v1583
    %v2928 = vcvt.s32.f32 %v1584
    %v2929 = vcvt.s32.f32 %v1585
    %v2930 = vcvt.s32.f32 %v1586
    %v2931 = vcvt.s32.f32 %v1587
    %v2932 = vcvt.s32.f32 %v1588
    %v2933 = vcvt.s32.f32 %v1589
    %v2934 = vcvt.s32.f32 %v1590
    %v2935 = vcvt.s32.f32 %v1591
    %v2936 = vcvt.s32.f32 %v1592
    %v2937 = vcvt.s32.f32 %v1593
    %v2938 = vcvt.s32.f32 %v1594
    %v2939 = vcvt.s32.f32 %v1595
    %v2940 = vcvt.s32.f32 %v1596
    %v2941 = vcvt.s32.f32 %v1597
    %v2942 = vcvt.s32.f32 %v1598
    %v2943 = vcvt.s32.f32 %v1599
    %v2944 = vcvt.s32.f32 %v1600
    %v2945 = vcvt.s32.f32 %v1601
    %v2946 = vcvt.s32.f32 %v1602
    %v2947 = vcvt.s32.f32 %v1603
    %v2948 = vcvt.s32.f32 %v1604
    %v2949 = vcvt.s32.f32 %v1605
    %v2950 = vcvt.s32.f32 %v1606
    %v2951 = vcvt.s32.f32 %v1607
    %v2952 = vcvt.s32.f32 %v1608
    %v2953 = vcvt.s32.f32 %v1609
    %v2954 = vcvt.s32.f32 %v1610
    %v2955 = vcvt.s32.f32 %v1611
    %v2956 = vcvt.s32.f32 %v1612
    %v2957 = vcvt.s32.f32 %v1613
    %v2958 = vcvt.s32.f32 %v1614
    %v2959 = vcvt.s32.f32 %v1615
    %v2960 = vcvt.s32.f32 %v1616
    %v2961 = vcvt.s32.f32 %v1617
    %v2962 = vcvt.s32.f32 %v1618
    %v2963 = vcvt.s32.f32 %v1619
    %v2964 = vcvt.s32.f32 %v1620
    %v2965 = vcvt.s32.f32 %v1621
    %v2966 = vcvt.s32.f32 %v1622
    %v2967 = vcvt.s32.f32 %v1623
    %v2968 = vcvt.s32.f32 %v1624
    %v2969 = vcvt.s32.f32 %v1625
    %v2970 = vcvt.s32.f32 %v1626
    %v2971 = vcvt.s32.f32 %v1627
    %v2972 = vcvt.s32.f32 %v1628
    %v2973 = vcvt.s32.f32 %v1629
    %v2974 = vcvt.s32.f32 %v1630
    %v2975 = vcvt.s32.f32 %v1631
    %v2976 = vcvt.s32.f32 %v1632
    %v2977 = vcvt.s32.f32 %v1633
    %v2978 = vcvt.s32.f32 %v1634
    %v2979 = vcvt.s32.f32 %v1635
    %v2980 = vcvt.s32.f32 %v1636
    %v2981 = vcvt.s32.f32 %v1637
    %v2982 = vcvt.s32.f32 %v1638
    %v2983 = vcvt.s32.f32 %v1639
    %v2984 = vcvt.s32.f32 %v1640
    %v2985 = vcvt.s32.f32 %v1641
    %v2986 = vcvt.s32.f32 %v1642
    %v2987 = vcvt.s32.f32 %v1643
    %v2988 = vcvt.s32.f32 %v1644
    %v2989 = vcvt.s32.f32 %v1645
    %v2990 = vcvt.s32.f32 %v1646
    %v2991 = vcvt.s32.f32 %v1647
    %v2992 = vcvt.s32.f32 %v1648
    %v2993 = vcvt.s32.f32 %v1649
    %v2994 = vcvt.s32.f32 %v1650
    %v2995 = vcvt.s32.f32 %v1651
    %v2996 = vcvt.s32.f32 %v1652
    %v2997 = vcvt.s32.f32 %v1653
    %v2998 = vcvt.s32.f32 %v1654
    %v2999 = vcvt.s32.f32 %v1655
    %v3000 = vcvt.s32.f32 %v1656
    %v3001 = vcvt.s32.f32 %v1657
    %v3002 = vcvt.s32.f32 %v1658
    %v3003 = vcvt.s32.f32 %v1659
    %v3004 = vcvt.s32.f32 %v1660
    %v3005 = vcvt.s32.f32 %v1661
    %v3006 = vcvt.s32.f32 %v1662
    %v3007 = vcvt.s32.f32 %v1663
    %v3008 = vcvt.s32.f32 %v1664
    %v3009 = vcvt.s32.f32 %v1665
    %v3010 = vcvt.s32.f32 %v1666
    %v3011 = vcvt.s32.f32 %v1667
    %v3012 = vcvt.s32.f32 %v1668
    %v3013 = vcvt.s32.f32 %v1669
    %v3014 = vcvt.s32.f32 %v1670
    %v3015 = vcvt.s32.f32 %v1671
    %v3016 = vcvt.s32.f32 %v1672
    %v3017 = vcvt.s32.f32 %v1673
    %v3018 = vcvt.s32.f32 %v1674
    %v3019 = vcvt.s32.f32 %v1675
    %v3020 = vcvt.s32.f32 %v1676
    %v3021 = vcvt.s32.f32 %v1677
    %v3022 = vcvt.s32.f32 %v1678
    %v3023 = vcvt.s32.f32 %v1679
    %v3024 = vcvt.s32.f32 %v1680
    %v3025 = vcvt.s32.f32 %v1681
    %v3026 = vcvt.s32.f32 %v1682
    %v3027 = vcvt.s32.f32 %v1683
    %v3028 = vcvt.s32.f32 %v1684
    %v3029 = vcvt.s32.f32 %v1685
    %v3030 = vcvt.s32.f32 %v1686
    %v3031 = vcvt.s32.f32 %v1687
    %v3032 = vcvt.s32.f32 %v1688
    %v3033 = vcvt.s32.f32 %v1689
    %v3034 = vcvt.s32.f32 %v1690
    %v3035 = vcvt.s32.f32 %v1691
    %v3036 = vcvt.s32.f32 %v1692
    %v3037 = vcvt.s32.f32 %v1693
    %v3038 = vcvt.s32.f32 %v1694
    %v3039 = vcvt.s32.f32 %v1695
    %v3040 = vcvt.s32.f32 %v1696
    %v3041 = vcvt.s32.f32 %v1697
    %v3042 = vcvt.s32.f32 %v1698
    %v3043 = vcvt.s32.f32 %v1699
    %v3044 = vcvt.s32.f32 %v1700
    %v3045 = vcvt.s32.f32 %v1701
    %v3046 = vcvt.s32.f32 %v1702
    %v3047 = vcvt.s32.f32 %v1703
    %v3048 = vcvt.s32.f32 %v1704
    %v3049 = vcvt.s32.f32 %v1705
    %v3050 = vcvt.s32.f32 %v1706
    %v3051 = vcvt.s32.f32 %v1707
    %v3052 = vcvt.s32.f32 %v1708
    %v3053 = vcvt.s32.f32 %v1709
    %v3054 = vcvt.s32.f32 %v1710
    %v3055 = vcvt.s32.f32 %v1711
    %v3056 = vcvt.s32.f32 %v1712
    %v3057 = vcvt.s32.f32 %v1713
    %v3058 = vcvt.s32.f32 %v1714
    %v3059 = vcvt.s32.f32 %v1715
    %v3060 = vcvt.s32.f32 %v1716
    %v3061 = vcvt.s32.f32 %v1717
    %v3062 = vcvt.s32.f32 %v1718
    %v3063 = vcvt.s32.f32 %v1719
    %v3064 = vcvt.s32.f32 %v1720
    %v3065 = vcvt.s32.f32 %v1721
    %v3066 = vcvt.s32.f32 %v1722
    %v3067 = vcvt.s32.f32 %v1723
    %v3068 = vcvt.s32.f32 %v1724
    %v3069 = vcvt.s32.f32 %v1725
    %v3070 = vcvt.s32.f32 %v1726
    %v3071 = vcvt.s32.f32 %v1727
    %v3072 = vcvt.s32.f32 %v1728
    %v3073 = vcvt.s32.f32 %v1729
    %v3074 = vcvt.s32.f32 %v1730
    %v3075 = vcvt.s32.f32 %v1731
    %v3076 = vcvt.s32.f32 %v1732
    %v3077 = vcvt.s32.f32 %v1733
    %v3078 = vcvt.s32.f32 %v1734
    %v3079 = vcvt.s32.f32 %v1735
    %v3080 = vcvt.s32.f32 %v1736
    %v3081 = vcvt.s32.f32 %v1737
    %v3082 = vcvt.s32.f32 %v1738
    %v3083 = vcvt.s32.f32 %v1739
    %v3084 = vcvt.s32.f32 %v1740
    %v3085 = vcvt.s32.f32 %v1741
    %v3086 = vcvt.s32.f32 %v1742
    %v3087 = vcvt.s32.f32 %v1743
    %v3088 = vcvt.s32.f32 %v1744
    %v3089 = vcvt.s32.f32 %v1745
    %v3090 = vcvt.s32.f32 %v1746
    %v3091 = vcvt.s32.f32 %v1747
    %v3092 = vcvt.s32.f32 %v1748
    %v3093 = vcvt.s32.f32 %v1749
    %v3094 = vcvt.s32.f32 %v1750
    %v3095 = vcvt.s32.f32 %v1751
    %v3096 = vcvt.s32.f32 %v1752
    %v3097 = vcvt.s32.f32 %v1753
    %v3098 = vcvt.s32.f32 %v1754
    %v3099 = vcvt.s32.f32 %v1755
    %v3100 = vcvt.s32.f32 %v1756
    %v3101 = vcvt.s32.f32 %v1757
    %v3102 = vcvt.s32.f32 %v1758
    %v3103 = vcvt.s32.f32 %v1759
    %v3104 = vcvt.s32.f32 %v1760
    %v3105 = vcvt.s32.f32 %v1761
    %v3106 = vcvt.s32.f32 %v1762
    %v3107 = vcvt.s32.f32 %v1763
    %v3108 = vcvt.s32.f32 %v1764
    %v3109 = vcvt.s32.f32 %v1765
    %v3110 = vcvt.s32.f32 %v1766
    %v3111 = vcvt.s32.f32 %v1767
    %v3112 = vcvt.s32.f32 %v1768
    %v3113 = vcvt.s32.f32 %v1769
    %v3114 = vcvt.s32.f32 %v1770
    %v3115 = vcvt.s32.f32 %v1771
    %v3116 = vcvt.s32.f32 %v1772
    %v3117 = vcvt.s32.f32 %v1773
    %v3118 = vcvt.s32.f32 %v1774
    %v3119 = vcvt.s32.f32 %v1775
    %v3120 = vcvt.s32.f32 %v1776
    %v3121 = vcvt.s32.f32 %v1777
    %v3122 = vcvt.s32.f32 %v1778
    %v3123 = vcvt.s32.f32 %v1779
    %v3124 = vcvt.s32.f32 %v1780
    %v3125 = vcvt.s32.f32 %v1781
    %v3126 = vcvt.s32.f32 %v1782
    %v3127 = vcvt.s32.f32 %v1783
    %v3128 = vcvt.s32.f32 %v1784
    %v3129 = vcvt.s32.f32 %v1785
    %v3130 = vcvt.s32.f32 %v1786
    %v3131 = vcvt.s32.f32 %v1787
    %v3132 = vcvt.s32.f32 %v1788
    %v3133 = vcvt.s32.f32 %v1789
    %v3134 = vcvt.s32.f32 %v1790
    %v3135 = vcvt.s32.f32 %v1791
    %v3136 = vcvt.s32.f32 %v1792
    %v3137 = vcvt.s32.f32 %v1793
    %v3138 = vcvt.s32.f32 %v1794
    %v3139 = vcvt.s32.f32 %v1795
    %v3140 = vcvt.s32.f32 %v1796
    %v3141 = vcvt.s32.f32 %v1797
    %v3142 = vcvt.s32.f32 %v1798
    %v3143 = vcvt.s32.f32 %v1799
    %v3144 = vcvt.s32.f32 %v1800
    %v3145 = vcvt.s32.f32 %v1801
    %v3146 = vcvt.s32.f32 %v1802
    %v3147 = vcvt.s32.f32 %v1803
    %v3148 = vcvt.s32.f32 %v1804
    %v3149 = vcvt.s32.f32 %v1805
    %v3150 = vcvt.s32.f32 %v1806
    %v3151 = vcvt.s32.f32 %v1807
    %v3152 = vcvt.s32.f32 %v1808
    %v3153 = vcvt.s32.f32 %v1809
    %v3154 = vcvt.s32.f32 %v1810
    %v3155 = vcvt.s32.f32 %v1811
    %v3156 = vcvt.s32.f32 %v1812
    %v3157 = vcvt.s32.f32 %v1813
    %v3158 = vcvt.s32.f32 %v1814
    %v3159 = vcvt.s32.f32 %v1815
    %v3160 = vcvt.s32.f32 %v1816
    %v3161 = vcvt.s32.f32 %v1817
    %v3162 = vcvt.s32.f32 %v1818
    %v3163 = vcvt.s32.f32 %v1819
    %v3164 = vcvt.s32.f32 %v1820
    %v3165 = vcvt.s32.f32 %v1821
    %v3166 = vcvt.s32.f32 %v1822
    %v3167 = vcvt.s32.f32 %v1823
    %v3168 = vcvt.s32.f32 %v1824
    %v3169 = vcvt.s32.f32 %v1825
    %v3170 = vcvt.s32.f32 %v1826
    %v3171 = vcvt.s32.f32 %v1827
    %v3172 = vcvt.s32.f32 %v1828
    %v3173 = vcvt.s32.f32 %v1829
    %v3174 = vcvt.s32.f32 %v1830
    %v3175 = vcvt.s32.f32 %v1831
    %v3176 = vcvt.s32.f32 %v1832
    %v3177 = vcvt.s32.f32 %v1833
    %v3178 = vcvt.s32.f32 %v1834
    %v3179 = vcvt.s32.f32 %v1835
    %v3180 = vcvt.s32.f32 %v1836
    %v3181 = vcvt.s32.f32 %v1837
    %v3182 = vcvt.s32.f32 %v1838
    %v3183 = vcvt.s32.f32 %v1839
    %v3184 = vcvt.s32.f32 %v1840
    %v3185 = vcvt.s32.f32 %v1841
    %v3186 = vcvt.s32.f32 %v1842
    %v3187 = vcvt.s32.f32 %v1843
    %v3188 = vcvt.s32.f32 %v1844
    %v3189 = vcvt.s32.f32 %v1845
    %v3190 = vcvt.s32.f32 %v1846
    %v3191 = vcvt.s32.f32 %v1847
    %v3192 = vcvt.s32.f32 %v1848
    %v3193 = vcvt.s32.f32 %v1849
    %v3194 = vcvt.s32.f32 %v1850
    %v3195 = vcvt.s32.f32 %v1851
    %v3196 = vcvt.s32.f32 %v1852
    %v3197 = vcvt.s32.f32 %v1853
    %v3198 = vcvt.s32.f32 %v1854
    %v3199 = vcvt.s32.f32 %v1855
    %v3200 = vcvt.s32.f32 %v1856
    %v3201 = vcvt.s32.f32 %v1857
    %v3202 = vcvt.s32.f32 %v1858
    %v3203 = vcvt.s32.f32 %v1859
    %v3204 = vcvt.s32.f32 %v1860
    %v3205 = vcvt.s32.f32 %v1861
    %v3206 = vcvt.s32.f32 %v1862
    %v3207 = vcvt.s32.f32 %v1863
    %v3208 = vcvt.s32.f32 %v1864
    %v3209 = vcvt.s32.f32 %v1865
    %v3210 = vcvt.s32.f32 %v1866
    %v3211 = vcvt.s32.f32 %v1867
    %v3212 = vcvt.s32.f32 %v1868
    %v3213 = vcvt.s32.f32 %v1869
    %v3214 = vcvt.s32.f32 %v1870
    %v3215 = vcvt.s32.f32 %v1871
    %v3216 = vcvt.s32.f32 %v1872
    %v3217 = vcvt.s32.f32 %v1873
    %v3218 = vcvt.s32.f32 %v1874
    %v3219 = vcvt.s32.f32 %v1875
    %v3220 = vcvt.s32.f32 %v1876
    %v3221 = vcvt.s32.f32 %v1877
    %v3222 = vcvt.s32.f32 %v1878
    %v3223 = vcvt.s32.f32 %v1879
    %v3224 = vcvt.s32.f32 %v1880
    %v3225 = vcvt.s32.f32 %v1881
    %v3226 = vcvt.s32.f32 %v1882
    %v3227 = vcvt.s32.f32 %v1883
    %v3228 = vcvt.s32.f32 %v1884
    %v3229 = vcvt.s32.f32 %v1885
    %v3230 = vcvt.s32.f32 %v1886
    %v3231 = vcvt.s32.f32 %v1887
    %v3232 = vcvt.s32.f32 %v1888
    %v3233 = vcvt.s32.f32 %v1889
    %v3234 = vcvt.s32.f32 %v1890
    %v3235 = vcvt.s32.f32 %v1891
    %v3236 = vcvt.s32.f32 %v1892
    %v3237 = vcvt.s32.f32 %v1893
    %v3238 = vcvt.s32.f32 %v1894
    %v3239 = vcvt.s32.f32 %v1895
    %v3240 = vcvt.s32.f32 %v1896
    %v3241 = vcvt.s32.f32 %v1897
    %v3242 = vcvt.s32.f32 %v1898
    %v3243 = vcvt.s32.f32 %v1899
    %v3244 = vcvt.s32.f32 %v1900
    %v3245 = vcvt.s32.f32 %v1901
    %v3246 = vcvt.s32.f32 %v1902
    %v3247 = vcvt.s32.f32 %v1903
    %v3248 = vcvt.s32.f32 %v1904
    %v3249 = vcvt.s32.f32 %v1905
    %v3250 = vcvt.s32.f32 %v1906
    %v3251 = vcvt.s32.f32 %v1907
    %v3252 = vcvt.s32.f32 %v1908
    %v3253 = vcvt.s32.f32 %v1909
    %v3254 = vcvt.s32.f32 %v1910
    %v3255 = vcvt.s32.f32 %v1911
    %v3256 = vcvt.s32.f32 %v1912
    %v3257 = vcvt.s32.f32 %v1913
    %v3258 = vcvt.s32.f32 %v1914
    %v3259 = vcvt.s32.f32 %v1915
    %v3260 = vcvt.s32.f32 %v1916
    %v3261 = vcvt.s32.f32 %v1917
    %v3262 = vcvt.s32.f32 %v1918
    %v3263 = vcvt.s32.f32 %v1919
    %v3264 = vcvt.s32.f32 %v1920
    %v3265 = vcvt.s32.f32 %v1921
    %v3266 = vcvt.s32.f32 %v1922
    %v3267 = vcvt.s32.f32 %v1923
    %v3268 = vcvt.s32.f32 %v1924
    %v3269 = vcvt.s32.f32 %v1925
    %v3270 = vcvt.s32.f32 %v1926
    %v3271 = vcvt.s32.f32 %v1927
    %v3272 = vcvt.s32.f32 %v1928
    %v3273 = vcvt.s32.f32 %v1929
    %v3274 = vcvt.s32.f32 %v1930
    %v3275 = vcvt.s32.f32 %v1931
    %v3276 = vcvt.s32.f32 %v1932
    %v3277 = vcvt.s32.f32 %v1933
    %v3278 = vcvt.s32.f32 %v1934
    %v3279 = vcvt.s32.f32 %v1935
    %v3280 = vcvt.s32.f32 %v1936
    %v3281 = vcvt.s32.f32 %v1937
    %v3282 = vcvt.s32.f32 %v1938
    %v3283 = vcvt.s32.f32 %v1939
    %v3284 = vcvt.s32.f32 %v1940
    %v3285 = vcvt.s32.f32 %v1941
    %v3286 = vcvt.s32.f32 %v1942
    %v3287 = vcvt.s32.f32 %v1943
    %v3288 = vcvt.s32.f32 %v1944
    %v3289 = vcvt.s32.f32 %v1945
    %v3290 = vcvt.s32.f32 %v1946
    %v3291 = vcvt.s32.f32 %v1947
    %v3292 = vcvt.s32.f32 %v1948
    %v3293 = vcvt.s32.f32 %v1949
    %v3294 = vcvt.s32.f32 %v1950
    %v3295 = vcvt.s32.f32 %v1951
    %v3296 = vcvt.s32.f32 %v1952
    %v3297 = vcvt.s32.f32 %v1953
    %v3298 = vcvt.s32.f32 %v1954
    %v3299 = vcvt.s32.f32 %v1955
    %v3300 = vcvt.s32.f32 %v1956
    %v3301 = vcvt.s32.f32 %v1957
    %v3302 = vcvt.s32.f32 %v1958
    %v3303 = vcvt.s32.f32 %v1959
    %v3304 = vcvt.s32.f32 %v1960
    %v3305 = vcvt.s32.f32 %v1961
    %v3306 = vcvt.s32.f32 %v1962
    %v3307 = vcvt.s32.f32 %v1963
    %v3308 = vcvt.s32.f32 %v1964
    %v3309 = vcvt.s32.f32 %v1965
    %v3310 = vcvt.s32.f32 %v1966
    %v3311 = vcvt.s32.f32 %v1967
    %v3312 = vcvt.s32.f32 %v1968
    %v3313 = vcvt.s32.f32 %v1969
    %v3314 = vcvt.s32.f32 %v1970
    %v3315 = vcvt.s32.f32 %v1971
    %v3316 = vcvt.s32.f32 %v1972
    %v3317 = vcvt.s32.f32 %v1973
    %v3318 = vcvt.s32.f32 %v1974
    %v3319 = vcvt.s32.f32 %v1975
    %v3320 = vcvt.s32.f32 %v1976
    %v3321 = vcvt.s32.f32 %v1977
    %v3322 = vcvt.s32.f32 %v1978
    %v3323 = vcvt.s32.f32 %v1979
    %v3324 = vcvt.s32.f32 %v1980
    %v3325 = vcvt.s32.f32 %v1981
    %v3326 = vcvt.s32.f32 %v1982
    %v3327 = vcvt.s32.f32 %v1983
    %v3328 = vcvt.s32.f32 %v1984
    %v3329 = vcvt.s32.f32 %v1985
    %v3330 = vcvt.s32.f32 %v1986
    %v3331 = vcvt.s32.f32 %v1987
    %v3332 = vcvt.s32.f32 %v1988
    %v3333 = vcvt.s32.f32 %v1989
    %v3334 = vcvt.s32.f32 %v1990
    %v3335 = vcvt.s32.f32 %v1991
    %v3336 = vcvt.s32.f32 %v1992
    %v3337 = vcvt.s32.f32 %v1993
    %v3338 = vcvt.s32.f32 %v1994
    %v3339 = vcvt.s32.f32 %v1995
    %v3340 = vcvt.s32.f32 %v1996
    %v3341 = vcvt.s32.f32 %v1997
    %v3342 = vcvt.s32.f32 %v1998
    %v3343 = vcvt.s32.f32 %v1999
    %v3344 = vcvt.s32.f32 %v2000
    %v3345 = vcvt.s32.f32 %v2001
    %v3346 = vcvt.s32.f32 %v2002
    %v3347 = vcvt.s32.f32 %v2003
    %v3348 = vcvt.s32.f32 %v2004
    %v3349 = vcvt.s32.f32 %v2005
    %v3350 = vcvt.s32.f32 %v2006
    %v3351 = vcvt.s32.f32 %v2007
    %v3352 = vcvt.s32.f32 %v2008
    %v3353 = vcvt.s32.f32 %v2009
    %v3354 = vcvt.s32.f32 %v2010
    %v3355 = vcvt.s32.f32 %v2011
    %v3356 = vcvt.s32.f32 %v2012
    %v3357 = vcvt.s32.f32 %v2013
    %v3358 = vcvt.s32.f32 %v2014
    %v3359 = vcvt.s32.f32 %v2015
    %v3360 = vcvt.s32.f32 %v2016
    %v3361 = vcvt.s32.f32 %v2017
    %v3362 = vcvt.s32.f32 %v2018
    %v3363 = vcvt.s32.f32 %v2019
    %v3364 = vcvt.s32.f32 %v2020
    %v3365 = vcvt.s32.f32 %v2021
    %v3366 = vcvt.s32.f32 %v2022
    %v3367 = vcvt.s32.f32 %v2023
    %v3368 = vcvt.s32.f32 %v2024
    %v3369 = vcvt.s32.f32 %v2025
    %v3370 = vcvt.s32.f32 %v2026
    %v3371 = vcvt.s32.f32 %v2027
    %v3372 = vcvt.s32.f32 %v2028
    %v3373 = vcvt.s32.f32 %v2029
    %v3374 = vcvt.s32.f32 %v2030
    %v3375 = vcvt.s32.f32 %v2031
    %v3376 = vcvt.s32.f32 %v2032
    %v3377 = vcvt.s32.f32 %v2033
    %v3378 = vcvt.s32.f32 %v2034
    %v3379 = vcvt.s32.f32 %v2035
    %v3380 = vcvt.s32.f32 %v2036
    %v3381 = vcvt.s32.f32 %v2037
    %v3382 = vcvt.s32.f32 %v2038
    %v3383 = vcvt.s32.f32 %v2039
    %v3384 = vcvt.s32.f32 %v2040
    %v3385 = vcvt.s32.f32 %v2041
    %v3386 = vcvt.s32.f32 %v2042
    %v3387 = vcvt.s32.f32 %v2043
    %v3388 = vcvt.s32.f32 %v2044
    %v3389 = vcvt.s32.f32 %v2045
    %v3390 = vcvt.s32.f32 %v2046
    %v3391 = vcvt.s32.f32 %v2047
    %v3392 = vcvt.s32.f32 %v2048
    %v3393 = vcvt.s32.f32 %v2049
    %v3394 = vcvt.s32.f32 %v2050
    %v3395 = vcvt.s32.f32 %v2051
    %v3396 = vcvt.s32.f32 %v2052
    %v3397 = vcvt.s32.f32 %v2053
    %v3398 = vcvt.s32.f32 %v2054
    %v3399 = vcvt.s32.f32 %v2055
    %v3400 = vcvt.s32.f32 %v2056
    %v3401 = vcvt.s32.f32 %v2057
    %v3402 = vcvt.s32.f32 %v2058
    %v3403 = vcvt.s32.f32 %v2059
    %v3404 = vcvt.s32.f32 %v2060
    %v3405 = vcvt.s32.f32 %v2061
    %v3406 = vcvt.s32.f32 %v2062
    %v3407 = vcvt.s32.f32 %v2063
    %v3408 = vcvt.s32.f32 %v2064
    %v3409 = vcvt.s32.f32 %v2065
    %v3410 = vcvt.s32.f32 %v2066
    %v3411 = vcvt.s32.f32 %v2067
    %v3412 = vcvt.s32.f32 %v2068
    %v3413 = vcvt.s32.f32 %v2069
    %v3414 = vcvt.s32.f32 %v2070
    %v3415 = vcvt.s32.f32 %v2071
    %v3416 = vcvt.s32.f32 %v2072
    %v3417 = vcvt.s32.f32 %v2073
    %v3418 = vcvt.s32.f32 %v2074
    %v3419 = vcvt.s32.f32 %v2075
    %v3420 = vcvt.s32.f32 %v2076
    %v3421 = vcvt.s32.f32 %v2077
    %v3422 = vcvt.s32.f32 %v2078
    %v3423 = vcvt.s32.f32 %v2079
    %v3424 = vcvt.s32.f32 %v2080
    %v3425 = vcvt.s32.f32 %v2081
    %v3426 = vcvt.s32.f32 %v2082
    %v3427 = vcvt.s32.f32 %v2083
    %v3428 = vcvt.s32.f32 %v2084
    %v3429 = vcvt.s32.f32 %v2085
    %v3430 = vcvt.s32.f32 %v2086
    %v3431 = vcvt.s32.f32 %v2087
    %v3432 = vcvt.s32.f32 %v2088
    %v3433 = vcvt.s32.f32 %v2089
    %v3434 = vcvt.s32.f32 %v2090
    %v3435 = vcvt.s32.f32 %v2091
    %v3436 = vcvt.s32.f32 %v2092
    %v3437 = vcvt.s32.f32 %v2093
    %v3438 = vcvt.s32.f32 %v2094
    %v3439 = vcvt.s32.f32 %v2095
    %v3440 = vcvt.s32.f32 %v2096
    %v3441 = vcvt.s32.f32 %v2097
    %v3442 = vcvt.s32.f32 %v2098
    %v3443 = vcvt.s32.f32 %v2099
    %v3444 = vcvt.s32.f32 %v2100
    %v3445 = vcvt.s32.f32 %v2101
    %v3446 = vcvt.s32.f32 %v2102
    %v3447 = vcvt.s32.f32 %v2103
    %v3448 = vcvt.s32.f32 %v2104
    %v3449 = vcvt.s32.f32 %v2105
    %v3450 = vcvt.s32.f32 %v2106
    %v3451 = vcvt.s32.f32 %v2107
    %v3452 = vcvt.s32.f32 %v2108
    %v3453 = vcvt.s32.f32 %v2109
    %v3454 = vcvt.s32.f32 %v2110
    %v3455 = vcvt.s32.f32 %v2111
    %v3456 = vcvt.s32.f32 %v2112
    %v3457 = vcvt.s32.f32 %v2113
    %v3458 = vcvt.s32.f32 %v2114
    %v3459 = vcvt.s32.f32 %v2115
    %v3460 = vcvt.s32.f32 %v2116
    %v3461 = vcvt.s32.f32 %v2117
    %v3462 = vcvt.s32.f32 %v2118
    %v3463 = vcvt.s32.f32 %v2119
    %v3464 = vcvt.s32.f32 %v2120
    %v3465 = vcvt.s32.f32 %v2121
    %v3466 = vcvt.s32.f32 %v2122
    %v3467 = vcvt.s32.f32 %v2123
    %v3468 = vcvt.s32.f32 %v2124
    %v3469 = vcvt.s32.f32 %v2125
    %v3470 = vcvt.s32.f32 %v2126
    %v3471 = vcvt.s32.f32 %v2127
    %v3472 = vcvt.s32.f32 %v2128
    %v3473 = vcvt.s32.f32 %v2129
    %v3474 = vcvt.s32.f32 %v2130
    %v3475 = vcvt.s32.f32 %v2131
    %v3476 = vcvt.s32.f32 %v2132
    %v3477 = vcvt.s32.f32 %v2133
    %v3478 = vcvt.s32.f32 %v2134
    %v3479 = vcvt.s32.f32 %v2135
    %v3480 = vcvt.s32.f32 %v2136
    %v3481 = vcvt.s32.f32 %v2137
    %v3482 = vcvt.s32.f32 %v2138
    %v3483 = vcvt.s32.f32 %v2139
    %v3484 = vcvt.s32.f32 %v2140
    %v3485 = vcvt.s32.f32 %v2141
    %v3486 = vcvt.s32.f32 %v2142
    %v3487 = vcvt.s32.f32 %v2143
    %v3488 = vcvt.s32.f32 %v2144
    %v3489 = vcvt.s32.f32 %v2145
    %v3490 = vcvt.s32.f32 %v2146
    %v3491 = vcvt.s32.f32 %v2147
    %v3492 = vcvt.s32.f32 %v2148
    %v3493 = vcvt.s32.f32 %v2149
    %v3494 = vcvt.s32.f32 %v2150
    %v3495 = vcvt.s32.f32 %v2151
    %v3496 = vcvt.s32.f32 %v2152
    %v3497 = vcvt.s32.f32 %v2153
    %v3498 = vcvt.s32.f32 %v2154
    %v3499 = vcvt.s32.f32 %v2155
    %v3500 = vcvt.s32.f32 %v2156
    %v3501 = vcvt.s32.f32 %v2157
    %v3502 = vcvt.s32.f32 %v2158
    %v3503 = vcvt.s32.f32 %v2159
    %v3504 = vcvt.s32.f32 %v2160
    %v3505 = vcvt.s32.f32 %v2161
    %v3506 = vcvt.s32.f32 %v2162
    %v3507 = vcvt.s32.f32 %v2163
    %v3508 = vcvt.s32.f32 %v2164
    %v3509 = vcvt.s32.f32 %v2165
    %v3510 = vcvt.s32.f32 %v2166
    %v3511 = vcvt.s32.f32 %v2167
    %v3512 = vcvt.s32.f32 %v2168
    %v3513 = vcvt.s32.f32 %v2169
    %v3514 = vcvt.s32.f32 %v2170
    %v3515 = vcvt.s32.f32 %v2171
    %v3516 = vcvt.s32.f32 %v2172
    %v3517 = vcvt.s32.f32 %v2173
    %v3518 = vcvt.s32.f32 %v2174
    %v3519 = vcvt.s32.f32 %v2175
    %v3520 = vcvt.s32.f32 %v2176
    %v3521 = vcvt.s32.f32 %v2177
    %v3522 = vcvt.s32.f32 %v2178
    %v3523 = vcvt.s32.f32 %v2179
    %v3524 = vcvt.s32.f32 %v2180
    %v3525 = vcvt.s32.f32 %v2181
    %v3526 = vcvt.s32.f32 %v2182
    %v3527 = vcvt.s32.f32 %v2183
    %v3528 = vcvt.s32.f32 %v2184
    %v3529 = vcvt.s32.f32 %v2185
    %v3530 = vcvt.s32.f32 %v2186
    %v3531 = vcvt.s32.f32 %v2187
    %v3532 = vcvt.s32.f32 %v2188
    %v3533 = vcvt.s32.f32 %v2189
    %v3534 = vcvt.s32.f32 %v2190
    %v3535 = vcvt.s32.f32 %v2191
    %v3536 = vcvt.s32.f32 %v2192
    %v3537 = vcvt.s32.f32 %v2193
    %v3538 = vcvt.s32.f32 %v2194
    %v3539 = vcvt.s32.f32 %v2195
    %v3540 = vcvt.s32.f32 %v2196
    %v3541 = vcvt.s32.f32 %v2197
    %v3542 = vcvt.s32.f32 %v2198
    %v3543 = vcvt.s32.f32 %v2199
    %v3544 = vcvt.s32.f32 %v2200
    %v3545 = vcvt.s32.f32 %v2201
    %v3546 = vcvt.s32.f32 %v2202
    %v3547 = vcvt.s32.f32 %v2203
    %v3548 = vcvt.s32.f32 %v2204
    %v3549 = vcvt.s32.f32 %v2205
    %v3550 = vcvt.s32.f32 %v2206
    %v3551 = vcvt.s32.f32 %v2207
    %v3552 = vcvt.s32.f32 %v2208
    %v3553 = vcvt.s32.f32 %v2209
    %v3554 = vcvt.s32.f32 %v2210
    %v3555 = vcvt.s32.f32 %v2211
    %v3556 = vcvt.s32.f32 %v2212
    %v3557 = vcvt.s32.f32 %v2213
    %v3558 = vcvt.s32.f32 %v2214
    %v3559 = vcvt.s32.f32 %v2215
    %v3560 = vcvt.s32.f32 %v2216
    %v3561 = vcvt.s32.f32 %v2217
    %v3562 = vcvt.s32.f32 %v2218
    %v3563 = vcvt.s32.f32 %v2219
    %v3564 = vcvt.s32.f32 %v2220
    %v3565 = vcvt.s32.f32 %v2221
    %v3566 = vcvt.s32.f32 %v2222
    %v3567 = vcvt.s32.f32 %v2223
    %v3568 = vcvt.s32.f32 %v2224
    %v3569 = vcvt.s32.f32 %v2225
    %v3570 = vcvt.s32.f32 %v2226
    %v3571 = vcvt.s32.f32 %v2227
    %v3572 = vcvt.s32.f32 %v2228
    %v3573 = vcvt.s32.f32 %v2229
    %v3574 = vcvt.s32.f32 %v2230
    %v3575 = vcvt.s32.f32 %v2231
    %v3576 = vcvt.s32.f32 %v2232
    %v3577 = vcvt.s32.f32 %v2233
    %v3578 = vcvt.s32.f32 %v2234
    %v3579 = vcvt.s32.f32 %v2235
    %v3580 = vcvt.s32.f32 %v2236
    %v3581 = vcvt.s32.f32 %v2237
    %v3582 = vcvt.s32.f32 %v2238
    %v3583 = vcvt.s32.f32 %v2239
    %v3584 = vcvt.s32.f32 %v2240
    %v3585 = vcvt.s32.f32 %v2241
    %v3586 = vcvt.s32.f32 %v2242
    %v3587 = vcvt.s32.f32 %v2243
    %v3588 = vcvt.s32.f32 %v2244
    %v3589 = vcvt.s32.f32 %v2245
    %v3590 = vcvt.s32.f32 %v2246
    %v3591 = vcvt.s32.f32 %v2247
    %v3592 = vcvt.s32.f32 %v2248
    %v3593 = vcvt.s32.f32 %v2249
    %v3594 = vcvt.s32.f32 %v2250
    %v3595 = vcvt.s32.f32 %v2251
    %v3596 = vcvt.s32.f32 %v2252
    %v3597 = vcvt.s32.f32 %v2253
    %v3598 = vcvt.s32.f32 %v2254
    %v3599 = vcvt.s32.f32 %v2255
    %v3600 = vcvt.s32.f32 %v2256
    %v3601 = vcvt.s32.f32 %v2257
    %v3602 = vcvt.s32.f32 %v2258
    %v3603 = vcvt.s32.f32 %v2259
    %v3604 = vcvt.s32.f32 %v2260
    %v3605 = vcvt.s32.f32 %v2261
    %v3606 = vcvt.s32.f32 %v2262
    %v3607 = vcvt.s32.f32 %v2263
    %v3608 = vcvt.s32.f32 %v2264
    %v3609 = vcvt.s32.f32 %v2265
    %v3610 = vcvt.s32.f32 %v2266
    %v3611 = vcvt.s32.f32 %v2267
    %v3612 = vcvt.s32.f32 %v2268
    %v3613 = vcvt.s32.f32 %v2269
    %v3614 = vpack.c.bf16 %v2272, %v2270
    %v3615 = vpack.c.bf16 %v2273, %v2271
    %v3616 = vpack.c.bf16 %v2276, %v2274
    %v3617 = vpack.c.bf16 %v2277, %v2275
    %v3618 = vpack.c.bf16 %v2280, %v2278
    %v3619 = vpack.c.bf16 %v2281, %v2279
    %v3620 = vpack.c.bf16 %v2284, %v2282
    %v3621 = vpack.c.bf16 %v2285, %v2283
    %v3622 = vpack.c.bf16 %v2288, %v2286
    %v3623 = vpack.c.bf16 %v2289, %v2287
    %v3624 = vpack.c.bf16 %v2292, %v2290
    %v3625 = vpack.c.bf16 %v2293, %v2291
    %v3626 = vpack.c.bf16 %v2296, %v2294
    %v3627 = vpack.c.bf16 %v2297, %v2295
    %v3628 = vpack.c.bf16 %v2300, %v2298
    %v3629 = vpack.c.bf16 %v2301, %v2299
    %v3630 = vpack.c.bf16 %v2304, %v2302
    %v3631 = vpack.c.bf16 %v2305, %v2303
    %v3632 = vpack.c.bf16 %v2308, %v2306
    %v3633 = vpack.c.bf16 %v2309, %v2307
    %v3634 = vpack.c.bf16 %v2312, %v2310
    %v3635 = vpack.c.bf16 %v2313, %v2311
    %v3636 = vpack.c.bf16 %v2316, %v2314
    %v3637 = vpack.c.bf16 %v2317, %v2315
    %v3638 = vpack.c.bf16 %v2320, %v2318
    %v3639 = vpack.c.bf16 %v2321, %v2319
    %v3640 = vpack.c.bf16 %v2324, %v2322
    %v3641 = vpack.c.bf16 %v2325, %v2323
    %v3642 = vpack.c.bf16 %v2328, %v2326
    %v3643 = vpack.c.bf16 %v2329, %v2327
    %v3644 = vpack.c.bf16 %v2332, %v2330
    %v3645 = vpack.c.bf16 %v2333, %v2331
    %v3646 = vpack.c.bf16 %v2336, %v2334
    %v3647 = vpack.c.bf16 %v2337, %v2335
    %v3648 = vpack.c.bf16 %v2340, %v2338
    %v3649 = vpack.c.bf16 %v2341, %v2339
    %v3650 = vpack.c.bf16 %v2344, %v2342
    %v3651 = vpack.c.bf16 %v2345, %v2343
    %v3652 = vpack.c.bf16 %v2348, %v2346
    %v3653 = vpack.c.bf16 %v2349, %v2347
    %v3654 = vpack.c.bf16 %v2352, %v2350
    %v3655 = vpack.c.bf16 %v2353, %v2351
    %v3656 = vpack.c.bf16 %v2356, %v2354
    %v3657 = vpack.c.bf16 %v2357, %v2355
    %v3658 = vpack.c.bf16 %v2360, %v2358
    %v3659 = vpack.c.bf16 %v2361, %v2359
    %v3660 = vpack.c.bf16 %v2364, %v2362
    %v3661 = vpack.c.bf16 %v2365, %v2363
    %v3662 = vpack.c.bf16 %v2368, %v2366
    %v3663 = vpack.c.bf16 %v2369, %v2367
    %v3664 = vpack.c.bf16 %v2372, %v2370
    %v3665 = vpack.c.bf16 %v2373, %v2371
    %v3666 = vpack.c.bf16 %v2376, %v2374
    %v3667 = vpack.c.bf16 %v2377, %v2375
    %v3668 = vpack.c.bf16 %v2380, %v2378
    %v3669 = vpack.c.bf16 %v2381, %v2379
    %v3670 = vpack.c.bf16 %v2384, %v2382
    %v3671 = vpack.c.bf16 %v2385, %v2383
    %v3672 = vpack.c.bf16 %v2388, %v2386
    %v3673 = vpack.c.bf16 %v2389, %v2387
    %v3674 = vpack.c.bf16 %v2392, %v2390
    %v3675 = vpack.c.bf16 %v2393, %v2391
    %v3676 = vpack.c.bf16 %v2396, %v2394
    %v3677 = vpack.c.bf16 %v2397, %v2395
    %v3678 = vpack.c.bf16 %v2400, %v2398
    %v3679 = vpack.c.bf16 %v2401, %v2399
    %v3680 = vpack.c.bf16 %v2404, %v2402
    %v3681 = vpack.c.bf16 %v2405, %v2403
    %v3682 = vpack.c.bf16 %v2408, %v2406
    %v3683 = vpack.c.bf16 %v2409, %v2407
    %v3684 = vpack.c.bf16 %v2412, %v2410
    %v3685 = vpack.c.bf16 %v2413, %v2411
    %v3686 = vpack.c.bf16 %v2416, %v2414
    %v3687 = vpack.c.bf16 %v2417, %v2415
    %v3688 = vpack.c.bf16 %v2420, %v2418
    %v3689 = vpack.c.bf16 %v2421, %v2419
    %v3690 = vpack.c.bf16 %v2424, %v2422
    %v3691 = vpack.c.bf16 %v2425, %v2423
    %v3692 = vpack.c.bf16 %v2428, %v2426
    %v3693 = vpack.c.bf16 %v2429, %v2427
    %v3694 = vpack.c.bf16 %v2432, %v2430
    %v3695 = vpack.c.bf16 %v2433, %v2431
    %v3696 = vpack.c.bf16 %v2436, %v2434
    %v3697 = vpack.c.bf16 %v2437, %v2435
    %v3698 = vpack.c.bf16 %v2440, %v2438
    %v3699 = vpack.c.bf16 %v2441, %v2439
    %v3700 = vpack.c.bf16 %v2444, %v2442
    %v3701 = vpack.c.bf16 %v2445, %v2443
    %v3702 = vpack.c.bf16 %v2448, %v2446
    %v3703 = vpack.c.bf16 %v2449, %v2447
    %v3704 = vpack.c.bf16 %v2452, %v2450
    %v3705 = vpack.c.bf16 %v2453, %v2451
    %v3706 = vpack.c.bf16 %v2456, %v2454
    %v3707 = vpack.c.bf16 %v2457, %v2455
    %v3708 = vpack.c.bf16 %v2460, %v2458
    %v3709 = vpack.c.bf16 %v2461, %v2459
    %v3710 = vpack.c.bf16 %v2464, %v2462
    %v3711 = vpack.c.bf16 %v2465, %v2463
    %v3712 = vpack.c.bf16 %v2468, %v2466
    %v3713 = vpack.c.bf16 %v2469, %v2467
    %v3714 = vpack.c.bf16 %v2472, %v2470
    %v3715 = vpack.c.bf16 %v2473, %v2471
    %v3716 = vpack.c.bf16 %v2476, %v2474
    %v3717 = vpack.c.bf16 %v2477, %v2475
    %v3718 = vpack.c.bf16 %v2480, %v2478
    %v3719 = vpack.c.bf16 %v2481, %v2479
    %v3720 = vpack.c.bf16 %v2484, %v2482
    %v3721 = vpack.c.bf16 %v2485, %v2483
    %v3722 = vpack.c.bf16 %v2488, %v2486
    %v3723 = vpack.c.bf16 %v2489, %v2487
    %v3724 = vpack.c.bf16 %v2492, %v2490
    %v3725 = vpack.c.bf16 %v2493, %v2491
    %v3726 = vpack.c.bf16 %v2496, %v2494
    %v3727 = vpack.c.bf16 %v2497, %v2495
    %v3728 = vpack.c.bf16 %v2500, %v2498
    %v3729 = vpack.c.bf16 %v2501, %v2499
    %v3730 = vpack.c.bf16 %v2504, %v2502
    %v3731 = vpack.c.bf16 %v2505, %v2503
    %v3732 = vpack.c.bf16 %v2508, %v2506
    %v3733 = vpack.c.bf16 %v2509, %v2507
    %v3734 = vpack.c.bf16 %v2512, %v2510
    %v3735 = vpack.c.bf16 %v2513, %v2511
    %v3736 = vpack.c.bf16 %v2516, %v2514
    %v3737 = vpack.c.bf16 %v2517, %v2515
    %v3738 = vpack.c.bf16 %v2520, %v2518
    %v3739 = vpack.c.bf16 %v2521, %v2519
    %v3740 = vpack.c.bf16 %v2524, %v2522
    %v3741 = vpack.c.bf16 %v2525, %v2523
    %v3742 = vpack.c.bf16 %v2528, %v2526
    %v3743 = vpack.c.bf16 %v2529, %v2527
    %v3744 = vpack.c.bf16 %v2532, %v2530
    %v3745 = vpack.c.bf16 %v2533, %v2531
    %v3746 = vpack.c.bf16 %v2536, %v2534
    %v3747 = vpack.c.bf16 %v2537, %v2535
    %v3748 = vpack.c.bf16 %v2540, %v2538
    %v3749 = vpack.c.bf16 %v2541, %v2539
    %v3750 = vpack.c.bf16 %v2544, %v2542
    %v3751 = vpack.c.bf16 %v2545, %v2543
    %v3752 = vpack.c.bf16 %v2548, %v2546
    %v3753 = vpack.c.bf16 %v2549, %v2547
    %v3754 = vpack.c.bf16 %v2552, %v2550
    %v3755 = vpack.c.bf16 %v2553, %v2551
    %v3756 = vpack.c.bf16 %v2556, %v2554
    %v3757 = vpack.c.bf16 %v2557, %v2555
    %v3758 = vpack.c.bf16 %v2560, %v2558
    %v3759 = vpack.c.bf16 %v2561, %v2559
    %v3760 = vpack.c.bf16 %v2564, %v2562
    %v3761 = vpack.c.bf16 %v2565, %v2563
    %v3762 = vpack.c.bf16 %v2568, %v2566
    %v3763 = vpack.c.bf16 %v2569, %v2567
    %v3764 = vpack.c.bf16 %v2572, %v2570
    %v3765 = vpack.c.bf16 %v2573, %v2571
    %v3766 = vpack.c.bf16 %v2576, %v2574
    %v3767 = vpack.c.bf16 %v2577, %v2575
    %v3768 = vpack.c.bf16 %v2580, %v2578
    %v3769 = vpack.c.bf16 %v2581, %v2579
    %v3770 = vpack.c.bf16 %v2584, %v2582
    %v3771 = vpack.c.bf16 %v2585, %v2583
    %v3772 = vpack.c.bf16 %v2588, %v2586
    %v3773 = vpack.c.bf16 %v2589, %v2587
    %v3774 = vpack.c.bf16 %v2592, %v2590
    %v3775 = vpack.c.bf16 %v2593, %v2591
    %v3776 = vpack.c.bf16 %v2596, %v2594
    %v3777 = vpack.c.bf16 %v2597, %v2595
    %v3778 = vpack.c.bf16 %v2600, %v2598
    %v3779 = vpack.c.bf16 %v2601, %v2599
    %v3780 = vpack.c.bf16 %v2604, %v2602
    %v3781 = vpack.c.bf16 %v2605, %v2603
    %v3782 = vpack.c.bf16 %v2608, %v2606
    %v3783 = vpack.c.bf16 %v2609, %v2607
    %v3784 = vpack.c.bf16 %v2612, %v2610
    %v3785 = vpack.c.bf16 %v2613, %v2611
    %v3786 = vpack.c.bf16 %v2616, %v2614
    %v3787 = vpack.c.bf16 %v2617, %v2615
    %v3788 = vpack.c.bf16 %v2620, %v2618
    %v3789 = vpack.c.bf16 %v2621, %v2619
    %v3790 = vpack.c.bf16 %v2624, %v2622
    %v3791 = vpack.c.bf16 %v2625, %v2623
    %v3792 = vpack.c.bf16 %v2628, %v2626
    %v3793 = vpack.c.bf16 %v2629, %v2627
    %v3794 = vpack.c.bf16 %v2632, %v2630
    %v3795 = vpack.c.bf16 %v2633, %v2631
    %v3796 = vpack.c.bf16 %v2636, %v2634
    %v3797 = vpack.c.bf16 %v2637, %v2635
    %v3798 = vpack.c.bf16 %v2640, %v2638
    %v3799 = vpack.c.bf16 %v2641, %v2639
    %v3800 = vpack.c.bf16 %v2644, %v2642
    %v3801 = vpack.c.bf16 %v2645, %v2643
    %v3802 = vpack.c.bf16 %v2648, %v2646
    %v3803 = vpack.c.bf16 %v2649, %v2647
    %v3804 = vpack.c.bf16 %v2652, %v2650
    %v3805 = vpack.c.bf16 %v2653, %v2651
    %v3806 = vpack.c.bf16 %v2656, %v2654
    %v3807 = vpack.c.bf16 %v2657, %v2655
    %v3808 = vpack.c.bf16 %v2660, %v2658
    %v3809 = vpack.c.bf16 %v2661, %v2659
    %v3810 = vpack.c.bf16 %v2664, %v2662
    %v3811 = vpack.c.bf16 %v2665, %v2663
    %v3812 = vpack.c.bf16 %v2668, %v2666
    %v3813 = vpack.c.bf16 %v2669, %v2667
    %v3814 = vpack.c.bf16 %v2672, %v2670
    %v3815 = vpack.c.bf16 %v2673, %v2671
    %v3816 = vpack.c.bf16 %v2676, %v2674
    %v3817 = vpack.c.bf16 %v2677, %v2675
    %v3818 = vpack.c.bf16 %v2680, %v2678
    %v3819 = vpack.c.bf16 %v2681, %v2679
    %v3820 = vpack.c.bf16 %v2684, %v2682
    %v3821 = vpack.c.bf16 %v2685, %v2683
    %v3822 = vpack.c.bf16 %v2688, %v2686
    %v3823 = vpack.c.bf16 %v2689, %v2687
    %v3824 = vpack.c.bf16 %v2692, %v2690
    %v3825 = vpack.c.bf16 %v2693, %v2691
    %v3826 = vpack.c.bf16 %v2696, %v2694
    %v3827 = vpack.c.bf16 %v2697, %v2695
    %v3828 = vpack.c.bf16 %v2700, %v2698
    %v3829 = vpack.c.bf16 %v2701, %v2699
    %v3830 = vpack.c.bf16 %v2704, %v2702
    %v3831 = vpack.c.bf16 %v2705, %v2703
    %v3832 = vpack.c.bf16 %v2708, %v2706
    %v3833 = vpack.c.bf16 %v2709, %v2707
    %v3834 = vpack.c.bf16 %v2712, %v2710
    %v3835 = vpack.c.bf16 %v2713, %v2711
    %v3836 = vpack.c.bf16 %v2716, %v2714
    %v3837 = vpack.c.bf16 %v2717, %v2715
    %v3838 = vpack.c.bf16 %v2720, %v2718
    %v3839 = vpack.c.bf16 %v2721, %v2719
    %v3840 = vpack.c.bf16 %v2724, %v2722
    %v3841 = vpack.c.bf16 %v2725, %v2723
    %v3842 = vpack.c.bf16 %v2728, %v2726
    %v3843 = vpack.c.bf16 %v2729, %v2727
    %v3844 = vpack.c.bf16 %v2732, %v2730
    %v3845 = vpack.c.bf16 %v2733, %v2731
    %v3846 = vpack.c.bf16 %v2736, %v2734
    %v3847 = vpack.c.bf16 %v2737, %v2735
    %v3848 = vpack.c.bf16 %v2740, %v2738
    %v3849 = vpack.c.bf16 %v2741, %v2739
    %v3850 = vpack.c.bf16 %v2744, %v2742
    %v3851 = vpack.c.bf16 %v2745, %v2743
    %v3852 = vpack.c.bf16 %v2748, %v2746
    %v3853 = vpack.c.bf16 %v2749, %v2747
    %v3854 = vpack.c.bf16 %v2752, %v2750
    %v3855 = vpack.c.bf16 %v2753, %v2751
    %v3856 = vpack.c.bf16 %v2756, %v2754
    %v3857 = vpack.c.bf16 %v2757, %v2755
    %v3858 = vpack.c.bf16 %v2760, %v2758
    %v3859 = vpack.c.bf16 %v2761, %v2759
    %v3860 = vpack.c.bf16 %v2764, %v2762
    %v3861 = vpack.c.bf16 %v2765, %v2763
    %v3862 = vpack.c.bf16 %v2768, %v2766
    %v3863 = vpack.c.bf16 %v2769, %v2767
    %v3864 = vpack.c.bf16 %v2772, %v2770
    %v3865 = vpack.c.bf16 %v2773, %v2771
    %v3866 = vpack.c.bf16 %v2776, %v2774
    %v3867 = vpack.c.bf16 %v2777, %v2775
    %v3868 = vpack.c.bf16 %v2780, %v2778
    %v3869 = vpack.c.bf16 %v2781, %v2779
    %v3870 = vpack.c.bf16 %v2784, %v2782
    %v3871 = vpack.c.bf16 %v2785, %v2783
    %v3872 = vpack.c.bf16 %v2788, %v2786
    %v3873 = vpack.c.bf16 %v2789, %v2787
    %v3874 = vpack.c.bf16 %v2792, %v2790
    %v3875 = vpack.c.bf16 %v2793, %v2791
    %v3876 = vpack.c.bf16 %v2796, %v2794
    %v3877 = vpack.c.bf16 %v2797, %v2795
    %v3878 = vpack.c.bf16 %v2800, %v2798
    %v3879 = vpack.c.bf16 %v2801, %v2799
    %v3880 = vpack.c.bf16 %v2804, %v2802
    %v3881 = vpack.c.bf16 %v2805, %v2803
    %v3882 = vpack.c.bf16 %v2808, %v2806
    %v3883 = vpack.c.bf16 %v2809, %v2807
    %v3884 = vpack.c.bf16 %v2812, %v2810
    %v3885 = vpack.c.bf16 %v2813, %v2811
    %v3886 = vpack.c.bf16 %v2816, %v2814
    %v3887 = vpack.c.bf16 %v2817, %v2815
    %v3888 = vpack.c.bf16 %v2820, %v2818
    %v3889 = vpack.c.bf16 %v2821, %v2819
    %v3890 = vpack.c.bf16 %v2824, %v2822
    %v3891 = vpack.c.bf16 %v2825, %v2823
    %v3892 = vpack.c.bf16 %v2828, %v2826
    %v3893 = vpack.c.bf16 %v2829, %v2827
    %v3894 = vpack.c.bf16 %v2832, %v2830
    %v3895 = vpack.c.bf16 %v2833, %v2831
    %v3896 = vpack.c.bf16 %v2836, %v2834
    %v3897 = vpack.c.bf16 %v2837, %v2835
    %v3898 = vpack.c.bf16 %v2840, %v2838
    %v3899 = vpack.c.bf16 %v2841, %v2839
    %v3900 = vpack.c.bf16 %v2844, %v2842
    %v3901 = vpack.c.bf16 %v2845, %v2843
    %v3902 = vpack.c.bf16 %v2848, %v2846
    %v3903 = vpack.c.bf16 %v2849, %v2847
    %v3904 = vpack.c.bf16 %v2852, %v2850
    %v3905 = vpack.c.bf16 %v2853, %v2851
    %v3906 = vpack.c.bf16 %v2856, %v2854
    %v3907 = vpack.c.bf16 %v2857, %v2855
    %v3908 = vpack.c.bf16 %v2860, %v2858
    %v3909 = vpack.c.bf16 %v2861, %v2859
    %v3910 = vpack.c.bf16 %v2864, %v2862
    %v3911 = vpack.c.bf16 %v2865, %v2863
    %v3912 = vpack.c.bf16 %v2868, %v2866
    %v3913 = vpack.c.bf16 %v2869, %v2867
    %v3914 = vpack.c.bf16 %v2872, %v2870
    %v3915 = vpack.c.bf16 %v2873, %v2871
    %v3916 = vpack.c.bf16 %v2876, %v2874
    %v3917 = vpack.c.bf16 %v2877, %v2875
    %v3918 = vpack.c.bf16 %v2880, %v2878
    %v3919 = vpack.c.bf16 %v2881, %v2879
    %v3920 = vpack.c.bf16 %v2884, %v2882
    %v3921 = vpack.c.bf16 %v2885, %v2883
    %v3922 = vpack.c.bf16 %v2888, %v2886
    %v3923 = vpack.c.bf16 %v2889, %v2887
    %v3924 = vpack.c.bf16 %v2892, %v2890
    %v3925 = vpack.c.bf16 %v2893, %v2891
    %v3926 = vpack.c.bf16 %v2896, %v2894
    %v3927 = vpack.c.bf16 %v2897, %v2895
    %v3928 = vpack.c.bf16 %v2900, %v2898
    %v3929 = vpack.c.bf16 %v2901, %v2899
    %v3930 = vpack.c.bf16 %v2904, %v2902
    %v3931 = vpack.c.bf16 %v2905, %v2903
    %v3932 = vpack.c.bf16 %v2908, %v2906
    %v3933 = vpack.c.bf16 %v2909, %v2907
    %v3934 = vpack.c.bf16 %v2912, %v2910
    %v3935 = vpack.c.bf16 %v2913, %v2911
    %v3936 = vpack.c.bf16 %v2916, %v2914
    %v3937 = vpack.c.bf16 %v2917, %v2915
    %v3938 = vpack.c.bf16 %v2920, %v2918
    %v3939 = vpack.c.bf16 %v2921, %v2919
    %v3940 = vpack.c.bf16 %v2924, %v2922
    %v3941 = vpack.c.bf16 %v2925, %v2923
    %v3942 = vpack.c.bf16 %v2928, %v2926
    %v3943 = vpack.c.bf16 %v2929, %v2927
    %v3944 = vpack.c.bf16 %v2932, %v2930
    %v3945 = vpack.c.bf16 %v2933, %v2931
    %v3946 = vpack.c.bf16 %v2936, %v2934
    %v3947 = vpack.c.bf16 %v2937, %v2935
    %v3948 = vpack.c.bf16 %v2940, %v2938
    %v3949 = vpack.c.bf16 %v2941, %v2939
    %v3950 = vpack.c.bf16 %v2944, %v2942
    %v3951 = vpack.c.bf16 %v2945, %v2943
    %v3952 = vpack.c.bf16 %v2948, %v2946
    %v3953 = vpack.c.bf16 %v2949, %v2947
    %v3954 = vpack.c.bf16 %v2952, %v2950
    %v3955 = vpack.c.bf16 %v2953, %v2951
    %v3956 = vpack.c.bf16 %v2956, %v2954
    %v3957 = vpack.c.bf16 %v2957, %v2955
    %v3958 = vpack.c.bf16 %v2960, %v2958
    %v3959 = vpack.c.bf16 %v2961, %v2959
    %v3960 = vpack.c.bf16 %v2964, %v2962
    %v3961 = vpack.c.bf16 %v2965, %v2963
    %v3962 = vpack.c.bf16 %v2968, %v2966
    %v3963 = vpack.c.bf16 %v2969, %v2967
    %v3964 = vpack.c.bf16 %v2972, %v2970
    %v3965 = vpack.c.bf16 %v2973, %v2971
    %v3966 = vpack.c.bf16 %v2976, %v2974
    %v3967 = vpack.c.bf16 %v2977, %v2975
    %v3968 = vpack.c.bf16 %v2980, %v2978
    %v3969 = vpack.c.bf16 %v2981, %v2979
    %v3970 = vpack.c.bf16 %v2984, %v2982
    %v3971 = vpack.c.bf16 %v2985, %v2983
    %v3972 = vpack.c.bf16 %v2988, %v2986
    %v3973 = vpack.c.bf16 %v2989, %v2987
    %v3974 = vpack.c.bf16 %v2992, %v2990
    %v3975 = vpack.c.bf16 %v2993, %v2991
    %v3976 = vpack.c.bf16 %v2996, %v2994
    %v3977 = vpack.c.bf16 %v2997, %v2995
    %v3978 = vpack.c.bf16 %v3000, %v2998
    %v3979 = vpack.c.bf16 %v3001, %v2999
    %v3980 = vpack.c.bf16 %v3004, %v3002
    %v3981 = vpack.c.bf16 %v3005, %v3003
    %v3982 = vpack.c.bf16 %v3008, %v3006
    %v3983 = vpack.c.bf16 %v3009, %v3007
    %v3984 = vpack.c.bf16 %v3012, %v3010
    %v3985 = vpack.c.bf16 %v3013, %v3011
    %v3986 = vpack.c.bf16 %v3016, %v3014
    %v3987 = vpack.c.bf16 %v3017, %v3015
    %v3988 = vpack.c.bf16 %v3020, %v3018
    %v3989 = vpack.c.bf16 %v3021, %v3019
    %v3990 = vpack.c.bf16 %v3024, %v3022
    %v3991 = vpack.c.bf16 %v3025, %v3023
    %v3992 = vpack.c.bf16 %v3028, %v3026
    %v3993 = vpack.c.bf16 %v3029, %v3027
    %v3994 = vpack.c.bf16 %v3032, %v3030
    %v3995 = vpack.c.bf16 %v3033, %v3031
    %v3996 = vpack.c.bf16 %v3036, %v3034
    %v3997 = vpack.c.bf16 %v3037, %v3035
    %v3998 = vpack.c.bf16 %v3040, %v3038
    %v3999 = vpack.c.bf16 %v3041, %v3039
    %v4000 = vpack.c.bf16 %v3044, %v3042
    %v4001 = vpack.c.bf16 %v3045, %v3043
    %v4002 = vpack.c.bf16 %v3048, %v3046
    %v4003 = vpack.c.bf16 %v3049, %v3047
    %v4004 = vpack.c.bf16 %v3052, %v3050
    %v4005 = vpack.c.bf16 %v3053, %v3051
    %v4006 = vpack.c.bf16 %v3056, %v3054
    %v4007 = vpack.c.bf16 %v3057, %v3055
    %v4008 = vpack.c.bf16 %v3060, %v3058
    %v4009 = vpack.c.bf16 %v3061, %v3059
    %v4010 = vpack.c.bf16 %v3064, %v3062
    %v4011 = vpack.c.bf16 %v3065, %v3063
    %v4012 = vpack.c.bf16 %v3068, %v3066
    %v4013 = vpack.c.bf16 %v3069, %v3067
    %v4014 = vpack.c.bf16 %v3072, %v3070
    %v4015 = vpack.c.bf16 %v3073, %v3071
    %v4016 = vpack.c.bf16 %v3076, %v3074
    %v4017 = vpack.c.bf16 %v3077, %v3075
    %v4018 = vpack.c.bf16 %v3080, %v3078
    %v4019 = vpack.c.bf16 %v3081, %v3079
    %v4020 = vpack.c.bf16 %v3084, %v3082
    %v4021 = vpack.c.bf16 %v3085, %v3083
    %v4022 = vpack.c.bf16 %v3088, %v3086
    %v4023 = vpack.c.bf16 %v3089, %v3087
    %v4024 = vpack.c.bf16 %v3092, %v3090
    %v4025 = vpack.c.bf16 %v3093, %v3091
    %v4026 = vpack.c.bf16 %v3096, %v3094
    %v4027 = vpack.c.bf16 %v3097, %v3095
    %v4028 = vpack.c.bf16 %v3100, %v3098
    %v4029 = vpack.c.bf16 %v3101, %v3099
    %v4030 = vpack.c.bf16 %v3104, %v3102
    %v4031 = vpack.c.bf16 %v3105, %v3103
    %v4032 = vpack.c.bf16 %v3108, %v3106
    %v4033 = vpack.c.bf16 %v3109, %v3107
    %v4034 = vpack.c.bf16 %v3112, %v3110
    %v4035 = vpack.c.bf16 %v3113, %v3111
    %v4036 = vpack.c.bf16 %v3116, %v3114
    %v4037 = vpack.c.bf16 %v3117, %v3115
    %v4038 = vpack.c.bf16 %v3120, %v3118
    %v4039 = vpack.c.bf16 %v3121, %v3119
    %v4040 = vpack.c.bf16 %v3124, %v3122
    %v4041 = vpack.c.bf16 %v3125, %v3123
    %v4042 = vpack.c.bf16 %v3128, %v3126
    %v4043 = vpack.c.bf16 %v3129, %v3127
    %v4044 = vpack.c.bf16 %v3132, %v3130
    %v4045 = vpack.c.bf16 %v3133, %v3131
    %v4046 = vpack.c.bf16 %v3136, %v3134
    %v4047 = vpack.c.bf16 %v3137, %v3135
    %v4048 = vpack.c.bf16 %v3140, %v3138
    %v4049 = vpack.c.bf16 %v3141, %v3139
    %v4050 = vpack.c.bf16 %v3144, %v3142
    %v4051 = vpack.c.bf16 %v3145, %v3143
    %v4052 = vpack.c.bf16 %v3148, %v3146
    %v4053 = vpack.c.bf16 %v3149, %v3147
    %v4054 = vpack.c.bf16 %v3152, %v3150
    %v4055 = vpack.c.bf16 %v3153, %v3151
    %v4056 = vpack.c.bf16 %v3156, %v3154
    %v4057 = vpack.c.bf16 %v3157, %v3155
    %v4058 = vpack.c.bf16 %v3160, %v3158
    %v4059 = vpack.c.bf16 %v3161, %v3159
    %v4060 = vpack.c.bf16 %v3164, %v3162
    %v4061 = vpack.c.bf16 %v3165, %v3163
    %v4062 = vpack.c.bf16 %v3168, %v3166
    %v4063 = vpack.c.bf16 %v3169, %v3167
    %v4064 = vpack.c.bf16 %v3172, %v3170
    %v4065 = vpack.c.bf16 %v3173, %v3171
    %v4066 = vpack.c.bf16 %v3176, %v3174
    %v4067 = vpack.c.bf16 %v3177, %v3175
    %v4068 = vpack.c.bf16 %v3180, %v3178
    %v4069 = vpack.c.bf16 %v3181, %v3179
    %v4070 = vpack.c.bf16 %v3184, %v3182
    %v4071 = vpack.c.bf16 %v3185, %v3183
    %v4072 = vpack.c.bf16 %v3188, %v3186
    %v4073 = vpack.c.bf16 %v3189, %v3187
    %v4074 = vpack.c.bf16 %v3192, %v3190
    %v4075 = vpack.c.bf16 %v3193, %v3191
    %v4076 = vpack.c.bf16 %v3196, %v3194
    %v4077 = vpack.c.bf16 %v3197, %v3195
    %v4078 = vpack.c.bf16 %v3200, %v3198
    %v4079 = vpack.c.bf16 %v3201, %v3199
    %v4080 = vpack.c.bf16 %v3204, %v3202
    %v4081 = vpack.c.bf16 %v3205, %v3203
    %v4082 = vpack.c.bf16 %v3208, %v3206
    %v4083 = vpack.c.bf16 %v3209, %v3207
    %v4084 = vpack.c.bf16 %v3212, %v3210
    %v4085 = vpack.c.bf16 %v3213, %v3211
    %v4086 = vpack.c.bf16 %v3216, %v3214
    %v4087 = vpack.c.bf16 %v3217, %v3215
    %v4088 = vpack.c.bf16 %v3220, %v3218
    %v4089 = vpack.c.bf16 %v3221, %v3219
    %v4090 = vpack.c.bf16 %v3224, %v3222
    %v4091 = vpack.c.bf16 %v3225, %v3223
    %v4092 = vpack.c.bf16 %v3228, %v3226
    %v4093 = vpack.c.bf16 %v3229, %v3227
    %v4094 = vpack.c.bf16 %v3232, %v3230
    %v4095 = vpack.c.bf16 %v3233, %v3231
    %v4096 = vpack.c.bf16 %v3236, %v3234
    %v4097 = vpack.c.bf16 %v3237, %v3235
    %v4098 = vpack.c.bf16 %v3240, %v3238
    %v4099 = vpack.c.bf16 %v3241, %v3239
    %v4100 = vpack.c.bf16 %v3244, %v3242
    %v4101 = vpack.c.bf16 %v3245, %v3243
    %v4102 = vpack.c.bf16 %v3248, %v3246
    %v4103 = vpack.c.bf16 %v3249, %v3247
    %v4104 = vpack.c.bf16 %v3252, %v3250
    %v4105 = vpack.c.bf16 %v3253, %v3251
    %v4106 = vpack.c.bf16 %v3256, %v3254
    %v4107 = vpack.c.bf16 %v3257, %v3255
    %v4108 = vpack.c.bf16 %v3260, %v3258
    %v4109 = vpack.c.bf16 %v3261, %v3259
    %v4110 = vpack.c.bf16 %v3264, %v3262
    %v4111 = vpack.c.bf16 %v3265, %v3263
    %v4112 = vpack.c.bf16 %v3268, %v3266
    %v4113 = vpack.c.bf16 %v3269, %v3267
    %v4114 = vpack.c.bf16 %v3272, %v3270
    %v4115 = vpack.c.bf16 %v3273, %v3271
    %v4116 = vpack.c.bf16 %v3276, %v3274
    %v4117 = vpack.c.bf16 %v3277, %v3275
    %v4118 = vpack.c.bf16 %v3280, %v3278
    %v4119 = vpack.c.bf16 %v3281, %v3279
    %v4120 = vpack.c.bf16 %v3284, %v3282
    %v4121 = vpack.c.bf16 %v3285, %v3283
    %v4122 = vpack.c.bf16 %v3288, %v3286
    %v4123 = vpack.c.bf16 %v3289, %v3287
    %v4124 = vpack.c.bf16 %v3292, %v3290
    %v4125 = vpack.c.bf16 %v3293, %v3291
    %v4126 = vpack.c.bf16 %v3296, %v3294
    %v4127 = vpack.c.bf16 %v3297, %v3295
    %v4128 = vpack.c.bf16 %v3300, %v3298
    %v4129 = vpack.c.bf16 %v3301, %v3299
    %v4130 = vpack.c.bf16 %v3304, %v3302
    %v4131 = vpack.c.bf16 %v3305, %v3303
    %v4132 = vpack.c.bf16 %v3308, %v3306
    %v4133 = vpack.c.bf16 %v3309, %v3307
    %v4134 = vpack.c.bf16 %v3312, %v3310
    %v4135 = vpack.c.bf16 %v3313, %v3311
    %v4136 = vpack.c.bf16 %v3316, %v3314
    %v4137 = vpack.c.bf16 %v3317, %v3315
    %v4138 = vpack.c.bf16 %v3320, %v3318
    %v4139 = vpack.c.bf16 %v3321, %v3319
    %v4140 = vpack.c.bf16 %v3324, %v3322
    %v4141 = vpack.c.bf16 %v3325, %v3323
    %v4142 = vpack.c.bf16 %v3328, %v3326
    %v4143 = vpack.c.bf16 %v3329, %v3327
    %v4144 = vpack.c.bf16 %v3332, %v3330
    %v4145 = vpack.c.bf16 %v3333, %v3331
    %v4146 = vpack.c.bf16 %v3336, %v3334
    %v4147 = vpack.c.bf16 %v3337, %v3335
    %v4148 = vpack.c.bf16 %v3340, %v3338
    %v4149 = vpack.c.bf16 %v3341, %v3339
    %v4150 = vpack.c.bf16 %v3344, %v3342
    %v4151 = vpack.c.bf16 %v3345, %v3343
    %v4152 = vpack.c.bf16 %v3348, %v3346
    %v4153 = vpack.c.bf16 %v3349, %v3347
    %v4154 = vpack.c.bf16 %v3352, %v3350
    %v4155 = vpack.c.bf16 %v3353, %v3351
    %v4156 = vpack.c.bf16 %v3356, %v3354
    %v4157 = vpack.c.bf16 %v3357, %v3355
    %v4158 = vpack.c.bf16 %v3360, %v3358
    %v4159 = vpack.c.bf16 %v3361, %v3359
    %v4160 = vpack.c.bf16 %v3364, %v3362
    %v4161 = vpack.c.bf16 %v3365, %v3363
    %v4162 = vpack.c.bf16 %v3368, %v3366
    %v4163 = vpack.c.bf16 %v3369, %v3367
    %v4164 = vpack.c.bf16 %v3372, %v3370
    %v4165 = vpack.c.bf16 %v3373, %v3371
    %v4166 = vpack.c.bf16 %v3376, %v3374
    %v4167 = vpack.c.bf16 %v3377, %v3375
    %v4168 = vpack.c.bf16 %v3380, %v3378
    %v4169 = vpack.c.bf16 %v3381, %v3379
    %v4170 = vpack.c.bf16 %v3384, %v3382
    %v4171 = vpack.c.bf16 %v3385, %v3383
    %v4172 = vpack.c.bf16 %v3388, %v3386
    %v4173 = vpack.c.bf16 %v3389, %v3387
    %v4174 = vpack.c.bf16 %v3392, %v3390
    %v4175 = vpack.c.bf16 %v3393, %v3391
    %v4176 = vpack.c.bf16 %v3396, %v3394
    %v4177 = vpack.c.bf16 %v3397, %v3395
    %v4178 = vpack.c.bf16 %v3400, %v3398
    %v4179 = vpack.c.bf16 %v3401, %v3399
    %v4180 = vpack.c.bf16 %v3404, %v3402
    %v4181 = vpack.c.bf16 %v3405, %v3403
    %v4182 = vpack.c.bf16 %v3408, %v3406
    %v4183 = vpack.c.bf16 %v3409, %v3407
    %v4184 = vpack.c.bf16 %v3412, %v3410
    %v4185 = vpack.c.bf16 %v3413, %v3411
    %v4186 = vpack.c.bf16 %v3416, %v3414
    %v4187 = vpack.c.bf16 %v3417, %v3415
    %v4188 = vpack.c.bf16 %v3420, %v3418
    %v4189 = vpack.c.bf16 %v3421, %v3419
    %v4190 = vpack.c.bf16 %v3424, %v3422
    %v4191 = vpack.c.bf16 %v3425, %v3423
    %v4192 = vpack.c.bf16 %v3428, %v3426
    %v4193 = vpack.c.bf16 %v3429, %v3427
    %v4194 = vpack.c.bf16 %v3432, %v3430
    %v4195 = vpack.c.bf16 %v3433, %v3431
    %v4196 = vpack.c.bf16 %v3436, %v3434
    %v4197 = vpack.c.bf16 %v3437, %v3435
    %v4198 = vpack.c.bf16 %v3440, %v3438
    %v4199 = vpack.c.bf16 %v3441, %v3439
    %v4200 = vpack.c.bf16 %v3444, %v3442
    %v4201 = vpack.c.bf16 %v3445, %v3443
    %v4202 = vpack.c.bf16 %v3448, %v3446
    %v4203 = vpack.c.bf16 %v3449, %v3447
    %v4204 = vpack.c.bf16 %v3452, %v3450
    %v4205 = vpack.c.bf16 %v3453, %v3451
    %v4206 = vpack.c.bf16 %v3456, %v3454
    %v4207 = vpack.c.bf16 %v3457, %v3455
    %v4208 = vpack.c.bf16 %v3460, %v3458
    %v4209 = vpack.c.bf16 %v3461, %v3459
    %v4210 = vpack.c.bf16 %v3464, %v3462
    %v4211 = vpack.c.bf16 %v3465, %v3463
    %v4212 = vpack.c.bf16 %v3468, %v3466
    %v4213 = vpack.c.bf16 %v3469, %v3467
    %v4214 = vpack.c.bf16 %v3472, %v3470
    %v4215 = vpack.c.bf16 %v3473, %v3471
    %v4216 = vpack.c.bf16 %v3476, %v3474
    %v4217 = vpack.c.bf16 %v3477, %v3475
    %v4218 = vpack.c.bf16 %v3480, %v3478
    %v4219 = vpack.c.bf16 %v3481, %v3479
    %v4220 = vpack.c.bf16 %v3484, %v3482
    %v4221 = vpack.c.bf16 %v3485, %v3483
    %v4222 = vpack.c.bf16 %v3488, %v3486
    %v4223 = vpack.c.bf16 %v3489, %v3487
    %v4224 = vpack.c.bf16 %v3492, %v3490
    %v4225 = vpack.c.bf16 %v3493, %v3491
    %v4226 = vpack.c.bf16 %v3496, %v3494
    %v4227 = vpack.c.bf16 %v3497, %v3495
    %v4228 = vpack.c.bf16 %v3500, %v3498
    %v4229 = vpack.c.bf16 %v3501, %v3499
    %v4230 = vpack.c.bf16 %v3504, %v3502
    %v4231 = vpack.c.bf16 %v3505, %v3503
    %v4232 = vpack.c.bf16 %v3508, %v3506
    %v4233 = vpack.c.bf16 %v3509, %v3507
    %v4234 = vpack.c.bf16 %v3512, %v3510
    %v4235 = vpack.c.bf16 %v3513, %v3511
    %v4236 = vpack.c.bf16 %v3516, %v3514
    %v4237 = vpack.c.bf16 %v3517, %v3515
    %v4238 = vpack.c.bf16 %v3520, %v3518
    %v4239 = vpack.c.bf16 %v3521, %v3519
    %v4240 = vpack.c.bf16 %v3524, %v3522
    %v4241 = vpack.c.bf16 %v3525, %v3523
    %v4242 = vpack.c.bf16 %v3528, %v3526
    %v4243 = vpack.c.bf16 %v3529, %v3527
    %v4244 = vpack.c.bf16 %v3532, %v3530
    %v4245 = vpack.c.bf16 %v3533, %v3531
    %v4246 = vpack.c.bf16 %v3536, %v3534
    %v4247 = vpack.c.bf16 %v3537, %v3535
    %v4248 = vpack.c.bf16 %v3540, %v3538
    %v4249 = vpack.c.bf16 %v3541, %v3539
    %v4250 = vpack.c.bf16 %v3544, %v3542
    %v4251 = vpack.c.bf16 %v3545, %v3543
    %v4252 = vpack.c.bf16 %v3548, %v3546
    %v4253 = vpack.c.bf16 %v3549, %v3547
    %v4254 = vpack.c.bf16 %v3552, %v3550
    %v4255 = vpack.c.bf16 %v3553, %v3551
    %v4256 = vpack.c.bf16 %v3556, %v3554
    %v4257 = vpack.c.bf16 %v3557, %v3555
    %v4258 = vpack.c.bf16 %v3560, %v3558
    %v4259 = vpack.c.bf16 %v3561, %v3559
    %v4260 = vpack.c.bf16 %v3564, %v3562
    %v4261 = vpack.c.bf16 %v3565, %v3563
    %v4262 = vpack.c.bf16 %v3568, %v3566
    %v4263 = vpack.c.bf16 %v3569, %v3567
    %v4264 = vpack.c.bf16 %v3572, %v3570
    %v4265 = vpack.c.bf16 %v3573, %v3571
    %v4266 = vpack.c.bf16 %v3576, %v3574
    %v4267 = vpack.c.bf16 %v3577, %v3575
    %v4268 = vpack.c.bf16 %v3580, %v3578
    %v4269 = vpack.c.bf16 %v3581, %v3579
    %v4270 = vpack.c.bf16 %v3584, %v3582
    %v4271 = vpack.c.bf16 %v3585, %v3583
    %v4272 = vpack.c.bf16 %v3588, %v3586
    %v4273 = vpack.c.bf16 %v3589, %v3587
    %v4274 = vpack.c.bf16 %v3592, %v3590
    %v4275 = vpack.c.bf16 %v3593, %v3591
    %v4276 = vpack.c.bf16 %v3596, %v3594
    %v4277 = vpack.c.bf16 %v3597, %v3595
    %v4278 = vpack.c.bf16 %v3600, %v3598
    %v4279 = vpack.c.bf16 %v3601, %v3599
    %v4280 = vpack.c.bf16 %v3604, %v3602
    %v4281 = vpack.c.bf16 %v3605, %v3603
    %v4282 = vpack.c.bf16 %v3608, %v3606
    %v4283 = vpack.c.bf16 %v3609, %v3607
    %v4284 = vpack.c.bf16 %v3612, %v3610
    %v4285 = vpack.c.bf16 %v3613, %v3611
    %4286 = vmatpush.bf16.msra.mxu0 %v3628
    %4287 = vmatpush.bf16.msra.mxu0 %v3626
    %4288 = vmatpush.bf16.msra.mxu0 %v3624
    %4289 = vmatpush.bf16.msra.mxu0 %v3622
    %4290 = vmatpush.bf16.msra.mxu0 %v3620
    %4291 = vmatpush.bf16.msra.mxu0 %v3618
    %4292 = vmatpush.bf16.msra.mxu0 %v3616
    %4293 = vmatpush.bf16.msra.mxu0 %v3614
    %4294 = vmatmul.bf16.gmra.mxu0 %v842
    %v4295 = vpop.f32.mrf.mxu0
    %v4296 = vadd.f32 0.0, %v4295
    %v4297 = vpop.f32.mrf.mxu0
    %v4298 = vadd.f32 0.0, %v4297
    %4299 = vmatmul.bf16.gmra.mxu0 %v884
    %v4300 = vpop.f32.mrf.mxu0
    %v4301 = vadd.f32 0.0, %v4300
    %v4302 = vpop.f32.mrf.mxu0
    %v4303 = vadd.f32 0.0, %v4302
    %4304 = vdwg.mxu0
    %4305 = vmatpush.bf16.msra.mxu0 %v3644
    %4306 = vmatpush.bf16.msra.mxu0 %v3642
    %4307 = vmatpush.bf16.msra.mxu0 %v3640
    %4308 = vmatpush.bf16.msra.mxu0 %v3638
    %4309 = vmatpush.bf16.msra.mxu0 %v3636
    %4310 = vmatpush.bf16.msra.mxu0 %v3634
    %4311 = vmatpush.bf16.msra.mxu0 %v3632
    %4312 = vmatpush.bf16.msra.mxu0 %v3630
    %4313 = vmatmul.bf16.gmra.mxu0 %v843
    %v4314 = vpop.f32.mrf.mxu0
    %v4315 = vadd.f32 %v4296, %v4314
    %v4316 = vpop.f32.mrf.mxu0
    %v4317 = vadd.f32 %v4298, %v4316
    %4318 = vmatmul.bf16.gmra.mxu0 %v885
    %v4319 = vpop.f32.mrf.mxu0
    %v4320 = vadd.f32 %v4301, %v4319
    %v4321 = vpop.f32.mrf.mxu0
    %v4322 = vadd.f32 %v4303, %v4321
    %4323 = vdwg.mxu0
    %4324 = vmatpush.bf16.msra.mxu0 %v3660
    %4325 = vmatpush.bf16.msra.mxu0 %v3658
    %4326 = vmatpush.bf16.msra.mxu0 %v3656
    %4327 = vmatpush.bf16.msra.mxu0 %v3654
    %4328 = vmatpush.bf16.msra.mxu0 %v3652
    %4329 = vmatpush.bf16.msra.mxu0 %v3650
    %4330 = vmatpush.bf16.msra.mxu0 %v3648
    %4331 = vmatpush.bf16.msra.mxu0 %v3646
    %4332 = vmatmul.bf16.gmra.mxu0 %v844
    %v4333 = vpop.f32.mrf.mxu0
    %v4334 = vadd.f32 %v4315, %v4333
    %v4335 = vpop.f32.mrf.mxu0
    %v4336 = vadd.f32 %v4317, %v4335
    %4337 = vmatmul.bf16.gmra.mxu0 %v886
    %v4338 = vpop.f32.mrf.mxu0
    %v4339 = vadd.f32 %v4320, %v4338
    %v4340 = vpop.f32.mrf.mxu0
    %v4341 = vadd.f32 %v4322, %v4340
    %4342 = vdwg.mxu0
    %4343 = vmatpush.bf16.msra.mxu0 %v3676
    %4344 = vmatpush.bf16.msra.mxu0 %v3674
    %4345 = vmatpush.bf16.msra.mxu0 %v3672
    %4346 = vmatpush.bf16.msra.mxu0 %v3670
    %4347 = vmatpush.bf16.msra.mxu0 %v3668
    %4348 = vmatpush.bf16.msra.mxu0 %v3666
    %4349 = vmatpush.bf16.msra.mxu0 %v3664
    %4350 = vmatpush.bf16.msra.mxu0 %v3662
    %4351 = vmatmul.bf16.gmra.mxu0 %v845
    %v4352 = vpop.f32.mrf.mxu0
    %v4353 = vadd.f32 %v4334, %v4352
    %v4354 = vpop.f32.mrf.mxu0
    %v4355 = vadd.f32 %v4336, %v4354
    %4356 = vmatmul.bf16.gmra.mxu0 %v887
    %v4357 = vpop.f32.mrf.mxu0
    %v4358 = vadd.f32 %v4339, %v4357
    %v4359 = vpop.f32.mrf.mxu0
    %v4360 = vadd.f32 %v4341, %v4359
    %4361 = vdwg.mxu0
    %4362 = vmatpush.bf16.msra.mxu0 %v3692
    %4363 = vmatpush.bf16.msra.mxu0 %v3690
    %4364 = vmatpush.bf16.msra.mxu0 %v3688
    %4365 = vmatpush.bf16.msra.mxu0 %v3686
    %4366 = vmatpush.bf16.msra.mxu0 %v3684
    %4367 = vmatpush.bf16.msra.mxu0 %v3682
    %4368 = vmatpush.bf16.msra.mxu0 %v3680
    %4369 = vmatpush.bf16.msra.mxu0 %v3678
    %4370 = vmatmul.bf16.gmra.mxu0 %v846
    %v4371 = vpop.f32.mrf.mxu0
    %v4372 = vadd.f32 %v4353, %v4371
    %v4373 = vpop.f32.mrf.mxu0
    %v4374 = vadd.f32 %v4355, %v4373
    %4375 = vmatmul.bf16.gmra.mxu0 %v888
    %v4376 = vpop.f32.mrf.mxu0
    %v4377 = vadd.f32 %v4358, %v4376
    %v4378 = vpop.f32.mrf.mxu0
    %v4379 = vadd.f32 %v4360, %v4378
    %4380 = vdwg.mxu0
    %4381 = vmatpush.bf16.msra.mxu0 %v3708
    %4382 = vmatpush.bf16.msra.mxu0 %v3706
    %4383 = vmatpush.bf16.msra.mxu0 %v3704
    %4384 = vmatpush.bf16.msra.mxu0 %v3702
    %4385 = vmatpush.bf16.msra.mxu0 %v3700
    %4386 = vmatpush.bf16.msra.mxu0 %v3698
    %4387 = vmatpush.bf16.msra.mxu0 %v3696
    %4388 = vmatpush.bf16.msra.mxu0 %v3694
    %4389 = vmatmul.bf16.gmra.mxu0 %v847
    %v4390 = vpop.f32.mrf.mxu0
    %v4391 = vadd.f32 %v4372, %v4390
    %v4392 = vpop.f32.mrf.mxu0
    %v4393 = vadd.f32 %v4374, %v4392
    %4394 = vmatmul.bf16.gmra.mxu0 %v889
    %v4395 = vpop.f32.mrf.mxu0
    %v4396 = vadd.f32 %v4377, %v4395
    %v4397 = vpop.f32.mrf.mxu0
    %v4398 = vadd.f32 %v4379, %v4397
    %4399 = vdwg.mxu0
    %4400 = vmatpush.bf16.msra.mxu0 %v3724
    %4401 = vmatpush.bf16.msra.mxu0 %v3722
    %4402 = vmatpush.bf16.msra.mxu0 %v3720
    %4403 = vmatpush.bf16.msra.mxu0 %v3718
    %4404 = vmatpush.bf16.msra.mxu0 %v3716
    %4405 = vmatpush.bf16.msra.mxu0 %v3714
    %4406 = vmatpush.bf16.msra.mxu0 %v3712
    %4407 = vmatpush.bf16.msra.mxu0 %v3710
    %4408 = vmatmul.bf16.gmra.mxu0 %v848
    %v4409 = vpop.f32.mrf.mxu0
    %v4410 = vadd.f32 %v4391, %v4409
    %v4411 = vpop.f32.mrf.mxu0
    %v4412 = vadd.f32 %v4393, %v4411
    %4413 = vmatmul.bf16.gmra.mxu0 %v890
    %v4414 = vpop.f32.mrf.mxu0
    %v4415 = vadd.f32 %v4396, %v4414
    %v4416 = vpop.f32.mrf.mxu0
    %v4417 = vadd.f32 %v4398, %v4416
    %4418 = vdwg.mxu0
    %4419 = vmatpush.bf16.msra.mxu0 %v3740
    %4420 = vmatpush.bf16.msra.mxu0 %v3738
    %4421 = vmatpush.bf16.msra.mxu0 %v3736
    %4422 = vmatpush.bf16.msra.mxu0 %v3734
    %4423 = vmatpush.bf16.msra.mxu0 %v3732
    %4424 = vmatpush.bf16.msra.mxu0 %v3730
    %4425 = vmatpush.bf16.msra.mxu0 %v3728
    %4426 = vmatpush.bf16.msra.mxu0 %v3726
    %4427 = vmatmul.bf16.gmra.mxu0 %v849
    %v4428 = vpop.f32.mrf.mxu0
    %v4429 = vadd.f32 %v4410, %v4428
    %v4430 = vpop.f32.mrf.mxu0
    %v4431 = vadd.f32 %v4412, %v4430
    %4432 = vmatmul.bf16.gmra.mxu0 %v891
    %v4433 = vpop.f32.mrf.mxu0
    %v4434 = vadd.f32 %v4415, %v4433
    %v4435 = vpop.f32.mrf.mxu0
    %v4436 = vadd.f32 %v4417, %v4435
    %4437 = vdwg.mxu0
    %4438 = vmatpush.bf16.msra.mxu0 %v3756
    %4439 = vmatpush.bf16.msra.mxu0 %v3754
    %4440 = vmatpush.bf16.msra.mxu0 %v3752
    %4441 = vmatpush.bf16.msra.mxu0 %v3750
    %4442 = vmatpush.bf16.msra.mxu0 %v3748
    %4443 = vmatpush.bf16.msra.mxu0 %v3746
    %4444 = vmatpush.bf16.msra.mxu0 %v3744
    %4445 = vmatpush.bf16.msra.mxu0 %v3742
    %4446 = vmatmul.bf16.gmra.mxu0 %v850
    %v4447 = vpop.f32.mrf.mxu0
    %v4448 = vadd.f32 %v4429, %v4447
    %v4449 = vpop.f32.mrf.mxu0
    %v4450 = vadd.f32 %v4431, %v4449
    %4451 = vmatmul.bf16.gmra.mxu0 %v892
    %v4452 = vpop.f32.mrf.mxu0
    %v4453 = vadd.f32 %v4434, %v4452
    %v4454 = vpop.f32.mrf.mxu0
    %v4455 = vadd.f32 %v4436, %v4454
    %4456 = vdwg.mxu0
    %4457 = vmatpush.bf16.msra.mxu0 %v3772
    %4458 = vmatpush.bf16.msra.mxu0 %v3770
    %4459 = vmatpush.bf16.msra.mxu0 %v3768
    %4460 = vmatpush.bf16.msra.mxu0 %v3766
    %4461 = vmatpush.bf16.msra.mxu0 %v3764
    %4462 = vmatpush.bf16.msra.mxu0 %v3762
    %4463 = vmatpush.bf16.msra.mxu0 %v3760
    %4464 = vmatpush.bf16.msra.mxu0 %v3758
    %4465 = vmatmul.bf16.gmra.mxu0 %v851
    %v4466 = vpop.f32.mrf.mxu0
    %v4467 = vadd.f32 %v4448, %v4466
    %v4468 = vpop.f32.mrf.mxu0
    %v4469 = vadd.f32 %v4450, %v4468
    %4470 = vmatmul.bf16.gmra.mxu0 %v893
    %v4471 = vpop.f32.mrf.mxu0
    %v4472 = vadd.f32 %v4453, %v4471
    %v4473 = vpop.f32.mrf.mxu0
    %v4474 = vadd.f32 %v4455, %v4473
    %4475 = vdwg.mxu0
    %4476 = vmatpush.bf16.msra.mxu0 %v3788
    %4477 = vmatpush.bf16.msra.mxu0 %v3786
    %4478 = vmatpush.bf16.msra.mxu0 %v3784
    %4479 = vmatpush.bf16.msra.mxu0 %v3782
    %4480 = vmatpush.bf16.msra.mxu0 %v3780
    %4481 = vmatpush.bf16.msra.mxu0 %v3778
    %4482 = vmatpush.bf16.msra.mxu0 %v3776
    %4483 = vmatpush.bf16.msra.mxu0 %v3774
    %4484 = vmatmul.bf16.gmra.mxu0 %v852
    %v4485 = vpop.f32.mrf.mxu0
    %v4486 = vadd.f32 %v4467, %v4485
    %v4487 = vpop.f32.mrf.mxu0
    %v4488 = vadd.f32 %v4469, %v4487
    %4489 = vmatmul.bf16.gmra.mxu0 %v894
    %v4490 = vpop.f32.mrf.mxu0
    %v4491 = vadd.f32 %v4472, %v4490
    %v4492 = vpop.f32.mrf.mxu0
    %v4493 = vadd.f32 %v4474, %v4492
    %4494 = vdwg.mxu0
    %4495 = vmatpush.bf16.msra.mxu0 %v3804
    %4496 = vmatpush.bf16.msra.mxu0 %v3802
    %4497 = vmatpush.bf16.msra.mxu0 %v3800
    %4498 = vmatpush.bf16.msra.mxu0 %v3798
    %4499 = vmatpush.bf16.msra.mxu0 %v3796
    %4500 = vmatpush.bf16.msra.mxu0 %v3794
    %4501 = vmatpush.bf16.msra.mxu0 %v3792
    %4502 = vmatpush.bf16.msra.mxu0 %v3790
    %4503 = vmatmul.bf16.gmra.mxu0 %v853
    %v4504 = vpop.f32.mrf.mxu0
    %v4505 = vadd.f32 %v4486, %v4504
    %v4506 = vpop.f32.mrf.mxu0
    %v4507 = vadd.f32 %v4488, %v4506
    %4508 = vmatmul.bf16.gmra.mxu0 %v895
    %v4509 = vpop.f32.mrf.mxu0
    %v4510 = vadd.f32 %v4491, %v4509
    %v4511 = vpop.f32.mrf.mxu0
    %v4512 = vadd.f32 %v4493, %v4511
    %4513 = vdwg.mxu0
    %4514 = vmatpush.bf16.msra.mxu0 %v3820
    %4515 = vmatpush.bf16.msra.mxu0 %v3818
    %4516 = vmatpush.bf16.msra.mxu0 %v3816
    %4517 = vmatpush.bf16.msra.mxu0 %v3814
    %4518 = vmatpush.bf16.msra.mxu0 %v3812
    %4519 = vmatpush.bf16.msra.mxu0 %v3810
    %4520 = vmatpush.bf16.msra.mxu0 %v3808
    %4521 = vmatpush.bf16.msra.mxu0 %v3806
    %4522 = vmatmul.bf16.gmra.mxu0 %v854
    %v4523 = vpop.f32.mrf.mxu0
    %v4524 = vadd.f32 %v4505, %v4523
    %v4525 = vpop.f32.mrf.mxu0
    %v4526 = vadd.f32 %v4507, %v4525
    %4527 = vmatmul.bf16.gmra.mxu0 %v896
    %v4528 = vpop.f32.mrf.mxu0
    %v4529 = vadd.f32 %v4510, %v4528
    %v4530 = vpop.f32.mrf.mxu0
    %v4531 = vadd.f32 %v4512, %v4530
    %4532 = vdwg.mxu0
    %4533 = vmatpush.bf16.msra.mxu0 %v3836
    %4534 = vmatpush.bf16.msra.mxu0 %v3834
    %4535 = vmatpush.bf16.msra.mxu0 %v3832
    %4536 = vmatpush.bf16.msra.mxu0 %v3830
    %4537 = vmatpush.bf16.msra.mxu0 %v3828
    %4538 = vmatpush.bf16.msra.mxu0 %v3826
    %4539 = vmatpush.bf16.msra.mxu0 %v3824
    %4540 = vmatpush.bf16.msra.mxu0 %v3822
    %4541 = vmatmul.bf16.gmra.mxu0 %v855
    %v4542 = vpop.f32.mrf.mxu0
    %v4543 = vadd.f32 %v4524, %v4542
    %v4544 = vpop.f32.mrf.mxu0
    %v4545 = vadd.f32 %v4526, %v4544
    %4546 = vmatmul.bf16.gmra.mxu0 %v897
    %v4547 = vpop.f32.mrf.mxu0
    %v4548 = vadd.f32 %v4529, %v4547
    %v4549 = vpop.f32.mrf.mxu0
    %v4550 = vadd.f32 %v4531, %v4549
    %4551 = vdwg.mxu0
    %4552 = vmatpush.bf16.msra.mxu0 %v3852
    %4553 = vmatpush.bf16.msra.mxu0 %v3850
    %4554 = vmatpush.bf16.msra.mxu0 %v3848
    %4555 = vmatpush.bf16.msra.mxu0 %v3846
    %4556 = vmatpush.bf16.msra.mxu0 %v3844
    %4557 = vmatpush.bf16.msra.mxu0 %v3842
    %4558 = vmatpush.bf16.msra.mxu0 %v3840
    %4559 = vmatpush.bf16.msra.mxu0 %v3838
    %4560 = vmatmul.bf16.gmra.mxu0 %v856
    %v4561 = vpop.f32.mrf.mxu0
    %v4562 = vadd.f32 %v4543, %v4561
    %v4563 = vpop.f32.mrf.mxu0
    %v4564 = vadd.f32 %v4545, %v4563
    %4565 = vmatmul.bf16.gmra.mxu0 %v898
    %v4566 = vpop.f32.mrf.mxu0
    %v4567 = vadd.f32 %v4548, %v4566
    %v4568 = vpop.f32.mrf.mxu0
    %v4569 = vadd.f32 %v4550, %v4568
    %4570 = vdwg.mxu0
    %4571 = vmatpush.bf16.msra.mxu0 %v3868
    %4572 = vmatpush.bf16.msra.mxu0 %v3866
    %4573 = vmatpush.bf16.msra.mxu0 %v3864
    %4574 = vmatpush.bf16.msra.mxu0 %v3862
    %4575 = vmatpush.bf16.msra.mxu0 %v3860
    %4576 = vmatpush.bf16.msra.mxu0 %v3858
    %4577 = vmatpush.bf16.msra.mxu0 %v3856
    %4578 = vmatpush.bf16.msra.mxu0 %v3854
    %4579 = vmatmul.bf16.gmra.mxu0 %v857
    %v4580 = vpop.f32.mrf.mxu0
    %v4581 = vadd.f32 %v4562, %v4580
    %v4582 = vpop.f32.mrf.mxu0
    %v4583 = vadd.f32 %v4564, %v4582
    %4584 = vmatmul.bf16.gmra.mxu0 %v899
    %v4585 = vpop.f32.mrf.mxu0
    %v4586 = vadd.f32 %v4567, %v4585
    %v4587 = vpop.f32.mrf.mxu0
    %v4588 = vadd.f32 %v4569, %v4587
    %4589 = vdwg.mxu0
    %4590 = vmatpush.bf16.msra.mxu0 %v3884
    %4591 = vmatpush.bf16.msra.mxu0 %v3882
    %4592 = vmatpush.bf16.msra.mxu0 %v3880
    %4593 = vmatpush.bf16.msra.mxu0 %v3878
    %4594 = vmatpush.bf16.msra.mxu0 %v3876
    %4595 = vmatpush.bf16.msra.mxu0 %v3874
    %4596 = vmatpush.bf16.msra.mxu0 %v3872
    %4597 = vmatpush.bf16.msra.mxu0 %v3870
    %4598 = vmatmul.bf16.gmra.mxu0 %v858
    %v4599 = vpop.f32.mrf.mxu0
    %v4600 = vadd.f32 %v4581, %v4599
    %v4601 = vpop.f32.mrf.mxu0
    %v4602 = vadd.f32 %v4583, %v4601
    %4603 = vmatmul.bf16.gmra.mxu0 %v900
    %v4604 = vpop.f32.mrf.mxu0
    %v4605 = vadd.f32 %v4586, %v4604
    %v4606 = vpop.f32.mrf.mxu0
    %v4607 = vadd.f32 %v4588, %v4606
    %4608 = vdwg.mxu0
    %4609 = vmatpush.bf16.msra.mxu0 %v3900
    %4610 = vmatpush.bf16.msra.mxu0 %v3898
    %4611 = vmatpush.bf16.msra.mxu0 %v3896
    %4612 = vmatpush.bf16.msra.mxu0 %v3894
    %4613 = vmatpush.bf16.msra.mxu0 %v3892
    %4614 = vmatpush.bf16.msra.mxu0 %v3890
    %4615 = vmatpush.bf16.msra.mxu0 %v3888
    %4616 = vmatpush.bf16.msra.mxu0 %v3886
    %4617 = vmatmul.bf16.gmra.mxu0 %v859
    %v4618 = vpop.f32.mrf.mxu0
    %v4619 = vadd.f32 %v4600, %v4618
    %v4620 = vpop.f32.mrf.mxu0
    %v4621 = vadd.f32 %v4602, %v4620
    %4622 = vmatmul.bf16.gmra.mxu0 %v901
    %v4623 = vpop.f32.mrf.mxu0
    %v4624 = vadd.f32 %v4605, %v4623
    %v4625 = vpop.f32.mrf.mxu0
    %v4626 = vadd.f32 %v4607, %v4625
    %4627 = vdwg.mxu0
    %4628 = vmatpush.bf16.msra.mxu0 %v3916
    %4629 = vmatpush.bf16.msra.mxu0 %v3914
    %4630 = vmatpush.bf16.msra.mxu0 %v3912
    %4631 = vmatpush.bf16.msra.mxu0 %v3910
    %4632 = vmatpush.bf16.msra.mxu0 %v3908
    %4633 = vmatpush.bf16.msra.mxu0 %v3906
    %4634 = vmatpush.bf16.msra.mxu0 %v3904
    %4635 = vmatpush.bf16.msra.mxu0 %v3902
    %4636 = vmatmul.bf16.gmra.mxu0 %v860
    %v4637 = vpop.f32.mrf.mxu0
    %v4638 = vadd.f32 %v4619, %v4637
    %v4639 = vpop.f32.mrf.mxu0
    %v4640 = vadd.f32 %v4621, %v4639
    %4641 = vmatmul.bf16.gmra.mxu0 %v902
    %v4642 = vpop.f32.mrf.mxu0
    %v4643 = vadd.f32 %v4624, %v4642
    %v4644 = vpop.f32.mrf.mxu0
    %v4645 = vadd.f32 %v4626, %v4644
    %4646 = vdwg.mxu0
    %4647 = vmatpush.bf16.msra.mxu0 %v3932
    %4648 = vmatpush.bf16.msra.mxu0 %v3930
    %4649 = vmatpush.bf16.msra.mxu0 %v3928
    %4650 = vmatpush.bf16.msra.mxu0 %v3926
    %4651 = vmatpush.bf16.msra.mxu0 %v3924
    %4652 = vmatpush.bf16.msra.mxu0 %v3922
    %4653 = vmatpush.bf16.msra.mxu0 %v3920
    %4654 = vmatpush.bf16.msra.mxu0 %v3918
    %4655 = vmatmul.bf16.gmra.mxu0 %v861
    %v4656 = vpop.f32.mrf.mxu0
    %v4657 = vadd.f32 %v4638, %v4656
    %v4658 = vpop.f32.mrf.mxu0
    %v4659 = vadd.f32 %v4640, %v4658
    %4660 = vmatmul.bf16.gmra.mxu0 %v903
    %v4661 = vpop.f32.mrf.mxu0
    %v4662 = vadd.f32 %v4643, %v4661
    %v4663 = vpop.f32.mrf.mxu0
    %v4664 = vadd.f32 %v4645, %v4663
    %4665 = vdwg.mxu0
    %4666 = vmatpush.bf16.msra.mxu0 %v3948
    %4667 = vmatpush.bf16.msra.mxu0 %v3946
    %4668 = vmatpush.bf16.msra.mxu0 %v3944
    %4669 = vmatpush.bf16.msra.mxu0 %v3942
    %4670 = vmatpush.bf16.msra.mxu0 %v3940
    %4671 = vmatpush.bf16.msra.mxu0 %v3938
    %4672 = vmatpush.bf16.msra.mxu0 %v3936
    %4673 = vmatpush.bf16.msra.mxu0 %v3934
    %4674 = vmatmul.bf16.gmra.mxu0 %v862
    %v4675 = vpop.f32.mrf.mxu0
    %v4676 = vadd.f32 %v4657, %v4675
    %v4677 = vpop.f32.mrf.mxu0
    %v4678 = vadd.f32 %v4659, %v4677
    %4679 = vmatmul.bf16.gmra.mxu0 %v904
    %v4680 = vpop.f32.mrf.mxu0
    %v4681 = vadd.f32 %v4662, %v4680
    %v4682 = vpop.f32.mrf.mxu0
    %v4683 = vadd.f32 %v4664, %v4682
    %4684 = vdwg.mxu0
    %4685 = vmatpush.bf16.msra.mxu0 %v3964
    %4686 = vmatpush.bf16.msra.mxu0 %v3962
    %4687 = vmatpush.bf16.msra.mxu0 %v3960
    %4688 = vmatpush.bf16.msra.mxu0 %v3958
    %4689 = vmatpush.bf16.msra.mxu0 %v3956
    %4690 = vmatpush.bf16.msra.mxu0 %v3954
    %4691 = vmatpush.bf16.msra.mxu0 %v3952
    %4692 = vmatpush.bf16.msra.mxu0 %v3950
    %4693 = vmatmul.bf16.gmra.mxu0 %v863
    %v4694 = vpop.f32.mrf.mxu0
    %v4695 = vadd.f32 %v4676, %v4694
    %v4696 = vpop.f32.mrf.mxu0
    %v4697 = vadd.f32 %v4678, %v4696
    %4698 = vmatmul.bf16.gmra.mxu0 %v905
    %v4699 = vpop.f32.mrf.mxu0
    %v4700 = vadd.f32 %v4681, %v4699
    %v4701 = vpop.f32.mrf.mxu0
    %v4702 = vadd.f32 %v4683, %v4701
    %4703 = vdwg.mxu0
    %4704 = vmatpush.bf16.msra.mxu0 %v3980
    %4705 = vmatpush.bf16.msra.mxu0 %v3978
    %4706 = vmatpush.bf16.msra.mxu0 %v3976
    %4707 = vmatpush.bf16.msra.mxu0 %v3974
    %4708 = vmatpush.bf16.msra.mxu0 %v3972
    %4709 = vmatpush.bf16.msra.mxu0 %v3970
    %4710 = vmatpush.bf16.msra.mxu0 %v3968
    %4711 = vmatpush.bf16.msra.mxu0 %v3966
    %4712 = vmatmul.bf16.gmra.mxu0 %v864
    %v4713 = vpop.f32.mrf.mxu0
    %v4714 = vadd.f32 %v4695, %v4713
    %v4715 = vpop.f32.mrf.mxu0
    %v4716 = vadd.f32 %v4697, %v4715
    %4717 = vmatmul.bf16.gmra.mxu0 %v906
    %v4718 = vpop.f32.mrf.mxu0
    %v4719 = vadd.f32 %v4700, %v4718
    %v4720 = vpop.f32.mrf.mxu0
    %v4721 = vadd.f32 %v4702, %v4720
    %4722 = vdwg.mxu0
    %4723 = vmatpush.bf16.msra.mxu0 %v3996
    %4724 = vmatpush.bf16.msra.mxu0 %v3994
    %4725 = vmatpush.bf16.msra.mxu0 %v3992
    %4726 = vmatpush.bf16.msra.mxu0 %v3990
    %4727 = vmatpush.bf16.msra.mxu0 %v3988
    %4728 = vmatpush.bf16.msra.mxu0 %v3986
    %4729 = vmatpush.bf16.msra.mxu0 %v3984
    %4730 = vmatpush.bf16.msra.mxu0 %v3982
    %4731 = vmatmul.bf16.gmra.mxu0 %v865
    %v4732 = vpop.f32.mrf.mxu0
    %v4733 = vadd.f32 %v4714, %v4732
    %v4734 = vpop.f32.mrf.mxu0
    %v4735 = vadd.f32 %v4716, %v4734
    %4736 = vmatmul.bf16.gmra.mxu0 %v907
    %v4737 = vpop.f32.mrf.mxu0
    %v4738 = vadd.f32 %v4719, %v4737
    %v4739 = vpop.f32.mrf.mxu0
    %v4740 = vadd.f32 %v4721, %v4739
    %4741 = vdwg.mxu0
    %4742 = vmatpush.bf16.msra.mxu0 %v4012
    %4743 = vmatpush.bf16.msra.mxu0 %v4010
    %4744 = vmatpush.bf16.msra.mxu0 %v4008
    %4745 = vmatpush.bf16.msra.mxu0 %v4006
    %4746 = vmatpush.bf16.msra.mxu0 %v4004
    %4747 = vmatpush.bf16.msra.mxu0 %v4002
    %4748 = vmatpush.bf16.msra.mxu0 %v4000
    %4749 = vmatpush.bf16.msra.mxu0 %v3998
    %4750 = vmatmul.bf16.gmra.mxu0 %v866
    %v4751 = vpop.f32.mrf.mxu0
    %v4752 = vadd.f32 %v4733, %v4751
    %v4753 = vpop.f32.mrf.mxu0
    %v4754 = vadd.f32 %v4735, %v4753
    %4755 = vmatmul.bf16.gmra.mxu0 %v908
    %v4756 = vpop.f32.mrf.mxu0
    %v4757 = vadd.f32 %v4738, %v4756
    %v4758 = vpop.f32.mrf.mxu0
    %v4759 = vadd.f32 %v4740, %v4758
    %4760 = vdwg.mxu0
    %4761 = vmatpush.bf16.msra.mxu0 %v4028
    %4762 = vmatpush.bf16.msra.mxu0 %v4026
    %4763 = vmatpush.bf16.msra.mxu0 %v4024
    %4764 = vmatpush.bf16.msra.mxu0 %v4022
    %4765 = vmatpush.bf16.msra.mxu0 %v4020
    %4766 = vmatpush.bf16.msra.mxu0 %v4018
    %4767 = vmatpush.bf16.msra.mxu0 %v4016
    %4768 = vmatpush.bf16.msra.mxu0 %v4014
    %4769 = vmatmul.bf16.gmra.mxu0 %v867
    %v4770 = vpop.f32.mrf.mxu0
    %v4771 = vadd.f32 %v4752, %v4770
    %v4772 = vpop.f32.mrf.mxu0
    %v4773 = vadd.f32 %v4754, %v4772
    %4774 = vmatmul.bf16.gmra.mxu0 %v909
    %v4775 = vpop.f32.mrf.mxu0
    %v4776 = vadd.f32 %v4757, %v4775
    %v4777 = vpop.f32.mrf.mxu0
    %v4778 = vadd.f32 %v4759, %v4777
    %4779 = vdwg.mxu0
    %4780 = vmatpush.bf16.msra.mxu0 %v4044
    %4781 = vmatpush.bf16.msra.mxu0 %v4042
    %4782 = vmatpush.bf16.msra.mxu0 %v4040
    %4783 = vmatpush.bf16.msra.mxu0 %v4038
    %4784 = vmatpush.bf16.msra.mxu0 %v4036
    %4785 = vmatpush.bf16.msra.mxu0 %v4034
    %4786 = vmatpush.bf16.msra.mxu0 %v4032
    %4787 = vmatpush.bf16.msra.mxu0 %v4030
    %4788 = vmatmul.bf16.gmra.mxu0 %v868
    %v4789 = vpop.f32.mrf.mxu0
    %v4790 = vadd.f32 %v4771, %v4789
    %v4791 = vpop.f32.mrf.mxu0
    %v4792 = vadd.f32 %v4773, %v4791
    %4793 = vmatmul.bf16.gmra.mxu0 %v910
    %v4794 = vpop.f32.mrf.mxu0
    %v4795 = vadd.f32 %v4776, %v4794
    %v4796 = vpop.f32.mrf.mxu0
    %v4797 = vadd.f32 %v4778, %v4796
    %4798 = vdwg.mxu0
    %4799 = vmatpush.bf16.msra.mxu0 %v4060
    %4800 = vmatpush.bf16.msra.mxu0 %v4058
    %4801 = vmatpush.bf16.msra.mxu0 %v4056
    %4802 = vmatpush.bf16.msra.mxu0 %v4054
    %4803 = vmatpush.bf16.msra.mxu0 %v4052
    %4804 = vmatpush.bf16.msra.mxu0 %v4050
    %4805 = vmatpush.bf16.msra.mxu0 %v4048
    %4806 = vmatpush.bf16.msra.mxu0 %v4046
    %4807 = vmatmul.bf16.gmra.mxu0 %v869
    %v4808 = vpop.f32.mrf.mxu0
    %v4809 = vadd.f32 %v4790, %v4808
    %v4810 = vpop.f32.mrf.mxu0
    %v4811 = vadd.f32 %v4792, %v4810
    %4812 = vmatmul.bf16.gmra.mxu0 %v911
    %v4813 = vpop.f32.mrf.mxu0
    %v4814 = vadd.f32 %v4795, %v4813
    %v4815 = vpop.f32.mrf.mxu0
    %v4816 = vadd.f32 %v4797, %v4815
    %4817 = vdwg.mxu0
    %4818 = vmatpush.bf16.msra.mxu0 %v4076
    %4819 = vmatpush.bf16.msra.mxu0 %v4074
    %4820 = vmatpush.bf16.msra.mxu0 %v4072
    %4821 = vmatpush.bf16.msra.mxu0 %v4070
    %4822 = vmatpush.bf16.msra.mxu0 %v4068
    %4823 = vmatpush.bf16.msra.mxu0 %v4066
    %4824 = vmatpush.bf16.msra.mxu0 %v4064
    %4825 = vmatpush.bf16.msra.mxu0 %v4062
    %4826 = vmatmul.bf16.gmra.mxu0 %v870
    %v4827 = vpop.f32.mrf.mxu0
    %v4828 = vadd.f32 %v4809, %v4827
    %v4829 = vpop.f32.mrf.mxu0
    %v4830 = vadd.f32 %v4811, %v4829
    %4831 = vmatmul.bf16.gmra.mxu0 %v912
    %v4832 = vpop.f32.mrf.mxu0
    %v4833 = vadd.f32 %v4814, %v4832
    %v4834 = vpop.f32.mrf.mxu0
    %v4835 = vadd.f32 %v4816, %v4834
    %4836 = vdwg.mxu0
    %4837 = vmatpush.bf16.msra.mxu0 %v4092
    %4838 = vmatpush.bf16.msra.mxu0 %v4090
    %4839 = vmatpush.bf16.msra.mxu0 %v4088
    %4840 = vmatpush.bf16.msra.mxu0 %v4086
    %4841 = vmatpush.bf16.msra.mxu0 %v4084
    %4842 = vmatpush.bf16.msra.mxu0 %v4082
    %4843 = vmatpush.bf16.msra.mxu0 %v4080
    %4844 = vmatpush.bf16.msra.mxu0 %v4078
    %4845 = vmatmul.bf16.gmra.mxu0 %v871
    %v4846 = vpop.f32.mrf.mxu0
    %v4847 = vadd.f32 %v4828, %v4846
    %v4848 = vpop.f32.mrf.mxu0
    %v4849 = vadd.f32 %v4830, %v4848
    %4850 = vmatmul.bf16.gmra.mxu0 %v913
    %v4851 = vpop.f32.mrf.mxu0
    %v4852 = vadd.f32 %v4833, %v4851
    %v4853 = vpop.f32.mrf.mxu0
    %v4854 = vadd.f32 %v4835, %v4853
    %4855 = vdwg.mxu0
    %4856 = vmatpush.bf16.msra.mxu0 %v4108
    %4857 = vmatpush.bf16.msra.mxu0 %v4106
    %4858 = vmatpush.bf16.msra.mxu0 %v4104
    %4859 = vmatpush.bf16.msra.mxu0 %v4102
    %4860 = vmatpush.bf16.msra.mxu0 %v4100
    %4861 = vmatpush.bf16.msra.mxu0 %v4098
    %4862 = vmatpush.bf16.msra.mxu0 %v4096
    %4863 = vmatpush.bf16.msra.mxu0 %v4094
    %4864 = vmatmul.bf16.gmra.mxu0 %v872
    %v4865 = vpop.f32.mrf.mxu0
    %v4866 = vadd.f32 %v4847, %v4865
    %v4867 = vpop.f32.mrf.mxu0
    %v4868 = vadd.f32 %v4849, %v4867
    %4869 = vmatmul.bf16.gmra.mxu0 %v914
    %v4870 = vpop.f32.mrf.mxu0
    %v4871 = vadd.f32 %v4852, %v4870
    %v4872 = vpop.f32.mrf.mxu0
    %v4873 = vadd.f32 %v4854, %v4872
    %4874 = vdwg.mxu0
    %4875 = vmatpush.bf16.msra.mxu0 %v4124
    %4876 = vmatpush.bf16.msra.mxu0 %v4122
    %4877 = vmatpush.bf16.msra.mxu0 %v4120
    %4878 = vmatpush.bf16.msra.mxu0 %v4118
    %4879 = vmatpush.bf16.msra.mxu0 %v4116
    %4880 = vmatpush.bf16.msra.mxu0 %v4114
    %4881 = vmatpush.bf16.msra.mxu0 %v4112
    %4882 = vmatpush.bf16.msra.mxu0 %v4110
    %4883 = vmatmul.bf16.gmra.mxu0 %v873
    %v4884 = vpop.f32.mrf.mxu0
    %v4885 = vadd.f32 %v4866, %v4884
    %v4886 = vpop.f32.mrf.mxu0
    %v4887 = vadd.f32 %v4868, %v4886
    %4888 = vmatmul.bf16.gmra.mxu0 %v915
    %v4889 = vpop.f32.mrf.mxu0
    %v4890 = vadd.f32 %v4871, %v4889
    %v4891 = vpop.f32.mrf.mxu0
    %v4892 = vadd.f32 %v4873, %v4891
    %4893 = vdwg.mxu0
    %4894 = vmatpush.bf16.msra.mxu0 %v4140
    %4895 = vmatpush.bf16.msra.mxu0 %v4138
    %4896 = vmatpush.bf16.msra.mxu0 %v4136
    %4897 = vmatpush.bf16.msra.mxu0 %v4134
    %4898 = vmatpush.bf16.msra.mxu0 %v4132
    %4899 = vmatpush.bf16.msra.mxu0 %v4130
    %4900 = vmatpush.bf16.msra.mxu0 %v4128
    %4901 = vmatpush.bf16.msra.mxu0 %v4126
    %4902 = vmatmul.bf16.gmra.mxu0 %v874
    %v4903 = vpop.f32.mrf.mxu0
    %v4904 = vadd.f32 %v4885, %v4903
    %v4905 = vpop.f32.mrf.mxu0
    %v4906 = vadd.f32 %v4887, %v4905
    %4907 = vmatmul.bf16.gmra.mxu0 %v916
    %v4908 = vpop.f32.mrf.mxu0
    %v4909 = vadd.f32 %v4890, %v4908
    %v4910 = vpop.f32.mrf.mxu0
    %v4911 = vadd.f32 %v4892, %v4910
    %4912 = vdwg.mxu0
    %4913 = vmatpush.bf16.msra.mxu0 %v4156
    %4914 = vmatpush.bf16.msra.mxu0 %v4154
    %4915 = vmatpush.bf16.msra.mxu0 %v4152
    %4916 = vmatpush.bf16.msra.mxu0 %v4150
    %4917 = vmatpush.bf16.msra.mxu0 %v4148
    %4918 = vmatpush.bf16.msra.mxu0 %v4146
    %4919 = vmatpush.bf16.msra.mxu0 %v4144
    %4920 = vmatpush.bf16.msra.mxu0 %v4142
    %4921 = vmatmul.bf16.gmra.mxu0 %v875
    %v4922 = vpop.f32.mrf.mxu0
    %v4923 = vadd.f32 %v4904, %v4922
    %v4924 = vpop.f32.mrf.mxu0
    %v4925 = vadd.f32 %v4906, %v4924
    %4926 = vmatmul.bf16.gmra.mxu0 %v917
    %v4927 = vpop.f32.mrf.mxu0
    %v4928 = vadd.f32 %v4909, %v4927
    %v4929 = vpop.f32.mrf.mxu0
    %v4930 = vadd.f32 %v4911, %v4929
    %4931 = vdwg.mxu0
    %4932 = vmatpush.bf16.msra.mxu0 %v4172
    %4933 = vmatpush.bf16.msra.mxu0 %v4170
    %4934 = vmatpush.bf16.msra.mxu0 %v4168
    %4935 = vmatpush.bf16.msra.mxu0 %v4166
    %4936 = vmatpush.bf16.msra.mxu0 %v4164
    %4937 = vmatpush.bf16.msra.mxu0 %v4162
    %4938 = vmatpush.bf16.msra.mxu0 %v4160
    %4939 = vmatpush.bf16.msra.mxu0 %v4158
    %4940 = vmatmul.bf16.gmra.mxu0 %v876
    %v4941 = vpop.f32.mrf.mxu0
    %v4942 = vadd.f32 %v4923, %v4941
    %v4943 = vpop.f32.mrf.mxu0
    %v4944 = vadd.f32 %v4925, %v4943
    %4945 = vmatmul.bf16.gmra.mxu0 %v918
    %v4946 = vpop.f32.mrf.mxu0
    %v4947 = vadd.f32 %v4928, %v4946
    %v4948 = vpop.f32.mrf.mxu0
    %v4949 = vadd.f32 %v4930, %v4948
    %4950 = vdwg.mxu0
    %4951 = vmatpush.bf16.msra.mxu0 %v4188
    %4952 = vmatpush.bf16.msra.mxu0 %v4186
    %4953 = vmatpush.bf16.msra.mxu0 %v4184
    %4954 = vmatpush.bf16.msra.mxu0 %v4182
    %4955 = vmatpush.bf16.msra.mxu0 %v4180
    %4956 = vmatpush.bf16.msra.mxu0 %v4178
    %4957 = vmatpush.bf16.msra.mxu0 %v4176
    %4958 = vmatpush.bf16.msra.mxu0 %v4174
    %4959 = vmatmul.bf16.gmra.mxu0 %v877
    %v4960 = vpop.f32.mrf.mxu0
    %v4961 = vadd.f32 %v4942, %v4960
    %v4962 = vpop.f32.mrf.mxu0
    %v4963 = vadd.f32 %v4944, %v4962
    %4964 = vmatmul.bf16.gmra.mxu0 %v919
    %v4965 = vpop.f32.mrf.mxu0
    %v4966 = vadd.f32 %v4947, %v4965
    %v4967 = vpop.f32.mrf.mxu0
    %v4968 = vadd.f32 %v4949, %v4967
    %4969 = vdwg.mxu0
    %4970 = vmatpush.bf16.msra.mxu0 %v4204
    %4971 = vmatpush.bf16.msra.mxu0 %v4202
    %4972 = vmatpush.bf16.msra.mxu0 %v4200
    %4973 = vmatpush.bf16.msra.mxu0 %v4198
    %4974 = vmatpush.bf16.msra.mxu0 %v4196
    %4975 = vmatpush.bf16.msra.mxu0 %v4194
    %4976 = vmatpush.bf16.msra.mxu0 %v4192
    %4977 = vmatpush.bf16.msra.mxu0 %v4190
    %4978 = vmatmul.bf16.gmra.mxu0 %v878
    %v4979 = vpop.f32.mrf.mxu0
    %v4980 = vadd.f32 %v4961, %v4979
    %v4981 = vpop.f32.mrf.mxu0
    %v4982 = vadd.f32 %v4963, %v4981
    %4983 = vmatmul.bf16.gmra.mxu0 %v920
    %v4984 = vpop.f32.mrf.mxu0
    %v4985 = vadd.f32 %v4966, %v4984
    %v4986 = vpop.f32.mrf.mxu0
    %v4987 = vadd.f32 %v4968, %v4986
    %4988 = vdwg.mxu0
    %4989 = vmatpush.bf16.msra.mxu0 %v4220
    %4990 = vmatpush.bf16.msra.mxu0 %v4218
    %4991 = vmatpush.bf16.msra.mxu0 %v4216
    %4992 = vmatpush.bf16.msra.mxu0 %v4214
    %4993 = vmatpush.bf16.msra.mxu0 %v4212
    %4994 = vmatpush.bf16.msra.mxu0 %v4210
    %4995 = vmatpush.bf16.msra.mxu0 %v4208
    %4996 = vmatpush.bf16.msra.mxu0 %v4206
    %4997 = vmatmul.bf16.gmra.mxu0 %v879
    %v4998 = vpop.f32.mrf.mxu0
    %v4999 = vadd.f32 %v4980, %v4998
    %v5000 = vpop.f32.mrf.mxu0
    %v5001 = vadd.f32 %v4982, %v5000
    %5002 = vmatmul.bf16.gmra.mxu0 %v921
    %v5003 = vpop.f32.mrf.mxu0
    %v5004 = vadd.f32 %v4985, %v5003
    %v5005 = vpop.f32.mrf.mxu0
    %v5006 = vadd.f32 %v4987, %v5005
    %5007 = vdwg.mxu0
    %5008 = vmatpush.bf16.msra.mxu0 %v4236
    %5009 = vmatpush.bf16.msra.mxu0 %v4234
    %5010 = vmatpush.bf16.msra.mxu0 %v4232
    %5011 = vmatpush.bf16.msra.mxu0 %v4230
    %5012 = vmatpush.bf16.msra.mxu0 %v4228
    %5013 = vmatpush.bf16.msra.mxu0 %v4226
    %5014 = vmatpush.bf16.msra.mxu0 %v4224
    %5015 = vmatpush.bf16.msra.mxu0 %v4222
    %5016 = vmatmul.bf16.gmra.mxu0 %v880
    %v5017 = vpop.f32.mrf.mxu0
    %v5018 = vadd.f32 %v4999, %v5017
    %v5019 = vpop.f32.mrf.mxu0
    %v5020 = vadd.f32 %v5001, %v5019
    %5021 = vmatmul.bf16.gmra.mxu0 %v922
    %v5022 = vpop.f32.mrf.mxu0
    %v5023 = vadd.f32 %v5004, %v5022
    %v5024 = vpop.f32.mrf.mxu0
    %v5025 = vadd.f32 %v5006, %v5024
    %5026 = vdwg.mxu0
    %5027 = vmatpush.bf16.msra.mxu0 %v4252
    %5028 = vmatpush.bf16.msra.mxu0 %v4250
    %5029 = vmatpush.bf16.msra.mxu0 %v4248
    %5030 = vmatpush.bf16.msra.mxu0 %v4246
    %5031 = vmatpush.bf16.msra.mxu0 %v4244
    %5032 = vmatpush.bf16.msra.mxu0 %v4242
    %5033 = vmatpush.bf16.msra.mxu0 %v4240
    %5034 = vmatpush.bf16.msra.mxu0 %v4238
    %5035 = vmatmul.bf16.gmra.mxu0 %v881
    %v5036 = vpop.f32.mrf.mxu0
    %v5037 = vadd.f32 %v5018, %v5036
    %v5038 = vpop.f32.mrf.mxu0
    %v5039 = vadd.f32 %v5020, %v5038
    %5040 = vmatmul.bf16.gmra.mxu0 %v923
    %v5041 = vpop.f32.mrf.mxu0
    %v5042 = vadd.f32 %v5023, %v5041
    %v5043 = vpop.f32.mrf.mxu0
    %v5044 = vadd.f32 %v5025, %v5043
    %5045 = vdwg.mxu0
    %5046 = vmatpush.bf16.msra.mxu0 %v4268
    %5047 = vmatpush.bf16.msra.mxu0 %v4266
    %5048 = vmatpush.bf16.msra.mxu0 %v4264
    %5049 = vmatpush.bf16.msra.mxu0 %v4262
    %5050 = vmatpush.bf16.msra.mxu0 %v4260
    %5051 = vmatpush.bf16.msra.mxu0 %v4258
    %5052 = vmatpush.bf16.msra.mxu0 %v4256
    %5053 = vmatpush.bf16.msra.mxu0 %v4254
    %5054 = vmatmul.bf16.gmra.mxu0 %v882
    %v5055 = vpop.f32.mrf.mxu0
    %v5056 = vadd.f32 %v5037, %v5055
    %v5057 = vpop.f32.mrf.mxu0
    %v5058 = vadd.f32 %v5039, %v5057
    %5059 = vmatmul.bf16.gmra.mxu0 %v924
    %v5060 = vpop.f32.mrf.mxu0
    %v5061 = vadd.f32 %v5042, %v5060
    %v5062 = vpop.f32.mrf.mxu0
    %v5063 = vadd.f32 %v5044, %v5062
    %5064 = vdwg.mxu0
    %5065 = vmatpush.bf16.msra.mxu0 %v4284
    %5066 = vmatpush.bf16.msra.mxu0 %v4282
    %5067 = vmatpush.bf16.msra.mxu0 %v4280
    %5068 = vmatpush.bf16.msra.mxu0 %v4278
    %5069 = vmatpush.bf16.msra.mxu0 %v4276
    %5070 = vmatpush.bf16.msra.mxu0 %v4274
    %5071 = vmatpush.bf16.msra.mxu0 %v4272
    %5072 = vmatpush.bf16.msra.mxu0 %v4270
    %5073 = vmatmul.bf16.gmra.mxu0 %v883
    %v5074 = vpop.f32.mrf.mxu0
    %v5075 = vadd.f32 %v5056, %v5074
    %v5076 = vpop.f32.mrf.mxu0
    %v5077 = vadd.f32 %v5058, %v5076
    %5078 = vmatmul.bf16.gmra.mxu0 %v925
    %v5079 = vpop.f32.mrf.mxu0
    %v5080 = vadd.f32 %v5061, %v5079
    %v5081 = vpop.f32.mrf.mxu0
    %v5082 = vadd.f32 %v5063, %v5081
    %5083 = vdwg.mxu0
    %5084 = vmatpush.bf16.msra.mxu0 %v3629
    %5085 = vmatpush.bf16.msra.mxu0 %v3627
    %5086 = vmatpush.bf16.msra.mxu0 %v3625
    %5087 = vmatpush.bf16.msra.mxu0 %v3623
    %5088 = vmatpush.bf16.msra.mxu0 %v3621
    %5089 = vmatpush.bf16.msra.mxu0 %v3619
    %5090 = vmatpush.bf16.msra.mxu0 %v3617
    %5091 = vmatpush.bf16.msra.mxu0 %v3615
    %5092 = vmatmul.bf16.gmra.mxu0 %v842
    %v5093 = vpop.f32.mrf.mxu0
    %v5094 = vadd.f32 0.0, %v5093
    %v5095 = vpop.f32.mrf.mxu0
    %v5096 = vadd.f32 0.0, %v5095
    %5097 = vmatmul.bf16.gmra.mxu0 %v884
    %v5098 = vpop.f32.mrf.mxu0
    %v5099 = vadd.f32 0.0, %v5098
    %v5100 = vpop.f32.mrf.mxu0
    %v5101 = vadd.f32 0.0, %v5100
    %5102 = vdwg.mxu0
    %5103 = vmatpush.bf16.msra.mxu0 %v3645
    %5104 = vmatpush.bf16.msra.mxu0 %v3643
    %5105 = vmatpush.bf16.msra.mxu0 %v3641
    %5106 = vmatpush.bf16.msra.mxu0 %v3639
    %5107 = vmatpush.bf16.msra.mxu0 %v3637
    %5108 = vmatpush.bf16.msra.mxu0 %v3635
    %5109 = vmatpush.bf16.msra.mxu0 %v3633
    %5110 = vmatpush.bf16.msra.mxu0 %v3631
    %5111 = vmatmul.bf16.gmra.mxu0 %v843
    %v5112 = vpop.f32.mrf.mxu0
    %v5113 = vadd.f32 %v5094, %v5112
    %v5114 = vpop.f32.mrf.mxu0
    %v5115 = vadd.f32 %v5096, %v5114
    %5116 = vmatmul.bf16.gmra.mxu0 %v885
    %v5117 = vpop.f32.mrf.mxu0
    %v5118 = vadd.f32 %v5099, %v5117
    %v5119 = vpop.f32.mrf.mxu0
    %v5120 = vadd.f32 %v5101, %v5119
    %5121 = vdwg.mxu0
    %5122 = vmatpush.bf16.msra.mxu0 %v3661
    %5123 = vmatpush.bf16.msra.mxu0 %v3659
    %5124 = vmatpush.bf16.msra.mxu0 %v3657
    %5125 = vmatpush.bf16.msra.mxu0 %v3655
    %5126 = vmatpush.bf16.msra.mxu0 %v3653
    %5127 = vmatpush.bf16.msra.mxu0 %v3651
    %5128 = vmatpush.bf16.msra.mxu0 %v3649
    %5129 = vmatpush.bf16.msra.mxu0 %v3647
    %5130 = vmatmul.bf16.gmra.mxu0 %v844
    %v5131 = vpop.f32.mrf.mxu0
    %v5132 = vadd.f32 %v5113, %v5131
    %v5133 = vpop.f32.mrf.mxu0
    %v5134 = vadd.f32 %v5115, %v5133
    %5135 = vmatmul.bf16.gmra.mxu0 %v886
    %v5136 = vpop.f32.mrf.mxu0
    %v5137 = vadd.f32 %v5118, %v5136
    %v5138 = vpop.f32.mrf.mxu0
    %v5139 = vadd.f32 %v5120, %v5138
    %5140 = vdwg.mxu0
    %5141 = vmatpush.bf16.msra.mxu0 %v3677
    %5142 = vmatpush.bf16.msra.mxu0 %v3675
    %5143 = vmatpush.bf16.msra.mxu0 %v3673
    %5144 = vmatpush.bf16.msra.mxu0 %v3671
    %5145 = vmatpush.bf16.msra.mxu0 %v3669
    %5146 = vmatpush.bf16.msra.mxu0 %v3667
    %5147 = vmatpush.bf16.msra.mxu0 %v3665
    %5148 = vmatpush.bf16.msra.mxu0 %v3663
    %5149 = vmatmul.bf16.gmra.mxu0 %v845
    %v5150 = vpop.f32.mrf.mxu0
    %v5151 = vadd.f32 %v5132, %v5150
    %v5152 = vpop.f32.mrf.mxu0
    %v5153 = vadd.f32 %v5134, %v5152
    %5154 = vmatmul.bf16.gmra.mxu0 %v887
    %v5155 = vpop.f32.mrf.mxu0
    %v5156 = vadd.f32 %v5137, %v5155
    %v5157 = vpop.f32.mrf.mxu0
    %v5158 = vadd.f32 %v5139, %v5157
    %5159 = vdwg.mxu0
    %5160 = vmatpush.bf16.msra.mxu0 %v3693
    %5161 = vmatpush.bf16.msra.mxu0 %v3691
    %5162 = vmatpush.bf16.msra.mxu0 %v3689
    %5163 = vmatpush.bf16.msra.mxu0 %v3687
    %5164 = vmatpush.bf16.msra.mxu0 %v3685
    %5165 = vmatpush.bf16.msra.mxu0 %v3683
    %5166 = vmatpush.bf16.msra.mxu0 %v3681
    %5167 = vmatpush.bf16.msra.mxu0 %v3679
    %5168 = vmatmul.bf16.gmra.mxu0 %v846
    %v5169 = vpop.f32.mrf.mxu0
    %v5170 = vadd.f32 %v5151, %v5169
    %v5171 = vpop.f32.mrf.mxu0
    %v5172 = vadd.f32 %v5153, %v5171
    %5173 = vmatmul.bf16.gmra.mxu0 %v888
    %v5174 = vpop.f32.mrf.mxu0
    %v5175 = vadd.f32 %v5156, %v5174
    %v5176 = vpop.f32.mrf.mxu0
    %v5177 = vadd.f32 %v5158, %v5176
    %5178 = vdwg.mxu0
    %5179 = vmatpush.bf16.msra.mxu0 %v3709
    %5180 = vmatpush.bf16.msra.mxu0 %v3707
    %5181 = vmatpush.bf16.msra.mxu0 %v3705
    %5182 = vmatpush.bf16.msra.mxu0 %v3703
    %5183 = vmatpush.bf16.msra.mxu0 %v3701
    %5184 = vmatpush.bf16.msra.mxu0 %v3699
    %5185 = vmatpush.bf16.msra.mxu0 %v3697
    %5186 = vmatpush.bf16.msra.mxu0 %v3695
    %5187 = vmatmul.bf16.gmra.mxu0 %v847
    %v5188 = vpop.f32.mrf.mxu0
    %v5189 = vadd.f32 %v5170, %v5188
    %v5190 = vpop.f32.mrf.mxu0
    %v5191 = vadd.f32 %v5172, %v5190
    %5192 = vmatmul.bf16.gmra.mxu0 %v889
    %v5193 = vpop.f32.mrf.mxu0
    %v5194 = vadd.f32 %v5175, %v5193
    %v5195 = vpop.f32.mrf.mxu0
    %v5196 = vadd.f32 %v5177, %v5195
    %5197 = vdwg.mxu0
    %5198 = vmatpush.bf16.msra.mxu0 %v3725
    %5199 = vmatpush.bf16.msra.mxu0 %v3723
    %5200 = vmatpush.bf16.msra.mxu0 %v3721
    %5201 = vmatpush.bf16.msra.mxu0 %v3719
    %5202 = vmatpush.bf16.msra.mxu0 %v3717
    %5203 = vmatpush.bf16.msra.mxu0 %v3715
    %5204 = vmatpush.bf16.msra.mxu0 %v3713
    %5205 = vmatpush.bf16.msra.mxu0 %v3711
    %5206 = vmatmul.bf16.gmra.mxu0 %v848
    %v5207 = vpop.f32.mrf.mxu0
    %v5208 = vadd.f32 %v5189, %v5207
    %v5209 = vpop.f32.mrf.mxu0
    %v5210 = vadd.f32 %v5191, %v5209
    %5211 = vmatmul.bf16.gmra.mxu0 %v890
    %v5212 = vpop.f32.mrf.mxu0
    %v5213 = vadd.f32 %v5194, %v5212
    %v5214 = vpop.f32.mrf.mxu0
    %v5215 = vadd.f32 %v5196, %v5214
    %5216 = vdwg.mxu0
    %5217 = vmatpush.bf16.msra.mxu0 %v3741
    %5218 = vmatpush.bf16.msra.mxu0 %v3739
    %5219 = vmatpush.bf16.msra.mxu0 %v3737
    %5220 = vmatpush.bf16.msra.mxu0 %v3735
    %5221 = vmatpush.bf16.msra.mxu0 %v3733
    %5222 = vmatpush.bf16.msra.mxu0 %v3731
    %5223 = vmatpush.bf16.msra.mxu0 %v3729
    %5224 = vmatpush.bf16.msra.mxu0 %v3727
    %5225 = vmatmul.bf16.gmra.mxu0 %v849
    %v5226 = vpop.f32.mrf.mxu0
    %v5227 = vadd.f32 %v5208, %v5226
    %v5228 = vpop.f32.mrf.mxu0
    %v5229 = vadd.f32 %v5210, %v5228
    %5230 = vmatmul.bf16.gmra.mxu0 %v891
    %v5231 = vpop.f32.mrf.mxu0
    %v5232 = vadd.f32 %v5213, %v5231
    %v5233 = vpop.f32.mrf.mxu0
    %v5234 = vadd.f32 %v5215, %v5233
    %5235 = vdwg.mxu0
    %5236 = vmatpush.bf16.msra.mxu0 %v3757
    %5237 = vmatpush.bf16.msra.mxu0 %v3755
    %5238 = vmatpush.bf16.msra.mxu0 %v3753
    %5239 = vmatpush.bf16.msra.mxu0 %v3751
    %5240 = vmatpush.bf16.msra.mxu0 %v3749
    %5241 = vmatpush.bf16.msra.mxu0 %v3747
    %5242 = vmatpush.bf16.msra.mxu0 %v3745
    %5243 = vmatpush.bf16.msra.mxu0 %v3743
    %5244 = vmatmul.bf16.gmra.mxu0 %v850
    %v5245 = vpop.f32.mrf.mxu0
    %v5246 = vadd.f32 %v5227, %v5245
    %v5247 = vpop.f32.mrf.mxu0
    %v5248 = vadd.f32 %v5229, %v5247
    %5249 = vmatmul.bf16.gmra.mxu0 %v892
    %v5250 = vpop.f32.mrf.mxu0
    %v5251 = vadd.f32 %v5232, %v5250
    %v5252 = vpop.f32.mrf.mxu0
    %v5253 = vadd.f32 %v5234, %v5252
    %5254 = vdwg.mxu0
    %5255 = vmatpush.bf16.msra.mxu0 %v3773
    %5256 = vmatpush.bf16.msra.mxu0 %v3771
    %5257 = vmatpush.bf16.msra.mxu0 %v3769
    %5258 = vmatpush.bf16.msra.mxu0 %v3767
    %5259 = vmatpush.bf16.msra.mxu0 %v3765
    %5260 = vmatpush.bf16.msra.mxu0 %v3763
    %5261 = vmatpush.bf16.msra.mxu0 %v3761
    %5262 = vmatpush.bf16.msra.mxu0 %v3759
    %5263 = vmatmul.bf16.gmra.mxu0 %v851
    %v5264 = vpop.f32.mrf.mxu0
    %v5265 = vadd.f32 %v5246, %v5264
    %v5266 = vpop.f32.mrf.mxu0
    %v5267 = vadd.f32 %v5248, %v5266
    %5268 = vmatmul.bf16.gmra.mxu0 %v893
    %v5269 = vpop.f32.mrf.mxu0
    %v5270 = vadd.f32 %v5251, %v5269
    %v5271 = vpop.f32.mrf.mxu0
    %v5272 = vadd.f32 %v5253, %v5271
    %5273 = vdwg.mxu0
    %5274 = vmatpush.bf16.msra.mxu0 %v3789
    %5275 = vmatpush.bf16.msra.mxu0 %v3787
    %5276 = vmatpush.bf16.msra.mxu0 %v3785
    %5277 = vmatpush.bf16.msra.mxu0 %v3783
    %5278 = vmatpush.bf16.msra.mxu0 %v3781
    %5279 = vmatpush.bf16.msra.mxu0 %v3779
    %5280 = vmatpush.bf16.msra.mxu0 %v3777
    %5281 = vmatpush.bf16.msra.mxu0 %v3775
    %5282 = vmatmul.bf16.gmra.mxu0 %v852
    %v5283 = vpop.f32.mrf.mxu0
    %v5284 = vadd.f32 %v5265, %v5283
    %v5285 = vpop.f32.mrf.mxu0
    %v5286 = vadd.f32 %v5267, %v5285
    %5287 = vmatmul.bf16.gmra.mxu0 %v894
    %v5288 = vpop.f32.mrf.mxu0
    %v5289 = vadd.f32 %v5270, %v5288
    %v5290 = vpop.f32.mrf.mxu0
    %v5291 = vadd.f32 %v5272, %v5290
    %5292 = vdwg.mxu0
    %5293 = vmatpush.bf16.msra.mxu0 %v3805
    %5294 = vmatpush.bf16.msra.mxu0 %v3803
    %5295 = vmatpush.bf16.msra.mxu0 %v3801
    %5296 = vmatpush.bf16.msra.mxu0 %v3799
    %5297 = vmatpush.bf16.msra.mxu0 %v3797
    %5298 = vmatpush.bf16.msra.mxu0 %v3795
    %5299 = vmatpush.bf16.msra.mxu0 %v3793
    %5300 = vmatpush.bf16.msra.mxu0 %v3791
    %5301 = vmatmul.bf16.gmra.mxu0 %v853
    %v5302 = vpop.f32.mrf.mxu0
    %v5303 = vadd.f32 %v5284, %v5302
    %v5304 = vpop.f32.mrf.mxu0
    %v5305 = vadd.f32 %v5286, %v5304
    %5306 = vmatmul.bf16.gmra.mxu0 %v895
    %v5307 = vpop.f32.mrf.mxu0
    %v5308 = vadd.f32 %v5289, %v5307
    %v5309 = vpop.f32.mrf.mxu0
    %v5310 = vadd.f32 %v5291, %v5309
    %5311 = vdwg.mxu0
    %5312 = vmatpush.bf16.msra.mxu0 %v3821
    %5313 = vmatpush.bf16.msra.mxu0 %v3819
    %5314 = vmatpush.bf16.msra.mxu0 %v3817
    %5315 = vmatpush.bf16.msra.mxu0 %v3815
    %5316 = vmatpush.bf16.msra.mxu0 %v3813
    %5317 = vmatpush.bf16.msra.mxu0 %v3811
    %5318 = vmatpush.bf16.msra.mxu0 %v3809
    %5319 = vmatpush.bf16.msra.mxu0 %v3807
    %5320 = vmatmul.bf16.gmra.mxu0 %v854
    %v5321 = vpop.f32.mrf.mxu0
    %v5322 = vadd.f32 %v5303, %v5321
    %v5323 = vpop.f32.mrf.mxu0
    %v5324 = vadd.f32 %v5305, %v5323
    %5325 = vmatmul.bf16.gmra.mxu0 %v896
    %v5326 = vpop.f32.mrf.mxu0
    %v5327 = vadd.f32 %v5308, %v5326
    %v5328 = vpop.f32.mrf.mxu0
    %v5329 = vadd.f32 %v5310, %v5328
    %5330 = vdwg.mxu0
    %5331 = vmatpush.bf16.msra.mxu0 %v3837
    %5332 = vmatpush.bf16.msra.mxu0 %v3835
    %5333 = vmatpush.bf16.msra.mxu0 %v3833
    %5334 = vmatpush.bf16.msra.mxu0 %v3831
    %5335 = vmatpush.bf16.msra.mxu0 %v3829
    %5336 = vmatpush.bf16.msra.mxu0 %v3827
    %5337 = vmatpush.bf16.msra.mxu0 %v3825
    %5338 = vmatpush.bf16.msra.mxu0 %v3823
    %5339 = vmatmul.bf16.gmra.mxu0 %v855
    %v5340 = vpop.f32.mrf.mxu0
    %v5341 = vadd.f32 %v5322, %v5340
    %v5342 = vpop.f32.mrf.mxu0
    %v5343 = vadd.f32 %v5324, %v5342
    %5344 = vmatmul.bf16.gmra.mxu0 %v897
    %v5345 = vpop.f32.mrf.mxu0
    %v5346 = vadd.f32 %v5327, %v5345
    %v5347 = vpop.f32.mrf.mxu0
    %v5348 = vadd.f32 %v5329, %v5347
    %5349 = vdwg.mxu0
    %5350 = vmatpush.bf16.msra.mxu0 %v3853
    %5351 = vmatpush.bf16.msra.mxu0 %v3851
    %5352 = vmatpush.bf16.msra.mxu0 %v3849
    %5353 = vmatpush.bf16.msra.mxu0 %v3847
    %5354 = vmatpush.bf16.msra.mxu0 %v3845
    %5355 = vmatpush.bf16.msra.mxu0 %v3843
    %5356 = vmatpush.bf16.msra.mxu0 %v3841
    %5357 = vmatpush.bf16.msra.mxu0 %v3839
    %5358 = vmatmul.bf16.gmra.mxu0 %v856
    %v5359 = vpop.f32.mrf.mxu0
    %v5360 = vadd.f32 %v5341, %v5359
    %v5361 = vpop.f32.mrf.mxu0
    %v5362 = vadd.f32 %v5343, %v5361
    %5363 = vmatmul.bf16.gmra.mxu0 %v898
    %v5364 = vpop.f32.mrf.mxu0
    %v5365 = vadd.f32 %v5346, %v5364
    %v5366 = vpop.f32.mrf.mxu0
    %v5367 = vadd.f32 %v5348, %v5366
    %5368 = vdwg.mxu0
    %5369 = vmatpush.bf16.msra.mxu0 %v3869
    %5370 = vmatpush.bf16.msra.mxu0 %v3867
    %5371 = vmatpush.bf16.msra.mxu0 %v3865
    %5372 = vmatpush.bf16.msra.mxu0 %v3863
    %5373 = vmatpush.bf16.msra.mxu0 %v3861
    %5374 = vmatpush.bf16.msra.mxu0 %v3859
    %5375 = vmatpush.bf16.msra.mxu0 %v3857
    %5376 = vmatpush.bf16.msra.mxu0 %v3855
    %5377 = vmatmul.bf16.gmra.mxu0 %v857
    %v5378 = vpop.f32.mrf.mxu0
    %v5379 = vadd.f32 %v5360, %v5378
    %v5380 = vpop.f32.mrf.mxu0
    %v5381 = vadd.f32 %v5362, %v5380
    %5382 = vmatmul.bf16.gmra.mxu0 %v899
    %v5383 = vpop.f32.mrf.mxu0
    %v5384 = vadd.f32 %v5365, %v5383
    %v5385 = vpop.f32.mrf.mxu0
    %v5386 = vadd.f32 %v5367, %v5385
    %5387 = vdwg.mxu0
    %5388 = vmatpush.bf16.msra.mxu0 %v3885
    %5389 = vmatpush.bf16.msra.mxu0 %v3883
    %5390 = vmatpush.bf16.msra.mxu0 %v3881
    %5391 = vmatpush.bf16.msra.mxu0 %v3879
    %5392 = vmatpush.bf16.msra.mxu0 %v3877
    %5393 = vmatpush.bf16.msra.mxu0 %v3875
    %5394 = vmatpush.bf16.msra.mxu0 %v3873
    %5395 = vmatpush.bf16.msra.mxu0 %v3871
    %5396 = vmatmul.bf16.gmra.mxu0 %v858
    %v5397 = vpop.f32.mrf.mxu0
    %v5398 = vadd.f32 %v5379, %v5397
    %v5399 = vpop.f32.mrf.mxu0
    %v5400 = vadd.f32 %v5381, %v5399
    %5401 = vmatmul.bf16.gmra.mxu0 %v900
    %v5402 = vpop.f32.mrf.mxu0
    %v5403 = vadd.f32 %v5384, %v5402
    %v5404 = vpop.f32.mrf.mxu0
    %v5405 = vadd.f32 %v5386, %v5404
    %5406 = vdwg.mxu0
    %5407 = vmatpush.bf16.msra.mxu0 %v3901
    %5408 = vmatpush.bf16.msra.mxu0 %v3899
    %5409 = vmatpush.bf16.msra.mxu0 %v3897
    %5410 = vmatpush.bf16.msra.mxu0 %v3895
    %5411 = vmatpush.bf16.msra.mxu0 %v3893
    %5412 = vmatpush.bf16.msra.mxu0 %v3891
    %5413 = vmatpush.bf16.msra.mxu0 %v3889
    %5414 = vmatpush.bf16.msra.mxu0 %v3887
    %5415 = vmatmul.bf16.gmra.mxu0 %v859
    %v5416 = vpop.f32.mrf.mxu0
    %v5417 = vadd.f32 %v5398, %v5416
    %v5418 = vpop.f32.mrf.mxu0
    %v5419 = vadd.f32 %v5400, %v5418
    %5420 = vmatmul.bf16.gmra.mxu0 %v901
    %v5421 = vpop.f32.mrf.mxu0
    %v5422 = vadd.f32 %v5403, %v5421
    %v5423 = vpop.f32.mrf.mxu0
    %v5424 = vadd.f32 %v5405, %v5423
    %5425 = vdwg.mxu0
    %5426 = vmatpush.bf16.msra.mxu0 %v3917
    %5427 = vmatpush.bf16.msra.mxu0 %v3915
    %5428 = vmatpush.bf16.msra.mxu0 %v3913
    %5429 = vmatpush.bf16.msra.mxu0 %v3911
    %5430 = vmatpush.bf16.msra.mxu0 %v3909
    %5431 = vmatpush.bf16.msra.mxu0 %v3907
    %5432 = vmatpush.bf16.msra.mxu0 %v3905
    %5433 = vmatpush.bf16.msra.mxu0 %v3903
    %5434 = vmatmul.bf16.gmra.mxu0 %v860
    %v5435 = vpop.f32.mrf.mxu0
    %v5436 = vadd.f32 %v5417, %v5435
    %v5437 = vpop.f32.mrf.mxu0
    %v5438 = vadd.f32 %v5419, %v5437
    %5439 = vmatmul.bf16.gmra.mxu0 %v902
    %v5440 = vpop.f32.mrf.mxu0
    %v5441 = vadd.f32 %v5422, %v5440
    %v5442 = vpop.f32.mrf.mxu0
    %v5443 = vadd.f32 %v5424, %v5442
    %5444 = vdwg.mxu0
    %5445 = vmatpush.bf16.msra.mxu0 %v3933
    %5446 = vmatpush.bf16.msra.mxu0 %v3931
    %5447 = vmatpush.bf16.msra.mxu0 %v3929
    %5448 = vmatpush.bf16.msra.mxu0 %v3927
    %5449 = vmatpush.bf16.msra.mxu0 %v3925
    %5450 = vmatpush.bf16.msra.mxu0 %v3923
    %5451 = vmatpush.bf16.msra.mxu0 %v3921
    %5452 = vmatpush.bf16.msra.mxu0 %v3919
    %5453 = vmatmul.bf16.gmra.mxu0 %v861
    %v5454 = vpop.f32.mrf.mxu0
    %v5455 = vadd.f32 %v5436, %v5454
    %v5456 = vpop.f32.mrf.mxu0
    %v5457 = vadd.f32 %v5438, %v5456
    %5458 = vmatmul.bf16.gmra.mxu0 %v903
    %v5459 = vpop.f32.mrf.mxu0
    %v5460 = vadd.f32 %v5441, %v5459
    %v5461 = vpop.f32.mrf.mxu0
    %v5462 = vadd.f32 %v5443, %v5461
    %5463 = vdwg.mxu0
    %5464 = vmatpush.bf16.msra.mxu0 %v3949
    %5465 = vmatpush.bf16.msra.mxu0 %v3947
    %5466 = vmatpush.bf16.msra.mxu0 %v3945
    %5467 = vmatpush.bf16.msra.mxu0 %v3943
    %5468 = vmatpush.bf16.msra.mxu0 %v3941
    %5469 = vmatpush.bf16.msra.mxu0 %v3939
    %5470 = vmatpush.bf16.msra.mxu0 %v3937
    %5471 = vmatpush.bf16.msra.mxu0 %v3935
    %5472 = vmatmul.bf16.gmra.mxu0 %v862
    %v5473 = vpop.f32.mrf.mxu0
    %v5474 = vadd.f32 %v5455, %v5473
    %v5475 = vpop.f32.mrf.mxu0
    %v5476 = vadd.f32 %v5457, %v5475
    %5477 = vmatmul.bf16.gmra.mxu0 %v904
    %v5478 = vpop.f32.mrf.mxu0
    %v5479 = vadd.f32 %v5460, %v5478
    %v5480 = vpop.f32.mrf.mxu0
    %v5481 = vadd.f32 %v5462, %v5480
    %5482 = vdwg.mxu0
    %5483 = vmatpush.bf16.msra.mxu0 %v3965
    %5484 = vmatpush.bf16.msra.mxu0 %v3963
    %5485 = vmatpush.bf16.msra.mxu0 %v3961
    %5486 = vmatpush.bf16.msra.mxu0 %v3959
    %5487 = vmatpush.bf16.msra.mxu0 %v3957
    %5488 = vmatpush.bf16.msra.mxu0 %v3955
    %5489 = vmatpush.bf16.msra.mxu0 %v3953
    %5490 = vmatpush.bf16.msra.mxu0 %v3951
    %5491 = vmatmul.bf16.gmra.mxu0 %v863
    %v5492 = vpop.f32.mrf.mxu0
    %v5493 = vadd.f32 %v5474, %v5492
    %v5494 = vpop.f32.mrf.mxu0
    %v5495 = vadd.f32 %v5476, %v5494
    %5496 = vmatmul.bf16.gmra.mxu0 %v905
    %v5497 = vpop.f32.mrf.mxu0
    %v5498 = vadd.f32 %v5479, %v5497
    %v5499 = vpop.f32.mrf.mxu0
    %v5500 = vadd.f32 %v5481, %v5499
    %5501 = vdwg.mxu0
    %5502 = vmatpush.bf16.msra.mxu0 %v3981
    %5503 = vmatpush.bf16.msra.mxu0 %v3979
    %5504 = vmatpush.bf16.msra.mxu0 %v3977
    %5505 = vmatpush.bf16.msra.mxu0 %v3975
    %5506 = vmatpush.bf16.msra.mxu0 %v3973
    %5507 = vmatpush.bf16.msra.mxu0 %v3971
    %5508 = vmatpush.bf16.msra.mxu0 %v3969
    %5509 = vmatpush.bf16.msra.mxu0 %v3967
    %5510 = vmatmul.bf16.gmra.mxu0 %v864
    %v5511 = vpop.f32.mrf.mxu0
    %v5512 = vadd.f32 %v5493, %v5511
    %v5513 = vpop.f32.mrf.mxu0
    %v5514 = vadd.f32 %v5495, %v5513
    %5515 = vmatmul.bf16.gmra.mxu0 %v906
    %v5516 = vpop.f32.mrf.mxu0
    %v5517 = vadd.f32 %v5498, %v5516
    %v5518 = vpop.f32.mrf.mxu0
    %v5519 = vadd.f32 %v5500, %v5518
    %5520 = vdwg.mxu0
    %5521 = vmatpush.bf16.msra.mxu0 %v3997
    %5522 = vmatpush.bf16.msra.mxu0 %v3995
    %5523 = vmatpush.bf16.msra.mxu0 %v3993
    %5524 = vmatpush.bf16.msra.mxu0 %v3991
    %5525 = vmatpush.bf16.msra.mxu0 %v3989
    %5526 = vmatpush.bf16.msra.mxu0 %v3987
    %5527 = vmatpush.bf16.msra.mxu0 %v3985
    %5528 = vmatpush.bf16.msra.mxu0 %v3983
    %5529 = vmatmul.bf16.gmra.mxu0 %v865
    %v5530 = vpop.f32.mrf.mxu0
    %v5531 = vadd.f32 %v5512, %v5530
    %v5532 = vpop.f32.mrf.mxu0
    %v5533 = vadd.f32 %v5514, %v5532
    %5534 = vmatmul.bf16.gmra.mxu0 %v907
    %v5535 = vpop.f32.mrf.mxu0
    %v5536 = vadd.f32 %v5517, %v5535
    %v5537 = vpop.f32.mrf.mxu0
    %v5538 = vadd.f32 %v5519, %v5537
    %5539 = vdwg.mxu0
    %5540 = vmatpush.bf16.msra.mxu0 %v4013
    %5541 = vmatpush.bf16.msra.mxu0 %v4011
    %5542 = vmatpush.bf16.msra.mxu0 %v4009
    %5543 = vmatpush.bf16.msra.mxu0 %v4007
    %5544 = vmatpush.bf16.msra.mxu0 %v4005
    %5545 = vmatpush.bf16.msra.mxu0 %v4003
    %5546 = vmatpush.bf16.msra.mxu0 %v4001
    %5547 = vmatpush.bf16.msra.mxu0 %v3999
    %5548 = vmatmul.bf16.gmra.mxu0 %v866
    %v5549 = vpop.f32.mrf.mxu0
    %v5550 = vadd.f32 %v5531, %v5549
    %v5551 = vpop.f32.mrf.mxu0
    %v5552 = vadd.f32 %v5533, %v5551
    %5553 = vmatmul.bf16.gmra.mxu0 %v908
    %v5554 = vpop.f32.mrf.mxu0
    %v5555 = vadd.f32 %v5536, %v5554
    %v5556 = vpop.f32.mrf.mxu0
    %v5557 = vadd.f32 %v5538, %v5556
    %5558 = vdwg.mxu0
    %5559 = vmatpush.bf16.msra.mxu0 %v4029
    %5560 = vmatpush.bf16.msra.mxu0 %v4027
    %5561 = vmatpush.bf16.msra.mxu0 %v4025
    %5562 = vmatpush.bf16.msra.mxu0 %v4023
    %5563 = vmatpush.bf16.msra.mxu0 %v4021
    %5564 = vmatpush.bf16.msra.mxu0 %v4019
    %5565 = vmatpush.bf16.msra.mxu0 %v4017
    %5566 = vmatpush.bf16.msra.mxu0 %v4015
    %5567 = vmatmul.bf16.gmra.mxu0 %v867
    %v5568 = vpop.f32.mrf.mxu0
    %v5569 = vadd.f32 %v5550, %v5568
    %v5570 = vpop.f32.mrf.mxu0
    %v5571 = vadd.f32 %v5552, %v5570
    %5572 = vmatmul.bf16.gmra.mxu0 %v909
    %v5573 = vpop.f32.mrf.mxu0
    %v5574 = vadd.f32 %v5555, %v5573
    %v5575 = vpop.f32.mrf.mxu0
    %v5576 = vadd.f32 %v5557, %v5575
    %5577 = vdwg.mxu0
    %5578 = vmatpush.bf16.msra.mxu0 %v4045
    %5579 = vmatpush.bf16.msra.mxu0 %v4043
    %5580 = vmatpush.bf16.msra.mxu0 %v4041
    %5581 = vmatpush.bf16.msra.mxu0 %v4039
    %5582 = vmatpush.bf16.msra.mxu0 %v4037
    %5583 = vmatpush.bf16.msra.mxu0 %v4035
    %5584 = vmatpush.bf16.msra.mxu0 %v4033
    %5585 = vmatpush.bf16.msra.mxu0 %v4031
    %5586 = vmatmul.bf16.gmra.mxu0 %v868
    %v5587 = vpop.f32.mrf.mxu0
    %v5588 = vadd.f32 %v5569, %v5587
    %v5589 = vpop.f32.mrf.mxu0
    %v5590 = vadd.f32 %v5571, %v5589
    %5591 = vmatmul.bf16.gmra.mxu0 %v910
    %v5592 = vpop.f32.mrf.mxu0
    %v5593 = vadd.f32 %v5574, %v5592
    %v5594 = vpop.f32.mrf.mxu0
    %v5595 = vadd.f32 %v5576, %v5594
    %5596 = vdwg.mxu0
    %5597 = vmatpush.bf16.msra.mxu0 %v4061
    %5598 = vmatpush.bf16.msra.mxu0 %v4059
    %5599 = vmatpush.bf16.msra.mxu0 %v4057
    %5600 = vmatpush.bf16.msra.mxu0 %v4055
    %5601 = vmatpush.bf16.msra.mxu0 %v4053
    %5602 = vmatpush.bf16.msra.mxu0 %v4051
    %5603 = vmatpush.bf16.msra.mxu0 %v4049
    %5604 = vmatpush.bf16.msra.mxu0 %v4047
    %5605 = vmatmul.bf16.gmra.mxu0 %v869
    %v5606 = vpop.f32.mrf.mxu0
    %v5607 = vadd.f32 %v5588, %v5606
    %v5608 = vpop.f32.mrf.mxu0
    %v5609 = vadd.f32 %v5590, %v5608
    %5610 = vmatmul.bf16.gmra.mxu0 %v911
    %v5611 = vpop.f32.mrf.mxu0
    %v5612 = vadd.f32 %v5593, %v5611
    %v5613 = vpop.f32.mrf.mxu0
    %v5614 = vadd.f32 %v5595, %v5613
    %5615 = vdwg.mxu0
    %5616 = vmatpush.bf16.msra.mxu0 %v4077
    %5617 = vmatpush.bf16.msra.mxu0 %v4075
    %5618 = vmatpush.bf16.msra.mxu0 %v4073
    %5619 = vmatpush.bf16.msra.mxu0 %v4071
    %5620 = vmatpush.bf16.msra.mxu0 %v4069
    %5621 = vmatpush.bf16.msra.mxu0 %v4067
    %5622 = vmatpush.bf16.msra.mxu0 %v4065
    %5623 = vmatpush.bf16.msra.mxu0 %v4063
    %5624 = vmatmul.bf16.gmra.mxu0 %v870
    %v5625 = vpop.f32.mrf.mxu0
    %v5626 = vadd.f32 %v5607, %v5625
    %v5627 = vpop.f32.mrf.mxu0
    %v5628 = vadd.f32 %v5609, %v5627
    %5629 = vmatmul.bf16.gmra.mxu0 %v912
    %v5630 = vpop.f32.mrf.mxu0
    %v5631 = vadd.f32 %v5612, %v5630
    %v5632 = vpop.f32.mrf.mxu0
    %v5633 = vadd.f32 %v5614, %v5632
    %5634 = vdwg.mxu0
    %5635 = vmatpush.bf16.msra.mxu0 %v4093
    %5636 = vmatpush.bf16.msra.mxu0 %v4091
    %5637 = vmatpush.bf16.msra.mxu0 %v4089
    %5638 = vmatpush.bf16.msra.mxu0 %v4087
    %5639 = vmatpush.bf16.msra.mxu0 %v4085
    %5640 = vmatpush.bf16.msra.mxu0 %v4083
    %5641 = vmatpush.bf16.msra.mxu0 %v4081
    %5642 = vmatpush.bf16.msra.mxu0 %v4079
    %5643 = vmatmul.bf16.gmra.mxu0 %v871
    %v5644 = vpop.f32.mrf.mxu0
    %v5645 = vadd.f32 %v5626, %v5644
    %v5646 = vpop.f32.mrf.mxu0
    %v5647 = vadd.f32 %v5628, %v5646
    %5648 = vmatmul.bf16.gmra.mxu0 %v913
    %v5649 = vpop.f32.mrf.mxu0
    %v5650 = vadd.f32 %v5631, %v5649
    %v5651 = vpop.f32.mrf.mxu0
    %v5652 = vadd.f32 %v5633, %v5651
    %5653 = vdwg.mxu0
    %5654 = vmatpush.bf16.msra.mxu0 %v4109
    %5655 = vmatpush.bf16.msra.mxu0 %v4107
    %5656 = vmatpush.bf16.msra.mxu0 %v4105
    %5657 = vmatpush.bf16.msra.mxu0 %v4103
    %5658 = vmatpush.bf16.msra.mxu0 %v4101
    %5659 = vmatpush.bf16.msra.mxu0 %v4099
    %5660 = vmatpush.bf16.msra.mxu0 %v4097
    %5661 = vmatpush.bf16.msra.mxu0 %v4095
    %5662 = vmatmul.bf16.gmra.mxu0 %v872
    %v5663 = vpop.f32.mrf.mxu0
    %v5664 = vadd.f32 %v5645, %v5663
    %v5665 = vpop.f32.mrf.mxu0
    %v5666 = vadd.f32 %v5647, %v5665
    %5667 = vmatmul.bf16.gmra.mxu0 %v914
    %v5668 = vpop.f32.mrf.mxu0
    %v5669 = vadd.f32 %v5650, %v5668
    %v5670 = vpop.f32.mrf.mxu0
    %v5671 = vadd.f32 %v5652, %v5670
    %5672 = vdwg.mxu0
    %5673 = vmatpush.bf16.msra.mxu0 %v4125
    %5674 = vmatpush.bf16.msra.mxu0 %v4123
    %5675 = vmatpush.bf16.msra.mxu0 %v4121
    %5676 = vmatpush.bf16.msra.mxu0 %v4119
    %5677 = vmatpush.bf16.msra.mxu0 %v4117
    %5678 = vmatpush.bf16.msra.mxu0 %v4115
    %5679 = vmatpush.bf16.msra.mxu0 %v4113
    %5680 = vmatpush.bf16.msra.mxu0 %v4111
    %5681 = vmatmul.bf16.gmra.mxu0 %v873
    %v5682 = vpop.f32.mrf.mxu0
    %v5683 = vadd.f32 %v5664, %v5682
    %v5684 = vpop.f32.mrf.mxu0
    %v5685 = vadd.f32 %v5666, %v5684
    %5686 = vmatmul.bf16.gmra.mxu0 %v915
    %v5687 = vpop.f32.mrf.mxu0
    %v5688 = vadd.f32 %v5669, %v5687
    %v5689 = vpop.f32.mrf.mxu0
    %v5690 = vadd.f32 %v5671, %v5689
    %5691 = vdwg.mxu0
    %5692 = vmatpush.bf16.msra.mxu0 %v4141
    %5693 = vmatpush.bf16.msra.mxu0 %v4139
    %5694 = vmatpush.bf16.msra.mxu0 %v4137
    %5695 = vmatpush.bf16.msra.mxu0 %v4135
    %5696 = vmatpush.bf16.msra.mxu0 %v4133
    %5697 = vmatpush.bf16.msra.mxu0 %v4131
    %5698 = vmatpush.bf16.msra.mxu0 %v4129
    %5699 = vmatpush.bf16.msra.mxu0 %v4127
    %5700 = vmatmul.bf16.gmra.mxu0 %v874
    %v5701 = vpop.f32.mrf.mxu0
    %v5702 = vadd.f32 %v5683, %v5701
    %v5703 = vpop.f32.mrf.mxu0
    %v5704 = vadd.f32 %v5685, %v5703
    %5705 = vmatmul.bf16.gmra.mxu0 %v916
    %v5706 = vpop.f32.mrf.mxu0
    %v5707 = vadd.f32 %v5688, %v5706
    %v5708 = vpop.f32.mrf.mxu0
    %v5709 = vadd.f32 %v5690, %v5708
    %5710 = vdwg.mxu0
    %5711 = vmatpush.bf16.msra.mxu0 %v4157
    %5712 = vmatpush.bf16.msra.mxu0 %v4155
    %5713 = vmatpush.bf16.msra.mxu0 %v4153
    %5714 = vmatpush.bf16.msra.mxu0 %v4151
    %5715 = vmatpush.bf16.msra.mxu0 %v4149
    %5716 = vmatpush.bf16.msra.mxu0 %v4147
    %5717 = vmatpush.bf16.msra.mxu0 %v4145
    %5718 = vmatpush.bf16.msra.mxu0 %v4143
    %5719 = vmatmul.bf16.gmra.mxu0 %v875
    %v5720 = vpop.f32.mrf.mxu0
    %v5721 = vadd.f32 %v5702, %v5720
    %v5722 = vpop.f32.mrf.mxu0
    %v5723 = vadd.f32 %v5704, %v5722
    %5724 = vmatmul.bf16.gmra.mxu0 %v917
    %v5725 = vpop.f32.mrf.mxu0
    %v5726 = vadd.f32 %v5707, %v5725
    %v5727 = vpop.f32.mrf.mxu0
    %v5728 = vadd.f32 %v5709, %v5727
    %5729 = vdwg.mxu0
    %5730 = vmatpush.bf16.msra.mxu0 %v4173
    %5731 = vmatpush.bf16.msra.mxu0 %v4171
    %5732 = vmatpush.bf16.msra.mxu0 %v4169
    %5733 = vmatpush.bf16.msra.mxu0 %v4167
    %5734 = vmatpush.bf16.msra.mxu0 %v4165
    %5735 = vmatpush.bf16.msra.mxu0 %v4163
    %5736 = vmatpush.bf16.msra.mxu0 %v4161
    %5737 = vmatpush.bf16.msra.mxu0 %v4159
    %5738 = vmatmul.bf16.gmra.mxu0 %v876
    %v5739 = vpop.f32.mrf.mxu0
    %v5740 = vadd.f32 %v5721, %v5739
    %v5741 = vpop.f32.mrf.mxu0
    %v5742 = vadd.f32 %v5723, %v5741
    %5743 = vmatmul.bf16.gmra.mxu0 %v918
    %v5744 = vpop.f32.mrf.mxu0
    %v5745 = vadd.f32 %v5726, %v5744
    %v5746 = vpop.f32.mrf.mxu0
    %v5747 = vadd.f32 %v5728, %v5746
    %5748 = vdwg.mxu0
    %5749 = vmatpush.bf16.msra.mxu0 %v4189
    %5750 = vmatpush.bf16.msra.mxu0 %v4187
    %5751 = vmatpush.bf16.msra.mxu0 %v4185
    %5752 = vmatpush.bf16.msra.mxu0 %v4183
    %5753 = vmatpush.bf16.msra.mxu0 %v4181
    %5754 = vmatpush.bf16.msra.mxu0 %v4179
    %5755 = vmatpush.bf16.msra.mxu0 %v4177
    %5756 = vmatpush.bf16.msra.mxu0 %v4175
    %5757 = vmatmul.bf16.gmra.mxu0 %v877
    %v5758 = vpop.f32.mrf.mxu0
    %v5759 = vadd.f32 %v5740, %v5758
    %v5760 = vpop.f32.mrf.mxu0
    %v5761 = vadd.f32 %v5742, %v5760
    %5762 = vmatmul.bf16.gmra.mxu0 %v919
    %v5763 = vpop.f32.mrf.mxu0
    %v5764 = vadd.f32 %v5745, %v5763
    %v5765 = vpop.f32.mrf.mxu0
    %v5766 = vadd.f32 %v5747, %v5765
    %5767 = vdwg.mxu0
    %5768 = vmatpush.bf16.msra.mxu0 %v4205
    %5769 = vmatpush.bf16.msra.mxu0 %v4203
    %5770 = vmatpush.bf16.msra.mxu0 %v4201
    %5771 = vmatpush.bf16.msra.mxu0 %v4199
    %5772 = vmatpush.bf16.msra.mxu0 %v4197
    %5773 = vmatpush.bf16.msra.mxu0 %v4195
    %5774 = vmatpush.bf16.msra.mxu0 %v4193
    %5775 = vmatpush.bf16.msra.mxu0 %v4191
    %5776 = vmatmul.bf16.gmra.mxu0 %v878
    %v5777 = vpop.f32.mrf.mxu0
    %v5778 = vadd.f32 %v5759, %v5777
    %v5779 = vpop.f32.mrf.mxu0
    %v5780 = vadd.f32 %v5761, %v5779
    %5781 = vmatmul.bf16.gmra.mxu0 %v920
    %v5782 = vpop.f32.mrf.mxu0
    %v5783 = vadd.f32 %v5764, %v5782
    %v5784 = vpop.f32.mrf.mxu0
    %v5785 = vadd.f32 %v5766, %v5784
    %5786 = vdwg.mxu0
    %5787 = vmatpush.bf16.msra.mxu0 %v4221
    %5788 = vmatpush.bf16.msra.mxu0 %v4219
    %5789 = vmatpush.bf16.msra.mxu0 %v4217
    %5790 = vmatpush.bf16.msra.mxu0 %v4215
    %5791 = vmatpush.bf16.msra.mxu0 %v4213
    %5792 = vmatpush.bf16.msra.mxu0 %v4211
    %5793 = vmatpush.bf16.msra.mxu0 %v4209
    %5794 = vmatpush.bf16.msra.mxu0 %v4207
    %5795 = vmatmul.bf16.gmra.mxu0 %v879
    %v5796 = vpop.f32.mrf.mxu0
    %v5797 = vadd.f32 %v5778, %v5796
    %v5798 = vpop.f32.mrf.mxu0
    %v5799 = vadd.f32 %v5780, %v5798
    %5800 = vmatmul.bf16.gmra.mxu0 %v921
    %v5801 = vpop.f32.mrf.mxu0
    %v5802 = vadd.f32 %v5783, %v5801
    %v5803 = vpop.f32.mrf.mxu0
    %v5804 = vadd.f32 %v5785, %v5803
    %5805 = vdwg.mxu0
    %5806 = vmatpush.bf16.msra.mxu0 %v4237
    %5807 = vmatpush.bf16.msra.mxu0 %v4235
    %5808 = vmatpush.bf16.msra.mxu0 %v4233
    %5809 = vmatpush.bf16.msra.mxu0 %v4231
    %5810 = vmatpush.bf16.msra.mxu0 %v4229
    %5811 = vmatpush.bf16.msra.mxu0 %v4227
    %5812 = vmatpush.bf16.msra.mxu0 %v4225
    %5813 = vmatpush.bf16.msra.mxu0 %v4223
    %5814 = vmatmul.bf16.gmra.mxu0 %v880
    %v5815 = vpop.f32.mrf.mxu0
    %v5816 = vadd.f32 %v5797, %v5815
    %v5817 = vpop.f32.mrf.mxu0
    %v5818 = vadd.f32 %v5799, %v5817
    %5819 = vmatmul.bf16.gmra.mxu0 %v922
    %v5820 = vpop.f32.mrf.mxu0
    %v5821 = vadd.f32 %v5802, %v5820
    %v5822 = vpop.f32.mrf.mxu0
    %v5823 = vadd.f32 %v5804, %v5822
    %5824 = vdwg.mxu0
    %5825 = vmatpush.bf16.msra.mxu0 %v4253
    %5826 = vmatpush.bf16.msra.mxu0 %v4251
    %5827 = vmatpush.bf16.msra.mxu0 %v4249
    %5828 = vmatpush.bf16.msra.mxu0 %v4247
    %5829 = vmatpush.bf16.msra.mxu0 %v4245
    %5830 = vmatpush.bf16.msra.mxu0 %v4243
    %5831 = vmatpush.bf16.msra.mxu0 %v4241
    %5832 = vmatpush.bf16.msra.mxu0 %v4239
    %5833 = vmatmul.bf16.gmra.mxu0 %v881
    %v5834 = vpop.f32.mrf.mxu0
    %v5835 = vadd.f32 %v5816, %v5834
    %v5836 = vpop.f32.mrf.mxu0
    %v5837 = vadd.f32 %v5818, %v5836
    %5838 = vmatmul.bf16.gmra.mxu0 %v923
    %v5839 = vpop.f32.mrf.mxu0
    %v5840 = vadd.f32 %v5821, %v5839
    %v5841 = vpop.f32.mrf.mxu0
    %v5842 = vadd.f32 %v5823, %v5841
    %5843 = vdwg.mxu0
    %5844 = vmatpush.bf16.msra.mxu0 %v4269
    %5845 = vmatpush.bf16.msra.mxu0 %v4267
    %5846 = vmatpush.bf16.msra.mxu0 %v4265
    %5847 = vmatpush.bf16.msra.mxu0 %v4263
    %5848 = vmatpush.bf16.msra.mxu0 %v4261
    %5849 = vmatpush.bf16.msra.mxu0 %v4259
    %5850 = vmatpush.bf16.msra.mxu0 %v4257
    %5851 = vmatpush.bf16.msra.mxu0 %v4255
    %5852 = vmatmul.bf16.gmra.mxu0 %v882
    %v5853 = vpop.f32.mrf.mxu0
    %v5854 = vadd.f32 %v5835, %v5853
    %v5855 = vpop.f32.mrf.mxu0
    %v5856 = vadd.f32 %v5837, %v5855
    %5857 = vmatmul.bf16.gmra.mxu0 %v924
    %v5858 = vpop.f32.mrf.mxu0
    %v5859 = vadd.f32 %v5840, %v5858
    %v5860 = vpop.f32.mrf.mxu0
    %v5861 = vadd.f32 %v5842, %v5860
    %5862 = vdwg.mxu0
    %5863 = vmatpush.bf16.msra.mxu0 %v4285
    %5864 = vmatpush.bf16.msra.mxu0 %v4283
    %5865 = vmatpush.bf16.msra.mxu0 %v4281
    %5866 = vmatpush.bf16.msra.mxu0 %v4279
    %5867 = vmatpush.bf16.msra.mxu0 %v4277
    %5868 = vmatpush.bf16.msra.mxu0 %v4275
    %5869 = vmatpush.bf16.msra.mxu0 %v4273
    %5870 = vmatpush.bf16.msra.mxu0 %v4271
    %5871 = vmatmul.bf16.gmra.mxu0 %v883
    %v5872 = vpop.f32.mrf.mxu0
    %v5873 = vadd.f32 %v5854, %v5872
    %v5874 = vpop.f32.mrf.mxu0
    %v5875 = vadd.f32 %v5856, %v5874
    %5876 = vmatmul.bf16.gmra.mxu0 %v925
    %v5877 = vpop.f32.mrf.mxu0
    %v5878 = vadd.f32 %v5859, %v5877
    %v5879 = vpop.f32.mrf.mxu0
    %v5880 = vadd.f32 %v5861, %v5879
    %5881 = vdwg.mxu0
    %v5882 = vld [vmem:[#allocation7] sm:$0x3]
    %v5884 = vperm.slane %v5882, 0
    %v5885 = vperm.slane %v5882, 1
    %v5888 = vmul.f32 %v5075, %v5884
    %v5889 = vmul.f32 %v5873, %v5885
    %v5890 = vmul.f32 %v5077, %v5884
    %v5891 = vmul.f32 %v5875, %v5885
    %v5892 = vmul.f32 %v5080, %v5884
    %v5893 = vmul.f32 %v5878, %v5885
    %v5894 = vmul.f32 %v5082, %v5884
    %v5895 = vmul.f32 %v5880, %v5885
    %v5896 = vld [vmem:[#allocation8] sm:$0x3]
    %v5898 = vperm.slane %v5896, 0
    %v5899 = vperm.slane %v5896, 1
    %v5902 = vadd.f32 %v5888, %v5898
    %v5903 = vadd.f32 %v5889, %v5899
    %v5904 = vadd.f32 %v5890, %v5898
    %v5905 = vadd.f32 %v5891, %v5899
    %v5906 = vadd.f32 %v5892, %v5898
    %v5907 = vadd.f32 %v5893, %v5899
    %v5908 = vadd.f32 %v5894, %v5898
    %v5909 = vadd.f32 %v5895, %v5899
    %v5910 = vmax.f32 %v5902, 0.0
    %v5911 = vmax.f32 %v5903, 0.0
    %v5912 = vmax.f32 %v5904, 0.0
    %v5913 = vmax.f32 %v5905, 0.0
    %v5914 = vmax.f32 %v5906, 0.0
    %v5915 = vmax.f32 %v5907, 0.0
    %v5916 = vmax.f32 %v5908, 0.0
    %v5917 = vmax.f32 %v5909, 0.0
    %v5918 = vpack.c.bf16 %v5912, %v5910
    %v5919 = vpack.c.bf16 %v5913, %v5911
    %v5920 = vpack.c.bf16 %v5916, %v5914
    %v5921 = vpack.c.bf16 %v5917, %v5915
    %v5922 = vld [vmem:[#allocation10] sm:$0xf]
    %v5923 = vld [vmem:[#allocation10 + $0x4] sm:$0xf]
    %v5924 = vld [vmem:[#allocation10 + $0x8] sm:$0xf]
    %v5925 = vld [vmem:[#allocation10 + $0xc] sm:$0xf]
    %v5926 = vld [vmem:[#allocation10 + $0x10] sm:$0xf]
    %v5927 = vld [vmem:[#allocation10 + $0x14] sm:$0xf]
    %v5928 = vld [vmem:[#allocation10 + $0x18] sm:$0xf]
    %v5929 = vld [vmem:[#allocation10 + $0x1c] sm:$0xf]
    %v5930 = vld [vmem:[#allocation10 + $0x20] sm:$0xf]
    %v5931 = vld [vmem:[#allocation10 + $0x24] sm:$0xf]
    %v5932 = vld [vmem:[#allocation10 + $0x28] sm:$0xf]
    %v5933 = vld [vmem:[#allocation10 + $0x2c] sm:$0xf]
    %v5934 = vld [vmem:[#allocation10 + $0x30] sm:$0xf]
    %v5935 = vld [vmem:[#allocation10 + $0x34] sm:$0xf]
    %v5936 = vld [vmem:[#allocation10 + $0x38] sm:$0xf]
    %v5937 = vld [vmem:[#allocation10 + $0x3c] sm:$0xf]
    %v5938 = vld [vmem:[#allocation10 + $0x40] sm:$0xf]
    %v5939 = vld [vmem:[#allocation10 + $0x44] sm:$0xf]
    %v5940 = vld [vmem:[#allocation10 + $0x48] sm:$0xf]
    %v5941 = vld [vmem:[#allocation10 + $0x4c] sm:$0xf]
    %v5942 = vld [vmem:[#allocation10 + $0x50] sm:$0xf]
    %v5943 = vld [vmem:[#allocation10 + $0x54] sm:$0xf]
    %v5944 = vld [vmem:[#allocation10 + $0x58] sm:$0xf]
    %v5945 = vld [vmem:[#allocation10 + $0x5c] sm:$0xf]
    %v5946 = vld [vmem:[#allocation10 + $0x60] sm:$0xf]
    %v5947 = vld [vmem:[#allocation10 + $0x64] sm:$0xf]
    %v5948 = vld [vmem:[#allocation10 + $0x68] sm:$0xf]
    %v5949 = vld [vmem:[#allocation10 + $0x6c] sm:$0xf]
    %v5950 = vld [vmem:[#allocation10 + $0x70] sm:$0xf]
    %v5951 = vld [vmem:[#allocation10 + $0x74] sm:$0xf]
    %v5952 = vld [vmem:[#allocation10 + $0x78] sm:$0xf]
    %v5953 = vld [vmem:[#allocation10 + $0x7c] sm:$0xf]
    %v5954 = vld [vmem:[#allocation11] sm:$0x1]
    %v5956 = vperm.slane %v5954, 0
    %v5990 = vunpack.c.l.b16 %v5922
    %v5991 = vunpack.c.l.b16 %v5923
    %v5992 = vunpack.c.l.b16 %v5924
    %v5993 = vunpack.c.l.b16 %v5925
    %v5994 = vunpack.c.l.b16 %v5926
    %v5995 = vunpack.c.l.b16 %v5927
    %v5996 = vunpack.c.l.b16 %v5928
    %v5997 = vunpack.c.l.b16 %v5929
    %v5998 = vunpack.c.l.b16 %v5930
    %v5999 = vunpack.c.l.b16 %v5931
    %v6000 = vunpack.c.l.b16 %v5932
    %v6001 = vunpack.c.l.b16 %v5933
    %v6002 = vunpack.c.l.b16 %v5934
    %v6003 = vunpack.c.l.b16 %v5935
    %v6004 = vunpack.c.l.b16 %v5936
    %v6005 = vunpack.c.l.b16 %v5937
    %v6006 = vunpack.c.l.b16 %v5938
    %v6007 = vunpack.c.l.b16 %v5939
    %v6008 = vunpack.c.l.b16 %v5940
    %v6009 = vunpack.c.l.b16 %v5941
    %v6010 = vunpack.c.l.b16 %v5942
    %v6011 = vunpack.c.l.b16 %v5943
    %v6012 = vunpack.c.l.b16 %v5944
    %v6013 = vunpack.c.l.b16 %v5945
    %v6014 = vunpack.c.l.b16 %v5946
    %v6015 = vunpack.c.l.b16 %v5947
    %v6016 = vunpack.c.l.b16 %v5948
    %v6017 = vunpack.c.l.b16 %v5949
    %v6018 = vunpack.c.l.b16 %v5950
    %v6019 = vunpack.c.l.b16 %v5951
    %v6020 = vunpack.c.l.b16 %v5952
    %v6021 = vunpack.c.l.b16 %v5953
    %v6022 = vpack.c.b16 %v5991, %v5990
    %v6023 = vpack.c.b16 %v5993, %v5992
    %v6024 = vpack.c.b16 %v5995, %v5994
    %v6025 = vpack.c.b16 %v5997, %v5996
    %v6026 = vpack.c.b16 %v5999, %v5998
    %v6027 = vpack.c.b16 %v6001, %v6000
    %v6028 = vpack.c.b16 %v6003, %v6002
    %v6029 = vpack.c.b16 %v6005, %v6004
    %v6030 = vpack.c.b16 %v6007, %v6006
    %v6031 = vpack.c.b16 %v6009, %v6008
    %v6032 = vpack.c.b16 %v6011, %v6010
    %v6033 = vpack.c.b16 %v6013, %v6012
    %v6034 = vpack.c.b16 %v6015, %v6014
    %v6035 = vpack.c.b16 %v6017, %v6016
    %v6036 = vpack.c.b16 %v6019, %v6018
    %v6037 = vpack.c.b16 %v6021, %v6020
    %6054 = vmatpush.bf16.msra.mxu0 %v6029
    %6055 = vmatpush.bf16.msra.mxu0 %v6028
    %6056 = vmatpush.bf16.msra.mxu0 %v6027
    %6057 = vmatpush.bf16.msra.mxu0 %v6026
    %6058 = vmatpush.bf16.msra.mxu0 %v6025
    %6059 = vmatpush.bf16.msra.mxu0 %v6024
    %6060 = vmatpush.bf16.msra.mxu0 %v6023
    %6061 = vmatpush.bf16.msra.mxu0 %v6022
    %6062 = vmatmul.bf16.gmra.mxu0 %v5918
    %v6063 = vpop.f32.mrf.mxu0
    %v6064 = vadd.f32 %v5956, %v6063
    %v6065 = vpop.f32.mrf.mxu0
    %v6066 = vadd.f32 %v5956, %v6065
    %6067 = vmatmul.bf16.gmra.mxu0 %v5920
    %v6068 = vpop.f32.mrf.mxu0
    %v6069 = vadd.f32 %v5956, %v6068
    %v6070 = vpop.f32.mrf.mxu0
    %v6071 = vadd.f32 %v5956, %v6070
    %6072 = vdwg.mxu0
    %6073 = vmatpush.bf16.msra.mxu0 %v6037
    %6074 = vmatpush.bf16.msra.mxu0 %v6036
    %6075 = vmatpush.bf16.msra.mxu0 %v6035
    %6076 = vmatpush.bf16.msra.mxu0 %v6034
    %6077 = vmatpush.bf16.msra.mxu0 %v6033
    %6078 = vmatpush.bf16.msra.mxu0 %v6032
    %6079 = vmatpush.bf16.msra.mxu0 %v6031
    %6080 = vmatpush.bf16.msra.mxu0 %v6030
    %6081 = vmatmul.bf16.gmra.mxu0 %v5919
    %v6082 = vpop.f32.mrf.mxu0
    %v6083 = vadd.f32 %v6064, %v6082
    %v6084 = vpop.f32.mrf.mxu0
    %v6085 = vadd.f32 %v6066, %v6084
    %6086 = vmatmul.bf16.gmra.mxu0 %v5921
    %v6087 = vpop.f32.mrf.mxu0
    %v6088 = vadd.f32 %v6069, %v6087
    %v6089 = vpop.f32.mrf.mxu0
    %v6090 = vadd.f32 %v6071, %v6089
    %6091 = vdwg.mxu0
    %v6092 = vld [vmem:[#allocation13] sm:$0xff]
    %v6093 = vld [vmem:[#allocation13 + $0x8] sm:$0xff]
    %v6094 = vld [vmem:[#allocation13 + $0x10] sm:$0xff]
    %v6095 = vld [vmem:[#allocation13 + $0x18] sm:$0xff]
    %v6096 = vlaneseq
    %v6097 = vshrl.u32 %v6096, 7
    %v6098 = vadd.s32 %v6097, 8
    %v6099 = vadd.s32 %v6097, 16
    %v6100 = vadd.s32 %v6097, 24
    %vm6101 = vcmp.lt.s32.totalorder %v6097, 2
    %vm6102 = vcmp.lt.s32.totalorder %v6098, 2
    %vm6103 = vcmp.lt.s32.totalorder %v6099, 2
    %vm6104 = vcmp.lt.s32.totalorder %v6100, 2
    %v6105 = vsel %vm6101, %v6083, inf
    %v6106 = vsel %vm6102, %v6085, inf
    %v6107 = vsel %vm6103, %v6088, inf
    %v6108 = vsel %vm6104, %v6090, inf
    %v6109 = vmin.f32 %v6105, %v6106
    %v6110 = vmin.f32 %v6107, %v6108
    %v6111 = vmin.f32 %v6109, %v6110
    %6112 = vmin.xlane.f32.xlu0 %v6111
    %v6113 = vpop.xlane.xlu0 %6112
    %v6114 = vrot.slane %v6113, 4
    %v6115 = vmin.f32 %v6113, %v6114
    %v6116 = vrot.slane %v6115, 2
    %v6117 = vmin.f32 %v6115, %v6116
    %v6118 = vrot.slane %v6117, 1
    %v6119 = vmin.f32 %v6117, %v6118
    %s6120 = vtos %v6119
    %v6121 = vsel %vm6101, %v6083, -inf
    %v6122 = vsel %vm6102, %v6085, -inf
    %v6123 = vsel %vm6103, %v6088, -inf
    %v6124 = vsel %vm6104, %v6090, -inf
    %v6125 = vmax.f32 %v6121, %v6122
    %v6126 = vmax.f32 %v6123, %v6124
    %v6127 = vmax.f32 %v6125, %v6126
    %6128 = vmax.xlane.f32.xlu0 %v6127
    %v6129 = vpop.xlane.xlu0 %6128
    %v6130 = vrot.slane %v6129, 4
    %v6131 = vmax.f32 %v6129, %v6130
    %v6132 = vrot.slane %v6131, 2
    %v6133 = vmax.f32 %v6131, %v6132
    %v6134 = vrot.slane %v6133, 1
    %v6135 = vmax.f32 %v6133, %v6134
    %s6136 = vtos %v6135
    %s6137 = ssub.f32 %s6120, %s6136
    %s6138 = ssub.f32 %s6137, 20.0
    %v6139 = vstv %s6138
    %v6140 = vmul.f32 %v6139, %v6092
    %v6141 = vmul.f32 %v6139, %v6093
    %v6142 = vmul.f32 %v6139, %v6094
    %v6143 = vmul.f32 %v6139, %v6095
    %v6144 = vadd.f32 %v6083, %v6140
    %v6145 = vadd.f32 %v6085, %v6141
    %v6146 = vadd.f32 %v6088, %v6142
    %v6147 = vadd.f32 %v6090, %v6143
    %6148 = vst [vmem:[#allocation14] sm:$0xff] %v6144
    %6149 = vst [vmem:[#allocation14 + $0x8] sm:$0xff] %v6145
    %6150 = vst [vmem:[#allocation14 + $0x10] sm:$0xff] %v6146
    %6151 = vst [vmem:[#allocation14 + $0x18] sm:$0xff] %v6147
    // Predicated region
    $region58: #{tpu_custom_call.1} parent=1 // pred_check
      _
    $region59: #{tpu_custom_call.1} parent=1 // pred_check_branch
      %6153 = sbr.rel (0) target = $region61
    $region60: #{tpu_custom_call.1} parent=1 // pred_region
      %6155 = vsyncadd [#allocation4], 0
      %s6156 = sshll.u32 [#allocation14], 4
      %s6157 = int_to_ptr.vmem [resolvable:$true] %s6156
      %s6158 = sshll.u32 %s7, 4
      %s6159 = int_to_ptr.hbm [resolvable:$true] %s6158
      %6164 = dma.vmem_to_hbm [thread:$0]  %s6157, 512, %s6159, [#allocation4], 128, 128, 8
    $region61: #{tpu_custom_call.1} parent=1 // pred_fallthru
      _
    // Predicated region
    $region62: #{tpu_custom_call.1} parent=1 // pred_check
      _
    $region63: #{tpu_custom_call.1} parent=1 // pred_check_branch
      %6166 = sbr.rel (0) target = $region65
    $region64: #{tpu_custom_call.1} parent=1 // pred_region
      %6168 = dma.done [#allocation4], 512
    $region65: #{tpu_custom_call.1} parent=1 // pred_fallthru
      _
    %6169 = vsyncpa [#allocation3], 1
    %6170 = vsyncpa [#allocation6], 1
    %6171 = vsyncpa [#allocation9], 1
    %6172 = vsyncpa [#allocation12], 1
    %6173 = vsyncpa [#allocation4], 1

</llo_original>
